<compile_context>
chip_gen: v7x
topology: tpu7x:2x2x1
jax: 0.10.0
libtpu: 0.0.40
codegen_flags: <defaults>
</compile_context>

<pallas_src>
import jax
import jax.numpy as jnp
from jax.experimental import pallas as pl
from jax.experimental.pallas import tpu as pltpu

# ---- model hyperparameters (consistent with EncoderPrenet.__init__) ----
N_VOCAB = 40
D_EMB = 32          # kernel assumes D_EMB == D_HIDDEN (true for this config)
D_HIDDEN = 32
N_CONV = 3
KERNEL = 5
PAD = KERNEL // 2
BN_EPS = 1e-5
B, T = 2, 16
BT = B * T

GROUP = 128 // D_HIDDEN             # time steps packed per 128-lane output row (=4)
OUT_ROWS = (BT * D_HIDDEN) // 128   # lane-dense output rows (=8)
assert 128 % D_HIDDEN == 0 and (BT * D_HIDDEN) % 128 == 0


def prenet_kernel(ids_ref, emb_ref, w_ref, shift_ref, wpw_ref, bpw_ref, o_ref):
    """Whole-batch prenet in one step.

    ids_ref   : (B*T, 1)        int32 token ids
    emb_ref   : (V, C)          embedding table
    w_ref     : (3, K, C, C)    per-tap conv weights, eval-mode BN scale folded in
    shift_ref : (3, 1, C)       folded conv-bias + BN shift
    wpw_ref   : (G, C, 128)     projection weight (W.T) pre-placed into lane block j
    bpw_ref   : (1, 128)        projection bias tiled G times along lanes
    o_ref     : (OUT_ROWS, 128) lane-dense output; row r packs time rows G*r .. G*r+G-1
    """
    # ---- fused embedding gather: one-hot (BT, V) @ (V, C) on the MXU ----
    ids = ids_ref[...]                                                   # (BT, 1) int32
    vocab_iota = jax.lax.broadcasted_iota(jnp.int32, (BT, N_VOCAB), 1)
    onehot = (vocab_iota == ids).astype(jnp.float32)                     # (BT, V)
    cur = jnp.dot(onehot, emb_ref[...], preferred_element_type=jnp.float32)  # (BT, C)

    # per-row time index (rows ordered b*T + t); per-tap validity masks hoisted out of
    # the layer loop.  A mask zeroes rows whose source time lands in the zero padding
    # or would wrap across the batch / array boundary under the roll.
    t_idx = jax.lax.broadcasted_iota(jnp.int32, (BT, D_HIDDEN), 0) % T
    tap_mask = {}
    for k in range(KERNEL):
        if k == PAD:
            continue
        tap_mask[k] = (t_idx >= PAD - k) & (t_idx < T + PAD - k)

    # ---- 3 x [Conv1d(k=5,'same') + folded eval-mode BatchNorm + ReLU] ----
    # per tap: sublane roll (XLU slot) + iota mask (VPU select) + 32-deep MXU push
    for l in range(N_CONV):
        acc = jnp.dot(cur, w_ref[l, PAD], preferred_element_type=jnp.float32)  # center tap
        for k in range(KERNEL):
            if k == PAD:
                continue
            shifted = pltpu.roll(cur, shift=(PAD - k) % BT, axis=0)
            shifted = jnp.where(tap_mask[k], shifted, 0.0)
            acc = acc + jnp.dot(shifted, w_ref[l, k],
                                preferred_element_type=jnp.float32)
        cur = jnp.maximum(acc + shift_ref[l], 0.0)   # conv bias + BN shift, then ReLU
        # TODO(synk): Dropout(p=0.2) is identity here (inference semantics).

    # ---- lane-dense projection + store ----
    # out_dense[r, C*j + c] = (cur @ Wp.T + bp)[G*r + j, c], built with iota row-selection
    # matmuls (no lane-dim reshape needed); final store is one unmasked full-width slab.
    r_base = GROUP * jax.lax.broadcasted_iota(jnp.int32, (OUT_ROWS, BT), 0)
    row_col = jax.lax.broadcasted_iota(jnp.int32, (OUT_ROWS, BT), 1)
    out_d = jnp.zeros((OUT_ROWS, 128), jnp.float32) + bpw_ref[...]
    for j in range(GROUP):
        sel = (row_col == r_base + j).astype(jnp.float32)                # (OUT_ROWS, BT)
        picked = jnp.dot(sel, cur, preferred_element_type=jnp.float32)   # (OUT_ROWS, C)
        out_d = out_d + jnp.dot(picked, wpw_ref[j],
                                preferred_element_type=jnp.float32)      # (OUT_ROWS, 128)
    o_ref[...] = out_d.astype(o_ref.dtype)


def encoder_prenet(x_ids, emb_table, w_all, shift_all, wpw, bpw):
    """x_ids: [B, T] int token ids. Returns [B, T, D_HIDDEN] float32."""
    Bn, Tn = x_ids.shape
    C = emb_table.shape[1]
    ids2 = x_ids.reshape(Bn * Tn, 1).astype(jnp.int32)

    def full(shape):
        n = len(shape)
        return pl.BlockSpec(tuple(shape), lambda i, _n=n: (0,) * _n)

    out = pl.pallas_call(
        prenet_kernel,
        out_shape=jax.ShapeDtypeStruct((OUT_ROWS, 128), jnp.float32),
        grid_spec=pltpu.PrefetchScalarGridSpec(
            num_scalar_prefetch=0,
            # single collapsed step over the whole (B*T, C) slab (single TC on v5e/v6e).
            # v7x: only reintroduce a "parallel" batch grid axis once BT is large enough
            # that compute, not the fixed per-step overhead, dominates.
            grid=(1,),
            in_specs=[full(ids2.shape), full(emb_table.shape), full(w_all.shape),
                      full(shift_all.shape), full(wpw.shape), full(bpw.shape)],
            out_specs=full((OUT_ROWS, 128)),
        ),
        compiler_params=pltpu.CompilerParams(dimension_semantics=("arbitrary",)),
    )(ids2, emb_table, w_all, shift_all, wpw, bpw)
    return out.reshape(Bn, Tn, C)


def reference(x_ids, emb_table, conv_ws, conv_bs, gammas, betas, means, variances,
              proj_w, proj_b):
    """Pure-JAX mirror of the PyTorch forward (eval mode, unfused BN)."""
    h = emb_table[x_ids]                                  # [B, T, C]
    Tn = h.shape[1]
    for l in range(N_CONV):
        hp = jnp.pad(h, ((0, 0), (PAD, PAD), (0, 0)))
        out = sum(jnp.einsum('btc,cd->btd', hp[:, k:k + Tn, :], conv_ws[l][k])
                  for k in range(KERNEL))
        out = out + conv_bs[l]
        out = (out - means[l]) / jnp.sqrt(variances[l] + BN_EPS) * gammas[l] + betas[l]
        h = jnp.maximum(out, 0.0)
    return h @ proj_w.T + proj_b


if __name__ == "__main__":
    key = jax.random.PRNGKey(0)
    ks = jax.random.split(key, 20)

    # ---- deterministic synthetic parameters (shapes from EncoderPrenet.__init__) ----
    emb_table = 0.1 * jax.random.normal(ks[0], (N_VOCAB, D_EMB), jnp.float32)

    conv_ws, conv_bs, gammas, betas, means, variances = [], [], [], [], [], []
    in_c = [D_EMB] + [D_HIDDEN] * (N_CONV - 1)
    for l in range(N_CONV):
        # torch Conv1d weight is [out, in, K]; stored here as [K, in, out] (per-tap mats)
        conv_ws.append(0.1 * jax.random.normal(ks[1 + l], (KERNEL, in_c[l], D_HIDDEN), jnp.float32))
        conv_bs.append(0.01 * jax.random.normal(ks[4 + l], (1, D_HIDDEN), jnp.float32))
        gammas.append(1.0 + 0.1 * jax.random.normal(ks[7 + l], (1, D_HIDDEN), jnp.float32))
        betas.append(0.1 * jax.random.normal(ks[10 + l], (1, D_HIDDEN), jnp.float32))
        means.append(0.05 * jax.random.normal(ks[13 + l], (1, D_HIDDEN), jnp.float32))
        variances.append(1.0 + 0.1 * jax.random.uniform(ks[16 + l], (1, D_HIDDEN), jnp.float32))

    proj_w = 0.1 * jax.random.normal(ks[19], (D_HIDDEN, D_HIDDEN), jnp.float32)  # torch [out, in]
    proj_b = 0.01 * jnp.arange(D_HIDDEN, dtype=jnp.float32).reshape(1, D_HIDDEN)

    # ---- fold eval-mode BN (+ conv bias) into per-tap weight/shift and pack params ----
    w_folded, shifts = [], []
    for l in range(N_CONV):
        scale = gammas[l] / jnp.sqrt(variances[l] + BN_EPS)        # (1, C)  scales out-channels
        w_folded.append(conv_ws[l] * scale)                        # (K, C, C)
        shifts.append((conv_bs[l] - means[l]) * scale + betas[l])  # (1, C)
    w_all = jnp.stack(w_folded)        # (3, K, C, C)
    shift_all = jnp.stack(shifts)      # (3, 1, C)

    # projection weight pre-placed per 32-lane block (lane-dense output), bias tiled
    wpw = jnp.zeros((GROUP, D_HIDDEN, 128), jnp.float32)
    for j in range(GROUP):
        wpw = wpw.at[j, :, j * D_HIDDEN:(j + 1) * D_HIDDEN].set(proj_w.T)
    bpw = jnp.tile(proj_b, (1, GROUP))  # (1, 128)

    # ---- input token ids ----
    x_ids = jax.random.randint(jax.random.PRNGKey(1), (B, T), 0, N_VOCAB)

    out = encoder_prenet(x_ids, emb_table, w_all, shift_all, wpw, bpw)
    out = jax.block_until_ready(out)

    ref = reference(x_ids, emb_table, conv_ws, conv_bs, gammas, betas, means, variances,
                    proj_w, proj_b)
    assert out.shape == (B, T, D_HIDDEN)
    assert jnp.allclose(out, ref, atol=1e-4, rtol=1e-4), float(jnp.max(jnp.abs(out - ref)))

    print("KERNEL_OK")
</pallas_src>

<mosaic_0001>
module attributes {stable_mosaic.version = 11 : i64} {
  func.func @prenet_kernel(%arg0: i32, %arg1: memref<32x1xi32, #tpu.memory_space<vmem>>, %arg2: memref<40x32xf32, #tpu.memory_space<vmem>>, %arg3: memref<3x5x32x32xf32, #tpu.memory_space<vmem>>, %arg4: memref<3x1x32xf32, #tpu.memory_space<vmem>>, %arg5: memref<4x32x128xf32, #tpu.memory_space<vmem>>, %arg6: memref<1x128xf32, #tpu.memory_space<vmem>>, %arg7: memref<8x128xf32, #tpu.memory_space<vmem>>) attributes {dimension_semantics = [#tpu.dimension_semantics<arbitrary>], iteration_bounds = array<i64: 1>, scalar_prefetch = 0 : i64, scratch_operands = 0 : i64, tpu.core_type = #tpu.core_type<tc>, window_params = [{pipeline_mode = #tpu.pipeline_mode<synchronous>, transform_indices = @transform_0, window_bounds = array<i64: 32, 1>}, {pipeline_mode = #tpu.pipeline_mode<synchronous>, transform_indices = @transform_1, window_bounds = array<i64: 40, 32>}, {pipeline_mode = #tpu.pipeline_mode<synchronous>, transform_indices = @transform_2, window_bounds = array<i64: 3, 5, 32, 32>}, {pipeline_mode = #tpu.pipeline_mode<synchronous>, transform_indices = @transform_3, window_bounds = array<i64: 3, 1, 32>}, {pipeline_mode = #tpu.pipeline_mode<synchronous>, transform_indices = @transform_4, window_bounds = array<i64: 4, 32, 128>}, {pipeline_mode = #tpu.pipeline_mode<synchronous>, transform_indices = @transform_5, window_bounds = array<i64: 1, 128>}, {pipeline_mode = #tpu.pipeline_mode<synchronous>, transform_indices = @transform_6, window_bounds = array<i64: 8, 128>}]} {
    %c0 = arith.constant 0 : index
    %c0_0 = arith.constant 0 : index
    %0 = vector.load %arg1[%c0, %c0_0] : memref<32x1xi32, #tpu.memory_space<vmem>>, vector<32x1xi32>
    %1 = tpu.iota {dimensions = array<i32: 1>} : vector<32x40xi32>
    %2 = vector.broadcast %0 : vector<32x1xi32> to vector<32x40xi32>
    %3 = arith.cmpi eq, %1, %2 : vector<32x40xi32>
    %4 = arith.extui %3 : vector<32x40xi1> to vector<32x40xi32>
    %5 = arith.sitofp %4 : vector<32x40xi32> to vector<32x40xf32>
    %c0_1 = arith.constant 0 : index
    %c0_2 = arith.constant 0 : index
    %6 = vector.load %arg2[%c0_1, %c0_2] : memref<40x32xf32, #tpu.memory_space<vmem>>, vector<40x32xf32>
    %cst = arith.constant dense<0.000000e+00> : vector<32x32xf32>
    %7 = tpu.matmul %5, %6, %cst {dimension_numbers = #tpu.dot_dimension_numbers<[1], [0], [0], [1], [0, 0, 1, 1], [], []>} : vector<32x40xf32>, vector<40x32xf32>, vector<32x32xf32> -> vector<32x32xf32>
    %8 = tpu.iota {dimensions = array<i32: 0>} : vector<32x32xi32>
    %c16_i32 = arith.constant 16 : i32
    %c0_i32 = arith.constant 0 : i32
    %9 = arith.cmpi eq, %c16_i32, %c0_i32 : i32
    %c1_i32 = arith.constant 1 : i32
    %10 = arith.select %9, %c1_i32, %c16_i32 : i32
    %11 = vector.broadcast %10 : i32 to vector<32x32xi32>
    %12 = arith.remsi %8, %11 : vector<32x32xi32>
    %c0_i32_3 = arith.constant 0 : i32
    %13 = vector.broadcast %c0_i32_3 : i32 to vector<32x32xi32>
    %14 = arith.cmpi ne, %12, %13 : vector<32x32xi32>
    %c0_i32_4 = arith.constant 0 : i32
    %15 = vector.broadcast %c0_i32_4 : i32 to vector<32x32xi32>
    %16 = arith.cmpi slt, %12, %15 : vector<32x32xi32>
    %c0_i32_5 = arith.constant 0 : i32
    %17 = arith.cmpi slt, %10, %c0_i32_5 : i32
    %18 = vector.broadcast %17 : i1 to vector<32x32xi1>
    %19 = vector.broadcast %18 : vector<32x32xi1> to vector<32x32xi1>
    %20 = arith.xori %16, %19 : vector<32x32xi1>
    %21 = arith.andi %20, %14 : vector<32x32xi1>
    %22 = vector.broadcast %10 : i32 to vector<32x32xi32>
    %23 = arith.addi %12, %22 : vector<32x32xi32>
    %24 = arith.select %21, %23, %12 : vector<32x32xi1>, vector<32x32xi32>
    %c2_i32 = arith.constant 2 : i32
    %25 = vector.broadcast %c2_i32 : i32 to vector<32x32xi32>
    %26 = arith.cmpi sge, %24, %25 : vector<32x32xi32>
    %c18_i32 = arith.constant 18 : i32
    %27 = vector.broadcast %c18_i32 : i32 to vector<32x32xi32>
    %28 = arith.cmpi slt, %24, %27 : vector<32x32xi32>
    %29 = arith.andi %26, %28 : vector<32x32xi1>
    %c1_i32_6 = arith.constant 1 : i32
    %30 = vector.broadcast %c1_i32_6 : i32 to vector<32x32xi32>
    %31 = arith.cmpi sge, %24, %30 : vector<32x32xi32>
    %c17_i32 = arith.constant 17 : i32
    %32 = vector.broadcast %c17_i32 : i32 to vector<32x32xi32>
    %33 = arith.cmpi slt, %24, %32 : vector<32x32xi32>
    %34 = arith.andi %31, %33 : vector<32x32xi1>
    %c-1_i32 = arith.constant -1 : i32
    %35 = vector.broadcast %c-1_i32 : i32 to vector<32x32xi32>
    %36 = arith.cmpi sge, %24, %35 : vector<32x32xi32>
    %c15_i32 = arith.constant 15 : i32
    %37 = vector.broadcast %c15_i32 : i32 to vector<32x32xi32>
    %38 = arith.cmpi slt, %24, %37 : vector<32x32xi32>
    %39 = arith.andi %36, %38 : vector<32x32xi1>
    %c-2_i32 = arith.constant -2 : i32
    %40 = vector.broadcast %c-2_i32 : i32 to vector<32x32xi32>
    %41 = arith.cmpi sge, %24, %40 : vector<32x32xi32>
    %c14_i32 = arith.constant 14 : i32
    %42 = vector.broadcast %c14_i32 : i32 to vector<32x32xi32>
    %43 = arith.cmpi slt, %24, %42 : vector<32x32xi32>
    %44 = arith.andi %41, %43 : vector<32x32xi1>
    %c0_7 = arith.constant 0 : index
    %c2 = arith.constant 2 : index
    %c0_8 = arith.constant 0 : index
    %c0_9 = arith.constant 0 : index
    %45 = vector.load %arg3[%c0_7, %c2, %c0_8, %c0_9] : memref<3x5x32x32xf32, #tpu.memory_space<vmem>>, vector<1x1x32x32xf32>
    %46 = vector.shape_cast %45 : vector<1x1x32x32xf32> to vector<32x32xf32>
    %cst_10 = arith.constant dense<0.000000e+00> : vector<32x32xf32>
    %47 = tpu.matmul %7, %46, %cst_10 {dimension_numbers = #tpu.dot_dimension_numbers<[1], [0], [0], [1], [0, 0, 1, 1], [], []>} : vector<32x32xf32>, vector<32x32xf32>, vector<32x32xf32> -> vector<32x32xf32>
    %c2_i32_11 = arith.constant 2 : i32
    %48 = tpu.dynamic_rotate %7 by %c2_i32_11 dim 0 : vector<32x32xf32>, i32 -> vector<32x32xf32>
    %cst_12 = arith.constant 0.000000e+00 : f32
    %49 = vector.broadcast %cst_12 : f32 to vector<32x32xf32>
    %50 = arith.select %29, %48, %49 : vector<32x32xi1>, vector<32x32xf32>
    %c0_13 = arith.constant 0 : index
    %c0_14 = arith.constant 0 : index
    %c0_15 = arith.constant 0 : index
    %c0_16 = arith.constant 0 : index
    %51 = vector.load %arg3[%c0_13, %c0_14, %c0_15, %c0_16] : memref<3x5x32x32xf32, #tpu.memory_space<vmem>>, vector<1x1x32x32xf32>
    %52 = vector.shape_cast %51 : vector<1x1x32x32xf32> to vector<32x32xf32>
    %cst_17 = arith.constant dense<0.000000e+00> : vector<32x32xf32>
    %53 = tpu.matmul %50, %52, %cst_17 {dimension_numbers = #tpu.dot_dimension_numbers<[1], [0], [0], [1], [0, 0, 1, 1], [], []>} : vector<32x32xf32>, vector<32x32xf32>, vector<32x32xf32> -> vector<32x32xf32>
    %54 = arith.addf %47, %53 : vector<32x32xf32>
    %c1_i32_18 = arith.constant 1 : i32
    %55 = tpu.dynamic_rotate %7 by %c1_i32_18 dim 0 : vector<32x32xf32>, i32 -> vector<32x32xf32>
    %cst_19 = arith.constant 0.000000e+00 : f32
    %56 = vector.broadcast %cst_19 : f32 to vector<32x32xf32>
    %57 = arith.select %34, %55, %56 : vector<32x32xi1>, vector<32x32xf32>
    %c0_20 = arith.constant 0 : index
    %c1 = arith.constant 1 : index
    %c0_21 = arith.constant 0 : index
    %c0_22 = arith.constant 0 : index
    %58 = vector.load %arg3[%c0_20, %c1, %c0_21, %c0_22] : memref<3x5x32x32xf32, #tpu.memory_space<vmem>>, vector<1x1x32x32xf32>
    %59 = vector.shape_cast %58 : vector<1x1x32x32xf32> to vector<32x32xf32>
    %cst_23 = arith.constant dense<0.000000e+00> : vector<32x32xf32>
    %60 = tpu.matmul %57, %59, %cst_23 {dimension_numbers = #tpu.dot_dimension_numbers<[1], [0], [0], [1], [0, 0, 1, 1], [], []>} : vector<32x32xf32>, vector<32x32xf32>, vector<32x32xf32> -> vector<32x32xf32>
    %61 = arith.addf %54, %60 : vector<32x32xf32>
    %c31_i32 = arith.constant 31 : i32
    %62 = tpu.dynamic_rotate %7 by %c31_i32 dim 0 : vector<32x32xf32>, i32 -> vector<32x32xf32>
    %cst_24 = arith.constant 0.000000e+00 : f32
    %63 = vector.broadcast %cst_24 : f32 to vector<32x32xf32>
    %64 = arith.select %39, %62, %63 : vector<32x32xi1>, vector<32x32xf32>
    %c0_25 = arith.constant 0 : index
    %c3 = arith.constant 3 : index
    %c0_26 = arith.constant 0 : index
    %c0_27 = arith.constant 0 : index
    %65 = vector.load %arg3[%c0_25, %c3, %c0_26, %c0_27] : memref<3x5x32x32xf32, #tpu.memory_space<vmem>>, vector<1x1x32x32xf32>
    %66 = vector.shape_cast %65 : vector<1x1x32x32xf32> to vector<32x32xf32>
    %cst_28 = arith.constant dense<0.000000e+00> : vector<32x32xf32>
    %67 = tpu.matmul %64, %66, %cst_28 {dimension_numbers = #tpu.dot_dimension_numbers<[1], [0], [0], [1], [0, 0, 1, 1], [], []>} : vector<32x32xf32>, vector<32x32xf32>, vector<32x32xf32> -> vector<32x32xf32>
    %68 = arith.addf %61, %67 : vector<32x32xf32>
    %c30_i32 = arith.constant 30 : i32
    %69 = tpu.dynamic_rotate %7 by %c30_i32 dim 0 : vector<32x32xf32>, i32 -> vector<32x32xf32>
    %cst_29 = arith.constant 0.000000e+00 : f32
    %70 = vector.broadcast %cst_29 : f32 to vector<32x32xf32>
    %71 = arith.select %44, %69, %70 : vector<32x32xi1>, vector<32x32xf32>
    %c0_30 = arith.constant 0 : index
    %c4 = arith.constant 4 : index
    %c0_31 = arith.constant 0 : index
    %c0_32 = arith.constant 0 : index
    %72 = vector.load %arg3[%c0_30, %c4, %c0_31, %c0_32] : memref<3x5x32x32xf32, #tpu.memory_space<vmem>>, vector<1x1x32x32xf32>
    %73 = vector.shape_cast %72 : vector<1x1x32x32xf32> to vector<32x32xf32>
    %cst_33 = arith.constant dense<0.000000e+00> : vector<32x32xf32>
    %74 = tpu.matmul %71, %73, %cst_33 {dimension_numbers = #tpu.dot_dimension_numbers<[1], [0], [0], [1], [0, 0, 1, 1], [], []>} : vector<32x32xf32>, vector<32x32xf32>, vector<32x32xf32> -> vector<32x32xf32>
    %75 = arith.addf %68, %74 : vector<32x32xf32>
    %c0_34 = arith.constant 0 : index
    %c0_35 = arith.constant 0 : index
    %c0_36 = arith.constant 0 : index
    %76 = vector.load %arg4[%c0_34, %c0_35, %c0_36] : memref<3x1x32xf32, #tpu.memory_space<vmem>>, vector<1x1x32xf32>
    %77 = vector.shape_cast %76 : vector<1x1x32xf32> to vector<1x32xf32>
    %78 = vector.broadcast %77 : vector<1x32xf32> to vector<32x32xf32>
    %79 = arith.addf %75, %78 : vector<32x32xf32>
    %cst_37 = arith.constant 0.000000e+00 : f32
    %80 = vector.broadcast %cst_37 : f32 to vector<32x32xf32>
    %81 = arith.maximumf %79, %80 : vector<32x32xf32>
    %c1_38 = arith.constant 1 : index
    %c2_39 = arith.constant 2 : index
    %c0_40 = arith.constant 0 : index
    %c0_41 = arith.constant 0 : index
    %82 = vector.load %arg3[%c1_38, %c2_39, %c0_40, %c0_41] : memref<3x5x32x32xf32, #tpu.memory_space<vmem>>, vector<1x1x32x32xf32>
    %83 = vector.shape_cast %82 : vector<1x1x32x32xf32> to vector<32x32xf32>
    %cst_42 = arith.constant dense<0.000000e+00> : vector<32x32xf32>
    %84 = tpu.matmul %81, %83, %cst_42 {dimension_numbers = #tpu.dot_dimension_numbers<[1], [0], [0], [1], [0, 0, 1, 1], [], []>} : vector<32x32xf32>, vector<32x32xf32>, vector<32x32xf32> -> vector<32x32xf32>
    %c2_i32_43 = arith.constant 2 : i32
    %85 = tpu.dynamic_rotate %81 by %c2_i32_43 dim 0 : vector<32x32xf32>, i32 -> vector<32x32xf32>
    %cst_44 = arith.constant 0.000000e+00 : f32
    %86 = vector.broadcast %cst_44 : f32 to vector<32x32xf32>
    %87 = arith.select %29, %85, %86 : vector<32x32xi1>, vector<32x32xf32>
    %c1_45 = arith.constant 1 : index
    %c0_46 = arith.constant 0 : index
    %c0_47 = arith.constant 0 : index
    %c0_48 = arith.constant 0 : index
    %88 = vector.load %arg3[%c1_45, %c0_46, %c0_47, %c0_48] : memref<3x5x32x32xf32, #tpu.memory_space<vmem>>, vector<1x1x32x32xf32>
    %89 = vector.shape_cast %88 : vector<1x1x32x32xf32> to vector<32x32xf32>
    %cst_49 = arith.constant dense<0.000000e+00> : vector<32x32xf32>
    %90 = tpu.matmul %87, %89, %cst_49 {dimension_numbers = #tpu.dot_dimension_numbers<[1], [0], [0], [1], [0, 0, 1, 1], [], []>} : vector<32x32xf32>, vector<32x32xf32>, vector<32x32xf32> -> vector<32x32xf32>
    %91 = arith.addf %84, %90 : vector<32x32xf32>
    %c1_i32_50 = arith.constant 1 : i32
    %92 = tpu.dynamic_rotate %81 by %c1_i32_50 dim 0 : vector<32x32xf32>, i32 -> vector<32x32xf32>
    %cst_51 = arith.constant 0.000000e+00 : f32
    %93 = vector.broadcast %cst_51 : f32 to vector<32x32xf32>
    %94 = arith.select %34, %92, %93 : vector<32x32xi1>, vector<32x32xf32>
    %c1_52 = arith.constant 1 : index
    %c1_53 = arith.constant 1 : index
    %c0_54 = arith.constant 0 : index
    %c0_55 = arith.constant 0 : index
    %95 = vector.load %arg3[%c1_52, %c1_53, %c0_54, %c0_55] : memref<3x5x32x32xf32, #tpu.memory_space<vmem>>, vector<1x1x32x32xf32>
    %96 = vector.shape_cast %95 : vector<1x1x32x32xf32> to vector<32x32xf32>
    %cst_56 = arith.constant dense<0.000000e+00> : vector<32x32xf32>
    %97 = tpu.matmul %94, %96, %cst_56 {dimension_numbers = #tpu.dot_dimension_numbers<[1], [0], [0], [1], [0, 0, 1, 1], [], []>} : vector<32x32xf32>, vector<32x32xf32>, vector<32x32xf32> -> vector<32x32xf32>
    %98 = arith.addf %91, %97 : vector<32x32xf32>
    %c31_i32_57 = arith.constant 31 : i32
    %99 = tpu.dynamic_rotate %81 by %c31_i32_57 dim 0 : vector<32x32xf32>, i32 -> vector<32x32xf32>
    %cst_58 = arith.constant 0.000000e+00 : f32
    %100 = vector.broadcast %cst_58 : f32 to vector<32x32xf32>
    %101 = arith.select %39, %99, %100 : vector<32x32xi1>, vector<32x32xf32>
    %c1_59 = arith.constant 1 : index
    %c3_60 = arith.constant 3 : index
    %c0_61 = arith.constant 0 : index
    %c0_62 = arith.constant 0 : index
    %102 = vector.load %arg3[%c1_59, %c3_60, %c0_61, %c0_62] : memref<3x5x32x32xf32, #tpu.memory_space<vmem>>, vector<1x1x32x32xf32>
    %103 = vector.shape_cast %102 : vector<1x1x32x32xf32> to vector<32x32xf32>
    %cst_63 = arith.constant dense<0.000000e+00> : vector<32x32xf32>
    %104 = tpu.matmul %101, %103, %cst_63 {dimension_numbers = #tpu.dot_dimension_numbers<[1], [0], [0], [1], [0, 0, 1, 1], [], []>} : vector<32x32xf32>, vector<32x32xf32>, vector<32x32xf32> -> vector<32x32xf32>
    %105 = arith.addf %98, %104 : vector<32x32xf32>
    %c30_i32_64 = arith.constant 30 : i32
    %106 = tpu.dynamic_rotate %81 by %c30_i32_64 dim 0 : vector<32x32xf32>, i32 -> vector<32x32xf32>
    %cst_65 = arith.constant 0.000000e+00 : f32
    %107 = vector.broadcast %cst_65 : f32 to vector<32x32xf32>
    %108 = arith.select %44, %106, %107 : vector<32x32xi1>, vector<32x32xf32>
    %c1_66 = arith.constant 1 : index
    %c4_67 = arith.constant 4 : index
    %c0_68 = arith.constant 0 : index
    %c0_69 = arith.constant 0 : index
    %109 = vector.load %arg3[%c1_66, %c4_67, %c0_68, %c0_69] : memref<3x5x32x32xf32, #tpu.memory_space<vmem>>, vector<1x1x32x32xf32>
    %110 = vector.shape_cast %109 : vector<1x1x32x32xf32> to vector<32x32xf32>
    %cst_70 = arith.constant dense<0.000000e+00> : vector<32x32xf32>
    %111 = tpu.matmul %108, %110, %cst_70 {dimension_numbers = #tpu.dot_dimension_numbers<[1], [0], [0], [1], [0, 0, 1, 1], [], []>} : vector<32x32xf32>, vector<32x32xf32>, vector<32x32xf32> -> vector<32x32xf32>
    %112 = arith.addf %105, %111 : vector<32x32xf32>
    %c1_71 = arith.constant 1 : index
    %c0_72 = arith.constant 0 : index
    %c0_73 = arith.constant 0 : index
    %113 = vector.load %arg4[%c1_71, %c0_72, %c0_73] : memref<3x1x32xf32, #tpu.memory_space<vmem>>, vector<1x1x32xf32>
    %114 = vector.shape_cast %113 : vector<1x1x32xf32> to vector<1x32xf32>
    %115 = vector.broadcast %114 : vector<1x32xf32> to vector<32x32xf32>
    %116 = arith.addf %112, %115 : vector<32x32xf32>
    %cst_74 = arith.constant 0.000000e+00 : f32
    %117 = vector.broadcast %cst_74 : f32 to vector<32x32xf32>
    %118 = arith.maximumf %116, %117 : vector<32x32xf32>
    %c2_75 = arith.constant 2 : index
    %c2_76 = arith.constant 2 : index
    %c0_77 = arith.constant 0 : index
    %c0_78 = arith.constant 0 : index
    %119 = vector.load %arg3[%c2_75, %c2_76, %c0_77, %c0_78] : memref<3x5x32x32xf32, #tpu.memory_space<vmem>>, vector<1x1x32x32xf32>
    %120 = vector.shape_cast %119 : vector<1x1x32x32xf32> to vector<32x32xf32>
    %cst_79 = arith.constant dense<0.000000e+00> : vector<32x32xf32>
    %121 = tpu.matmul %118, %120, %cst_79 {dimension_numbers = #tpu.dot_dimension_numbers<[1], [0], [0], [1], [0, 0, 1, 1], [], []>} : vector<32x32xf32>, vector<32x32xf32>, vector<32x32xf32> -> vector<32x32xf32>
    %c2_i32_80 = arith.constant 2 : i32
    %122 = tpu.dynamic_rotate %118 by %c2_i32_80 dim 0 : vector<32x32xf32>, i32 -> vector<32x32xf32>
    %cst_81 = arith.constant 0.000000e+00 : f32
    %123 = vector.broadcast %cst_81 : f32 to vector<32x32xf32>
    %124 = arith.select %29, %122, %123 : vector<32x32xi1>, vector<32x32xf32>
    %c2_82 = arith.constant 2 : index
    %c0_83 = arith.constant 0 : index
    %c0_84 = arith.constant 0 : index
    %c0_85 = arith.constant 0 : index
    %125 = vector.load %arg3[%c2_82, %c0_83, %c0_84, %c0_85] : memref<3x5x32x32xf32, #tpu.memory_space<vmem>>, vector<1x1x32x32xf32>
    %126 = vector.shape_cast %125 : vector<1x1x32x32xf32> to vector<32x32xf32>
    %cst_86 = arith.constant dense<0.000000e+00> : vector<32x32xf32>
    %127 = tpu.matmul %124, %126, %cst_86 {dimension_numbers = #tpu.dot_dimension_numbers<[1], [0], [0], [1], [0, 0, 1, 1], [], []>} : vector<32x32xf32>, vector<32x32xf32>, vector<32x32xf32> -> vector<32x32xf32>
    %128 = arith.addf %121, %127 : vector<32x32xf32>
    %c1_i32_87 = arith.constant 1 : i32
    %129 = tpu.dynamic_rotate %118 by %c1_i32_87 dim 0 : vector<32x32xf32>, i32 -> vector<32x32xf32>
    %cst_88 = arith.constant 0.000000e+00 : f32
    %130 = vector.broadcast %cst_88 : f32 to vector<32x32xf32>
    %131 = arith.select %34, %129, %130 : vector<32x32xi1>, vector<32x32xf32>
    %c2_89 = arith.constant 2 : index
    %c1_90 = arith.constant 1 : index
    %c0_91 = arith.constant 0 : index
    %c0_92 = arith.constant 0 : index
    %132 = vector.load %arg3[%c2_89, %c1_90, %c0_91, %c0_92] : memref<3x5x32x32xf32, #tpu.memory_space<vmem>>, vector<1x1x32x32xf32>
    %133 = vector.shape_cast %132 : vector<1x1x32x32xf32> to vector<32x32xf32>
    %cst_93 = arith.constant dense<0.000000e+00> : vector<32x32xf32>
    %134 = tpu.matmul %131, %133, %cst_93 {dimension_numbers = #tpu.dot_dimension_numbers<[1], [0], [0], [1], [0, 0, 1, 1], [], []>} : vector<32x32xf32>, vector<32x32xf32>, vector<32x32xf32> -> vector<32x32xf32>
    %135 = arith.addf %128, %134 : vector<32x32xf32>
    %c31_i32_94 = arith.constant 31 : i32
    %136 = tpu.dynamic_rotate %118 by %c31_i32_94 dim 0 : vector<32x32xf32>, i32 -> vector<32x32xf32>
    %cst_95 = arith.constant 0.000000e+00 : f32
    %137 = vector.broadcast %cst_95 : f32 to vector<32x32xf32>
    %138 = arith.select %39, %136, %137 : vector<32x32xi1>, vector<32x32xf32>
    %c2_96 = arith.constant 2 : index
    %c3_97 = arith.constant 3 : index
    %c0_98 = arith.constant 0 : index
    %c0_99 = arith.constant 0 : index
    %139 = vector.load %arg3[%c2_96, %c3_97, %c0_98, %c0_99] : memref<3x5x32x32xf32, #tpu.memory_space<vmem>>, vector<1x1x32x32xf32>
    %140 = vector.shape_cast %139 : vector<1x1x32x32xf32> to vector<32x32xf32>
    %cst_100 = arith.constant dense<0.000000e+00> : vector<32x32xf32>
    %141 = tpu.matmul %138, %140, %cst_100 {dimension_numbers = #tpu.dot_dimension_numbers<[1], [0], [0], [1], [0, 0, 1, 1], [], []>} : vector<32x32xf32>, vector<32x32xf32>, vector<32x32xf32> -> vector<32x32xf32>
    %142 = arith.addf %135, %141 : vector<32x32xf32>
    %c30_i32_101 = arith.constant 30 : i32
    %143 = tpu.dynamic_rotate %118 by %c30_i32_101 dim 0 : vector<32x32xf32>, i32 -> vector<32x32xf32>
    %cst_102 = arith.constant 0.000000e+00 : f32
    %144 = vector.broadcast %cst_102 : f32 to vector<32x32xf32>
    %145 = arith.select %44, %143, %144 : vector<32x32xi1>, vector<32x32xf32>
    %c2_103 = arith.constant 2 : index
    %c4_104 = arith.constant 4 : index
    %c0_105 = arith.constant 0 : index
    %c0_106 = arith.constant 0 : index
    %146 = vector.load %arg3[%c2_103, %c4_104, %c0_105, %c0_106] : memref<3x5x32x32xf32, #tpu.memory_space<vmem>>, vector<1x1x32x32xf32>
    %147 = vector.shape_cast %146 : vector<1x1x32x32xf32> to vector<32x32xf32>
    %cst_107 = arith.constant dense<0.000000e+00> : vector<32x32xf32>
    %148 = tpu.matmul %145, %147, %cst_107 {dimension_numbers = #tpu.dot_dimension_numbers<[1], [0], [0], [1], [0, 0, 1, 1], [], []>} : vector<32x32xf32>, vector<32x32xf32>, vector<32x32xf32> -> vector<32x32xf32>
    %149 = arith.addf %142, %148 : vector<32x32xf32>
    %c2_108 = arith.constant 2 : index
    %c0_109 = arith.constant 0 : index
    %c0_110 = arith.constant 0 : index
    %150 = vector.load %arg4[%c2_108, %c0_109, %c0_110] : memref<3x1x32xf32, #tpu.memory_space<vmem>>, vector<1x1x32xf32>
    %151 = vector.shape_cast %150 : vector<1x1x32xf32> to vector<1x32xf32>
    %152 = vector.broadcast %151 : vector<1x32xf32> to vector<32x32xf32>
    %153 = arith.addf %149, %152 : vector<32x32xf32>
    %cst_111 = arith.constant 0.000000e+00 : f32
    %154 = vector.broadcast %cst_111 : f32 to vector<32x32xf32>
    %155 = arith.maximumf %153, %154 : vector<32x32xf32>
    %156 = tpu.iota {dimensions = array<i32: 0>} : vector<8x32xi32>
    %c4_i32 = arith.constant 4 : i32
    %157 = vector.broadcast %c4_i32 : i32 to vector<8x32xi32>
    %158 = arith.muli %157, %156 : vector<8x32xi32>
    %159 = tpu.iota {dimensions = array<i32: 1>} : vector<8x32xi32>
    %cst_112 = arith.constant 0.000000e+00 : f32
    %160 = vector.broadcast %cst_112 : f32 to vector<8x128xf32>
    %c0_113 = arith.constant 0 : index
    %c0_114 = arith.constant 0 : index
    %161 = vector.load %arg6[%c0_113, %c0_114] : memref<1x128xf32, #tpu.memory_space<vmem>>, vector<1x128xf32>
    %162 = vector.broadcast %161 : vector<1x128xf32> to vector<8x128xf32>
    %163 = arith.addf %160, %162 : vector<8x128xf32>
    %c0_i32_115 = arith.constant 0 : i32
    %164 = vector.broadcast %c0_i32_115 : i32 to vector<8x32xi32>
    %165 = arith.addi %158, %164 : vector<8x32xi32>
    %166 = arith.cmpi eq, %159, %165 : vector<8x32xi32>
    %167 = arith.extui %166 : vector<8x32xi1> to vector<8x32xi32>
    %168 = arith.sitofp %167 : vector<8x32xi32> to vector<8x32xf32>
    %cst_116 = arith.constant dense<0.000000e+00> : vector<8x32xf32>
    %169 = tpu.matmul %168, %155, %cst_116 {dimension_numbers = #tpu.dot_dimension_numbers<[1], [0], [0], [1], [0, 0, 1, 1], [], []>} : vector<8x32xf32>, vector<32x32xf32>, vector<8x32xf32> -> vector<8x32xf32>
    %c0_117 = arith.constant 0 : index
    %c0_118 = arith.constant 0 : index
    %c0_119 = arith.constant 0 : index
    %170 = vector.load %arg5[%c0_117, %c0_118, %c0_119] : memref<4x32x128xf32, #tpu.memory_space<vmem>>, vector<1x32x128xf32>
    %171 = vector.shape_cast %170 : vector<1x32x128xf32> to vector<32x128xf32>
    %cst_120 = arith.constant dense<0.000000e+00> : vector<8x128xf32>
    %172 = tpu.matmul %169, %171, %cst_120 {dimension_numbers = #tpu.dot_dimension_numbers<[1], [0], [0], [1], [0, 0, 1, 1], [], []>} : vector<8x32xf32>, vector<32x128xf32>, vector<8x128xf32> -> vector<8x128xf32>
    %173 = arith.addf %163, %172 : vector<8x128xf32>
    %c1_i32_121 = arith.constant 1 : i32
    %174 = vector.broadcast %c1_i32_121 : i32 to vector<8x32xi32>
    %175 = arith.addi %158, %174 : vector<8x32xi32>
    %176 = arith.cmpi eq, %159, %175 : vector<8x32xi32>
    %177 = arith.extui %176 : vector<8x32xi1> to vector<8x32xi32>
    %178 = arith.sitofp %177 : vector<8x32xi32> to vector<8x32xf32>
    %cst_122 = arith.constant dense<0.000000e+00> : vector<8x32xf32>
    %179 = tpu.matmul %178, %155, %cst_122 {dimension_numbers = #tpu.dot_dimension_numbers<[1], [0], [0], [1], [0, 0, 1, 1], [], []>} : vector<8x32xf32>, vector<32x32xf32>, vector<8x32xf32> -> vector<8x32xf32>
    %c1_123 = arith.constant 1 : index
    %c0_124 = arith.constant 0 : index
    %c0_125 = arith.constant 0 : index
    %180 = vector.load %arg5[%c1_123, %c0_124, %c0_125] : memref<4x32x128xf32, #tpu.memory_space<vmem>>, vector<1x32x128xf32>
    %181 = vector.shape_cast %180 : vector<1x32x128xf32> to vector<32x128xf32>
    %cst_126 = arith.constant dense<0.000000e+00> : vector<8x128xf32>
    %182 = tpu.matmul %179, %181, %cst_126 {dimension_numbers = #tpu.dot_dimension_numbers<[1], [0], [0], [1], [0, 0, 1, 1], [], []>} : vector<8x32xf32>, vector<32x128xf32>, vector<8x128xf32> -> vector<8x128xf32>
    %183 = arith.addf %173, %182 : vector<8x128xf32>
    %c2_i32_127 = arith.constant 2 : i32
    %184 = vector.broadcast %c2_i32_127 : i32 to vector<8x32xi32>
    %185 = arith.addi %158, %184 : vector<8x32xi32>
    %186 = arith.cmpi eq, %159, %185 : vector<8x32xi32>
    %187 = arith.extui %186 : vector<8x32xi1> to vector<8x32xi32>
    %188 = arith.sitofp %187 : vector<8x32xi32> to vector<8x32xf32>
    %cst_128 = arith.constant dense<0.000000e+00> : vector<8x32xf32>
    %189 = tpu.matmul %188, %155, %cst_128 {dimension_numbers = #tpu.dot_dimension_numbers<[1], [0], [0], [1], [0, 0, 1, 1], [], []>} : vector<8x32xf32>, vector<32x32xf32>, vector<8x32xf32> -> vector<8x32xf32>
    %c2_129 = arith.constant 2 : index
    %c0_130 = arith.constant 0 : index
    %c0_131 = arith.constant 0 : index
    %190 = vector.load %arg5[%c2_129, %c0_130, %c0_131] : memref<4x32x128xf32, #tpu.memory_space<vmem>>, vector<1x32x128xf32>
    %191 = vector.shape_cast %190 : vector<1x32x128xf32> to vector<32x128xf32>
    %cst_132 = arith.constant dense<0.000000e+00> : vector<8x128xf32>
    %192 = tpu.matmul %189, %191, %cst_132 {dimension_numbers = #tpu.dot_dimension_numbers<[1], [0], [0], [1], [0, 0, 1, 1], [], []>} : vector<8x32xf32>, vector<32x128xf32>, vector<8x128xf32> -> vector<8x128xf32>
    %193 = arith.addf %183, %192 : vector<8x128xf32>
    %c3_i32 = arith.constant 3 : i32
    %194 = vector.broadcast %c3_i32 : i32 to vector<8x32xi32>
    %195 = arith.addi %158, %194 : vector<8x32xi32>
    %196 = arith.cmpi eq, %159, %195 : vector<8x32xi32>
    %197 = arith.extui %196 : vector<8x32xi1> to vector<8x32xi32>
    %198 = arith.sitofp %197 : vector<8x32xi32> to vector<8x32xf32>
    %cst_133 = arith.constant dense<0.000000e+00> : vector<8x32xf32>
    %199 = tpu.matmul %198, %155, %cst_133 {dimension_numbers = #tpu.dot_dimension_numbers<[1], [0], [0], [1], [0, 0, 1, 1], [], []>} : vector<8x32xf32>, vector<32x32xf32>, vector<8x32xf32> -> vector<8x32xf32>
    %c3_134 = arith.constant 3 : index
    %c0_135 = arith.constant 0 : index
    %c0_136 = arith.constant 0 : index
    %200 = vector.load %arg5[%c3_134, %c0_135, %c0_136] : memref<4x32x128xf32, #tpu.memory_space<vmem>>, vector<1x32x128xf32>
    %201 = vector.shape_cast %200 : vector<1x32x128xf32> to vector<32x128xf32>
    %cst_137 = arith.constant dense<0.000000e+00> : vector<8x128xf32>
    %202 = tpu.matmul %199, %201, %cst_137 {dimension_numbers = #tpu.dot_dimension_numbers<[1], [0], [0], [1], [0, 0, 1, 1], [], []>} : vector<8x32xf32>, vector<32x128xf32>, vector<8x128xf32> -> vector<8x128xf32>
    %203 = arith.addf %193, %202 : vector<8x128xf32>
    %c0_138 = arith.constant 0 : index
    %c0_139 = arith.constant 0 : index
    %204 = vector.load %arg7[%c0_138, %c0_139] : memref<8x128xf32, #tpu.memory_space<vmem>>, vector<8x128xf32>
    tpu.vector_store %arg7[%c0_138, %c0_139], %203 {strides = array<i32>} : memref<8x128xf32, #tpu.memory_space<vmem>>, vector<8x128xf32>,
    return
  }
  func.func @transform_0(%arg0: i32) -> (i32, i32) {
    %c0_i32 = arith.constant 0 : i32
    %c0_i32_0 = arith.constant 0 : i32
    %c0_i32_1 = arith.constant 0 : i32
    return %c0_i32, %c0_i32_0 : i32, i32
  }
  func.func @transform_1(%arg0: i32) -> (i32, i32) {
    %c0_i32 = arith.constant 0 : i32
    %c0_i32_0 = arith.constant 0 : i32
    %c0_i32_1 = arith.constant 0 : i32
    return %c0_i32, %c0_i32_0 : i32, i32
  }
  func.func @transform_2(%arg0: i32) -> (i32, i32, i32, i32) {
    %c0_i32 = arith.constant 0 : i32
    %c0_i32_0 = arith.constant 0 : i32
    %c0_i32_1 = arith.constant 0 : i32
    %c0_i32_2 = arith.constant 0 : i32
    %c0_i32_3 = arith.constant 0 : i32
    return %c0_i32, %c0_i32_0, %c0_i32_1, %c0_i32_2 : i32, i32, i32, i32
  }
  func.func @transform_3(%arg0: i32) -> (i32, i32, i32) {
    %c0_i32 = arith.constant 0 : i32
    %c0_i32_0 = arith.constant 0 : i32
    %c0_i32_1 = arith.constant 0 : i32
    %c0_i32_2 = arith.constant 0 : i32
    return %c0_i32, %c0_i32_0, %c0_i32_1 : i32, i32, i32
  }
  func.func @transform_4(%arg0: i32) -> (i32, i32, i32) {
    %c0_i32 = arith.constant 0 : i32
    %c0_i32_0 = arith.constant 0 : i32
    %c0_i32_1 = arith.constant 0 : i32
    %c0_i32_2 = arith.constant 0 : i32
    return %c0_i32, %c0_i32_0, %c0_i32_1 : i32, i32, i32
  }
  func.func @transform_5(%arg0: i32) -> (i32, i32) {
    %c0_i32 = arith.constant 0 : i32
    %c0_i32_0 = arith.constant 0 : i32
    %c0_i32_1 = arith.constant 0 : i32
    return %c0_i32, %c0_i32_0 : i32, i32
  }
  func.func @transform_6(%arg0: i32) -> (i32, i32) {
    %c0_i32 = arith.constant 0 : i32
    %c0_i32_0 = arith.constant 0 : i32
    %c0_i32_1 = arith.constant 0 : i32
    return %c0_i32, %c0_i32_0 : i32, i32
  }
}

</mosaic_0001>

<llo_original>
// kernel: tpu_custom_call.1
$region0: #{tpu_custom_call.1}
  #allocation0 [shape = 'u32[]', space=smem, size = 0x4, offset = 0x4, fixed_abs, tag = 'smem constant byte address 0x4 - core index']
  #allocation1 [shape = 'u32[144,128]{1,0:T(1,128)}', space=vmem, size = 0x12000, scoped, tag = 'internal scratch']
  %s0 = inlined_call_operand.vmem [shape: s32[32,1], index: 0, kind: input, shape index: {}]
  %s1 = inlined_call_operand.vmem [shape: f32[40,32], index: 1, kind: input, shape index: {}]
  %s2 = inlined_call_operand.hbm [shape: f32[3,5,32,32], index: 2, kind: input, shape index: {}]
  %s3 = inlined_call_operand.vmem [shape: f32[3,1,32], index: 3, kind: input, shape index: {}]
  %s4 = inlined_call_operand.hbm [shape: f32[4,32,128], index: 4, kind: input, shape index: {}]
  %s5 = inlined_call_operand.vmem [shape: f32[1,128], index: 5, kind: input, shape index: {}]
  %s6 = inlined_call_operand.hbm [shape: f32[8,128], index: 6, kind: output, shape index: {}]
  %s7 = sld [smem:[#allocation0]]
  $region42: #{tpu_custom_call.1} parent=0
    _
  %s9 = ssub.s32 1, %s7
  %s10 = scalar_select 0, %s9, %s7
  $region1: #{tpu_custom_call.1} parent=0
    #allocation2 [shape = 'u8[245760]{0}', space=vmem, size = 0x3c000, scoped, tag = 'input window, operand 2, single buffered']
    #allocation3 [shape = 's32[1]{0}', space=sflag, size = 0x4, scoped, tag = 'scoped memory for tpu_custom_call.1']
    #allocation4 [shape = 's32[1]{0}', space=sflag, size = 0x4, scoped, tag = 'scoped memory for tpu_custom_call.1']
    #allocation5 [shape = 'u8[65536]{0}', space=vmem, size = 0x10000, scoped, tag = 'input window, operand 4, single buffered']
    #allocation6 [shape = 's32[1]{0}', space=sflag, size = 0x4, scoped, tag = 'scoped memory for tpu_custom_call.1']
    #allocation7 [shape = 'u8[4096]{0}', space=vmem, size = 0x1000, scoped, tag = 'output window, operand 0, single buffered']
    %11 = vsyncpa [#allocation3], 0
    %12 = vsyncpa [#allocation6], 0
    %13 = vsyncpa [#allocation4], 0
    // Predicated region
    $region2: #{tpu_custom_call.1} parent=1 // pred_check
      _
    $region3: #{tpu_custom_call.1} parent=1 // pred_check_branch
      %15 = sbr.rel (0) target = $region5
    $region4: #{tpu_custom_call.1} parent=1 // pred_region
      _
    $region5: #{tpu_custom_call.1} parent=1 // pred_fallthru
      _
    // Predicated region
    $region6: #{tpu_custom_call.1} parent=1 // pred_check
      _
    $region7: #{tpu_custom_call.1} parent=1 // pred_check_branch
      %17 = sbr.rel (0) target = $region9
    $region8: #{tpu_custom_call.1} parent=1 // pred_region
      _
    $region9: #{tpu_custom_call.1} parent=1 // pred_fallthru
      _
    // Predicated region
    $region10: #{tpu_custom_call.1} parent=1 // pred_check
      _
    $region11: #{tpu_custom_call.1} parent=1 // pred_check_branch
      %19 = sbr.rel (0) target = $region13
    $region12: #{tpu_custom_call.1} parent=1 // pred_region
      %s21 = ssub.s32 7680, 7680
      %22 = vsyncadd [#allocation3], %s21
      %s23 = sshll.u32 [#allocation2], 4
      %s24 = int_to_ptr.vmem [resolvable:$true] %s23
      %29 = dma.hbm_to_vmem [thread:$0]  %s2, 7680, %s24, [#allocation3], 128, 128, 8
    $region13: #{tpu_custom_call.1} parent=1 // pred_fallthru
      _
    // Predicated region
    $region14: #{tpu_custom_call.1} parent=1 // pred_check
      _
    $region15: #{tpu_custom_call.1} parent=1 // pred_check_branch
      %31 = sbr.rel (0) target = $region17
    $region16: #{tpu_custom_call.1} parent=1 // pred_region
      _
    $region17: #{tpu_custom_call.1} parent=1 // pred_fallthru
      _
    // Predicated region
    $region18: #{tpu_custom_call.1} parent=1 // pred_check
      _
    $region19: #{tpu_custom_call.1} parent=1 // pred_check_branch
      %33 = sbr.rel (0) target = $region21
    $region20: #{tpu_custom_call.1} parent=1 // pred_region
      %s35 = ssub.s32 2048, 2048
      %36 = vsyncadd [#allocation6], %s35
      %s37 = sshll.u32 [#allocation5], 4
      %s38 = int_to_ptr.vmem [resolvable:$true] %s37
      %43 = dma.hbm_to_vmem [thread:$0]  %s4, 2048, %s38, [#allocation6], 128, 128, 8
    $region21: #{tpu_custom_call.1} parent=1 // pred_fallthru
      _
    // Predicated region
    $region22: #{tpu_custom_call.1} parent=1 // pred_check
      _
    $region23: #{tpu_custom_call.1} parent=1 // pred_check_branch
      %45 = sbr.rel (0) target = $region25
    $region24: #{tpu_custom_call.1} parent=1 // pred_region
      _
    $region25: #{tpu_custom_call.1} parent=1 // pred_fallthru
      _
    // Predicated region
    $region26: #{tpu_custom_call.1} parent=1 // pred_check
      _
    $region27: #{tpu_custom_call.1} parent=1 // pred_check_branch
      %47 = sbr.rel (0) target = $region29
    $region28: #{tpu_custom_call.1} parent=1 // pred_region
      %48 = dma.done [#allocation3], 7680
    $region29: #{tpu_custom_call.1} parent=1 // pred_fallthru
      _
    // Predicated region
    $region30: #{tpu_custom_call.1} parent=1 // pred_check
      _
    $region31: #{tpu_custom_call.1} parent=1 // pred_check_branch
      %50 = sbr.rel (0) target = $region33
    $region32: #{tpu_custom_call.1} parent=1 // pred_region
      %51 = dma.done [#allocation6], 2048
    $region33: #{tpu_custom_call.1} parent=1 // pred_fallthru
      _
    %v52 = vld [vmem:[%s0] sm:$0xff]
    %v53 = vld [vmem:[%s0 + $0x8] sm:$0xff]
    %v54 = vld [vmem:[%s0 + $0x10] sm:$0xff]
    %v55 = vld [vmem:[%s0 + $0x18] sm:$0xff]
    %v56 = vlaneseq
    %v57 = vand.u32 %v56, 127
    %58 = vset.pattern.permute.xlu0 0
    %59 = vperm.xlu0 %58, %v52
    %v60 = vpop.permute.xlu0 %59
    %61 = vset.pattern.permute.xlu0 0
    %62 = vperm.xlu0 %61, %v53
    %v63 = vpop.permute.xlu0 %62
    %64 = vset.pattern.permute.xlu0 0
    %65 = vperm.xlu0 %64, %v54
    %v66 = vpop.permute.xlu0 %65
    %67 = vset.pattern.permute.xlu0 0
    %68 = vperm.xlu0 %67, %v55
    %v69 = vpop.permute.xlu0 %68
    %vm70 = vcmp.eq.s32.totalorder %v57, %v60
    %vm71 = vcmp.eq.s32.totalorder %v57, %v63
    %vm72 = vcmp.eq.s32.totalorder %v57, %v66
    %vm73 = vcmp.eq.s32.totalorder %v57, %v69
    %v74 = vsel %vm70, 1, 0
    %v75 = vsel %vm71, 1, 0
    %v76 = vsel %vm72, 1, 0
    %v77 = vsel %vm73, 1, 0
    %v78 = vcvt.s32.f32 %v74
    %v79 = vcvt.s32.f32 %v75
    %v80 = vcvt.s32.f32 %v76
    %v81 = vcvt.s32.f32 %v77
    %v82 = vld [vmem:[%s1] sm:$0xff]
    %v83 = vld [vmem:[%s1 + $0x8] sm:$0xff]
    %v84 = vld [vmem:[%s1 + $0x10] sm:$0xff]
    %v85 = vld [vmem:[%s1 + $0x18] sm:$0xff]
    %v86 = vld [vmem:[%s1 + $0x20] sm:$0xff]
    %vm87 = vcmask 326656
    %v89 = vsel %vm87, %v78, 0
    %v92 = vsel %vm87, %v79, 0
    %v95 = vsel %vm87, %v80, 0
    %v98 = vsel %vm87, %v81, 0
    %100 = vmatprep.subr.mxu0 0.0
    %101 = vmatpush1.msra.mxu0 %v82
    %102 = vmatprep.subr.mxu0 0.0
    %103 = vmatpush1.msra.mxu0 %v83
    %104 = vmatprep.subr.mxu0 0.0
    %105 = vmatpush1.msra.mxu0 %v84
    %106 = vmatprep.subr.mxu0 0.0
    %107 = vmatpush1.msra.mxu0 %v85
    %108 = vmatprep.subr.mxu0 0.0
    %109 = vmatpush1.msra.mxu0 %v86
    %110 = vmatprep.subr.mxu0 0.0
    %111 = vmatpush1.msra.mxu0 0.0
    %112 = vmatprep.subr.mxu0 0.0
    %113 = vmatpush1.msra.mxu0 0.0
    %114 = vmatprep.subr.mxu0 0.0
    %115 = vmatpush1.msra.mxu0 0.0
    %116 = vmatprep.subr.mxu0 0.0
    %117 = vmatpush1.msra.mxu0 0.0
    %118 = vmatprep.subr.mxu0 0.0
    %119 = vmatpush1.msra.mxu0 0.0
    %120 = vmatprep.subr.mxu0 0.0
    %121 = vmatpush1.msra.mxu0 0.0
    %122 = vmatprep.subr.mxu0 0.0
    %123 = vmatpush1.msra.mxu0 0.0
    %124 = vmatprep.subr.mxu0 0.0
    %125 = vmatpush1.msra.mxu0 0.0
    %126 = vmatprep.subr.mxu0 0.0
    %127 = vmatpush1.msra.mxu0 0.0
    %128 = vmatprep.subr.mxu0 0.0
    %129 = vmatpush1.msra.mxu0 0.0
    %130 = vmatprep.subr.mxu0 0.0
    %131 = vmatpush1.msra.mxu0 0.0
    %132 = vmatprep.subr.mxu0 0.0
    %133 = vmatpush1.msra.mxu0 0.0
    %134 = vmatprep.subr.mxu0 0.0
    %135 = vmatpush1.msra.mxu0 0.0
    %136 = vmatprep.subr.mxu0 0.0
    %137 = vmatpush1.msra.mxu0 0.0
    %138 = vmatprep.subr.mxu0 0.0
    %139 = vmatpush1.msra.mxu0 0.0
    %140 = vmatprep.subr.mxu0 0.0
    %141 = vmatpush1.msra.mxu0 0.0
    %142 = vmatprep.subr.mxu0 0.0
    %143 = vmatpush1.msra.mxu0 0.0
    %144 = vmatprep.subr.mxu0 0.0
    %145 = vmatpush1.msra.mxu0 0.0
    %146 = vmatprep.subr.mxu0 0.0
    %147 = vmatpush1.msra.mxu0 0.0
    %148 = vmatprep.subr.mxu0 0.0
    %149 = vmatpush1.msra.mxu0 0.0
    %150 = vmatprep.subr.mxu0 0.0
    %151 = vmatpush1.msra.mxu0 0.0
    %152 = vmatprep.subr.mxu0 0.0
    %153 = vmatpush1.msra.mxu0 0.0
    %154 = vmatprep.subr.mxu0 0.0
    %155 = vmatpush1.msra.mxu0 0.0
    %156 = vmatprep.subr.mxu0 0.0
    %157 = vmatpush1.msra.mxu0 0.0
    %158 = vmatprep.subr.mxu0 0.0
    %159 = vmatpush1.msra.mxu0 0.0
    %160 = vmatprep.subr.mxu0 0.0
    %161 = vmatpush1.msra.mxu0 0.0
    %162 = vmatprep.subr.mxu0 0.0
    %163 = vmatpush1.msra.mxu0 0.0
    %164 = vmatprep.mubr.f32.mxu0 0.0
    %165 = vmatmul.mubr.f32.gmra.mrb[0].mxu0 %v89
    %v166 = vpop.f32.mrb[0].mxu0
    %v167 = vadd.f32 0.0, %v166
    %v168 = vpop.f32.mrb[0].mxu0
    %169 = vmatprep.mubr.f32.mxu0 0.0
    %170 = vmatmul.mubr.f32.gmra.mrb[0].mxu0 %v92
    %v171 = vpop.f32.mrb[0].mxu0
    %v172 = vadd.f32 0.0, %v171
    %v173 = vpop.f32.mrb[0].mxu0
    %174 = vmatprep.mubr.f32.mxu0 0.0
    %175 = vmatmul.mubr.f32.gmra.mrb[0].mxu0 %v95
    %v176 = vpop.f32.mrb[0].mxu0
    %v177 = vadd.f32 0.0, %v176
    %v178 = vpop.f32.mrb[0].mxu0
    %179 = vmatprep.mubr.f32.mxu0 0.0
    %180 = vmatmul.mubr.f32.gmra.mrb[0].mxu0 %v98
    %v181 = vpop.f32.mrb[0].mxu0
    %v182 = vadd.f32 0.0, %v181
    %v183 = vpop.f32.mrb[0].mxu0
    %184 = vdwg.mxu0
    %v185 = vlaneseq
    %v186 = vshrl.u32 %v185, 7
    %v187 = vadd.s32 %v186, 8
    %v188 = vadd.s32 %v186, 16
    %v189 = vadd.s32 %v186, 24
    %vm190 = vcmp.lt.s32.totalorder %v186, 0
    %v191 = vsub.s32 0, %v186
    %v192 = vsel %vm190, %v191, %v186
    %v193 = vshrl.u32 %v192, 4
    %v194 = vand.u32 %v192, 15
    %v195 = vsub.s32 0, %v194
    %v196 = vsel %vm190, %v195, %v194
    %vm197 = vcmp.lt.s32.totalorder %v187, 0
    %v198 = vsub.s32 0, %v187
    %v199 = vsel %vm197, %v198, %v187
    %v200 = vshrl.u32 %v199, 4
    %v201 = vand.u32 %v199, 15
    %v202 = vsub.s32 0, %v201
    %v203 = vsel %vm197, %v202, %v201
    %vm204 = vcmp.lt.s32.totalorder %v188, 0
    %v205 = vsub.s32 0, %v188
    %v206 = vsel %vm204, %v205, %v188
    %v207 = vshrl.u32 %v206, 4
    %v208 = vand.u32 %v206, 15
    %v209 = vsub.s32 0, %v208
    %v210 = vsel %vm204, %v209, %v208
    %vm211 = vcmp.lt.s32.totalorder %v189, 0
    %v212 = vsub.s32 0, %v189
    %v213 = vsel %vm211, %v212, %v189
    %v214 = vshrl.u32 %v213, 4
    %v215 = vand.u32 %v213, 15
    %v216 = vsub.s32 0, %v215
    %v217 = vsel %vm211, %v216, %v215
    %vm218 = vcmp.ne.s32.totalorder %v196, 0
    %vm219 = vcmp.ne.s32.totalorder %v203, 0
    %vm220 = vcmp.ne.s32.totalorder %v210, 0
    %vm221 = vcmp.ne.s32.totalorder %v217, 0
    %vm222 = vcmp.lt.s32.totalorder %v196, 0
    %vm223 = vcmp.lt.s32.totalorder %v203, 0
    %vm224 = vcmp.lt.s32.totalorder %v210, 0
    %vm225 = vcmp.lt.s32.totalorder %v217, 0
    %vm226 = vmand %vm222, %vm218
    %vm227 = vmand %vm223, %vm219
    %vm228 = vmand %vm224, %vm220
    %vm229 = vmand %vm225, %vm221
    %v230 = vadd.s32 %v196, 16
    %v231 = vadd.s32 %v203, 16
    %v232 = vadd.s32 %v210, 16
    %v233 = vadd.s32 %v217, 16
    %v234 = vsel %vm226, %v230, %v196
    %v235 = vsel %vm227, %v231, %v203
    %v236 = vsel %vm228, %v232, %v210
    %v237 = vsel %vm229, %v233, %v217
    %vm238 = vcmp.ge.s32.totalorder %v234, 2
    %vm239 = vcmp.ge.s32.totalorder %v235, 2
    %vm240 = vcmp.ge.s32.totalorder %v236, 2
    %vm241 = vcmp.ge.s32.totalorder %v237, 2
    %vm242 = vcmp.lt.s32.totalorder %v234, 18
    %vm243 = vcmp.lt.s32.totalorder %v235, 18
    %vm244 = vcmp.lt.s32.totalorder %v236, 18
    %vm245 = vcmp.lt.s32.totalorder %v237, 18
    %vm246 = vmand %vm238, %vm242
    %vm247 = vmand %vm239, %vm243
    %vm248 = vmand %vm240, %vm244
    %vm249 = vmand %vm241, %vm245
    %vm250 = vcmp.ge.s32.totalorder %v234, 1
    %vm251 = vcmp.ge.s32.totalorder %v235, 1
    %vm252 = vcmp.ge.s32.totalorder %v236, 1
    %vm253 = vcmp.ge.s32.totalorder %v237, 1
    %vm254 = vcmp.lt.s32.totalorder %v234, 17
    %vm255 = vcmp.lt.s32.totalorder %v235, 17
    %vm256 = vcmp.lt.s32.totalorder %v236, 17
    %vm257 = vcmp.lt.s32.totalorder %v237, 17
    %vm258 = vmand %vm250, %vm254
    %vm259 = vmand %vm251, %vm255
    %vm260 = vmand %vm252, %vm256
    %vm261 = vmand %vm253, %vm257
    %vm262 = vcmp.ge.s32.totalorder %v234, 4294967295
    %vm263 = vcmp.ge.s32.totalorder %v235, 4294967295
    %vm264 = vcmp.ge.s32.totalorder %v236, 4294967295
    %vm265 = vcmp.ge.s32.totalorder %v237, 4294967295
    %vm266 = vcmp.lt.s32.totalorder %v234, 15
    %vm267 = vcmp.lt.s32.totalorder %v235, 15
    %vm268 = vcmp.lt.s32.totalorder %v236, 15
    %vm269 = vcmp.lt.s32.totalorder %v237, 15
    %vm270 = vmand %vm262, %vm266
    %vm271 = vmand %vm263, %vm267
    %vm272 = vmand %vm264, %vm268
    %vm273 = vmand %vm265, %vm269
    %vm274 = vcmp.ge.s32.totalorder %v234, 4294967294
    %vm275 = vcmp.ge.s32.totalorder %v235, 4294967294
    %vm276 = vcmp.ge.s32.totalorder %v236, 4294967294
    %vm277 = vcmp.ge.s32.totalorder %v237, 4294967294
    %vm278 = vcmp.lt.s32.totalorder %v234, 14
    %vm279 = vcmp.lt.s32.totalorder %v235, 14
    %vm280 = vcmp.lt.s32.totalorder %v236, 14
    %vm281 = vcmp.lt.s32.totalorder %v237, 14
    %vm282 = vmand %vm274, %vm278
    %vm283 = vmand %vm275, %vm279
    %vm284 = vmand %vm276, %vm280
    %vm285 = vmand %vm277, %vm281
    %s286 = scalar_lea.vmem [#allocation2], 64
    %v287 = vld [vmem:[%s286] sm:$0xff]
    %v288 = vld [vmem:[%s286 + $0x8] sm:$0xff]
    %v289 = vld [vmem:[%s286 + $0x10] sm:$0xff]
    %v290 = vld [vmem:[%s286 + $0x18] sm:$0xff]
    %v291 = vrot.slane %v167, 6
    %v292 = vrot.slane %v172, 6
    %v293 = vrot.slane %v177, 6
    %v294 = vrot.slane %v182, 6
    %vm295 = vcmp.lt.s32.totalorder %v186, 2
    %v296 = vsel %vm295, %v293, %v294
    %v297 = vsel %vm295, %v292, %v293
    %v298 = vsel %vm295, %v291, %v292
    %v299 = vsel %vm295, %v294, %v291
    %v300 = vsel %vm246, %v299, 0.0
    %v301 = vsel %vm247, %v298, 0.0
    %v302 = vsel %vm248, %v297, 0.0
    %v303 = vsel %vm249, %v296, 0.0
    %v304 = vld [vmem:[#allocation2] sm:$0xff]
    %v305 = vld [vmem:[#allocation2 + $0x8] sm:$0xff]
    %v306 = vld [vmem:[#allocation2 + $0x10] sm:$0xff]
    %v307 = vld [vmem:[#allocation2 + $0x18] sm:$0xff]
    %vm308 = vcmask 261120
    %v310 = vsel %vm308, %v300, 0
    %v313 = vsel %vm308, %v301, 0
    %v316 = vsel %vm308, %v302, 0
    %v319 = vsel %vm308, %v303, 0
    %321 = vmatprep.subr.mxu0 0.0
    %322 = vmatpush1.msra.mxu0 %v304
    %323 = vmatprep.subr.mxu0 0.0
    %324 = vmatpush1.msra.mxu0 %v305
    %325 = vmatprep.subr.mxu0 0.0
    %326 = vmatpush1.msra.mxu0 %v306
    %327 = vmatprep.subr.mxu0 0.0
    %328 = vmatpush1.msra.mxu0 %v307
    %329 = vmatprep.subr.mxu0 0.0
    %330 = vmatpush1.msra.mxu0 0.0
    %331 = vmatprep.subr.mxu0 0.0
    %332 = vmatpush1.msra.mxu0 0.0
    %333 = vmatprep.subr.mxu0 0.0
    %334 = vmatpush1.msra.mxu0 0.0
    %335 = vmatprep.subr.mxu0 0.0
    %336 = vmatpush1.msra.mxu0 0.0
    %337 = vmatprep.subr.mxu0 0.0
    %338 = vmatpush1.msra.mxu0 0.0
    %339 = vmatprep.subr.mxu0 0.0
    %340 = vmatpush1.msra.mxu0 0.0
    %341 = vmatprep.subr.mxu0 0.0
    %342 = vmatpush1.msra.mxu0 0.0
    %343 = vmatprep.subr.mxu0 0.0
    %344 = vmatpush1.msra.mxu0 0.0
    %345 = vmatprep.subr.mxu0 0.0
    %346 = vmatpush1.msra.mxu0 0.0
    %347 = vmatprep.subr.mxu0 0.0
    %348 = vmatpush1.msra.mxu0 0.0
    %349 = vmatprep.subr.mxu0 0.0
    %350 = vmatpush1.msra.mxu0 0.0
    %351 = vmatprep.subr.mxu0 0.0
    %352 = vmatpush1.msra.mxu0 0.0
    %353 = vmatprep.subr.mxu0 0.0
    %354 = vmatpush1.msra.mxu0 0.0
    %355 = vmatprep.subr.mxu0 0.0
    %356 = vmatpush1.msra.mxu0 0.0
    %357 = vmatprep.subr.mxu0 0.0
    %358 = vmatpush1.msra.mxu0 0.0
    %359 = vmatprep.subr.mxu0 0.0
    %360 = vmatpush1.msra.mxu0 0.0
    %361 = vmatprep.subr.mxu0 0.0
    %362 = vmatpush1.msra.mxu0 0.0
    %363 = vmatprep.subr.mxu0 0.0
    %364 = vmatpush1.msra.mxu0 0.0
    %365 = vmatprep.subr.mxu0 0.0
    %366 = vmatpush1.msra.mxu0 0.0
    %367 = vmatprep.subr.mxu0 0.0
    %368 = vmatpush1.msra.mxu0 0.0
    %369 = vmatprep.subr.mxu0 0.0
    %370 = vmatpush1.msra.mxu0 0.0
    %371 = vmatprep.subr.mxu0 0.0
    %372 = vmatpush1.msra.mxu0 0.0
    %373 = vmatprep.subr.mxu0 0.0
    %374 = vmatpush1.msra.mxu0 0.0
    %375 = vmatprep.subr.mxu0 0.0
    %376 = vmatpush1.msra.mxu0 0.0
    %377 = vmatprep.subr.mxu0 0.0
    %378 = vmatpush1.msra.mxu0 0.0
    %379 = vmatprep.subr.mxu0 0.0
    %380 = vmatpush1.msra.mxu0 0.0
    %381 = vmatprep.subr.mxu0 0.0
    %382 = vmatpush1.msra.mxu0 0.0
    %383 = vmatprep.subr.mxu0 0.0
    %384 = vmatpush1.msra.mxu0 0.0
    %385 = vmatprep.mubr.f32.mxu0 0.0
    %386 = vmatmul.mubr.f32.gmra.mrb[0].mxu0 %v310
    %v387 = vpop.f32.mrb[0].mxu0
    %v388 = vadd.f32 0.0, %v387
    %v389 = vpop.f32.mrb[0].mxu0
    %390 = vmatprep.mubr.f32.mxu0 0.0
    %391 = vmatmul.mubr.f32.gmra.mrb[0].mxu0 %v313
    %v392 = vpop.f32.mrb[0].mxu0
    %v393 = vadd.f32 0.0, %v392
    %v394 = vpop.f32.mrb[0].mxu0
    %395 = vmatprep.mubr.f32.mxu0 0.0
    %396 = vmatmul.mubr.f32.gmra.mrb[0].mxu0 %v316
    %v397 = vpop.f32.mrb[0].mxu0
    %v398 = vadd.f32 0.0, %v397
    %v399 = vpop.f32.mrb[0].mxu0
    %400 = vmatprep.mubr.f32.mxu0 0.0
    %401 = vmatmul.mubr.f32.gmra.mrb[0].mxu0 %v319
    %v402 = vpop.f32.mrb[0].mxu0
    %v403 = vadd.f32 0.0, %v402
    %v404 = vpop.f32.mrb[0].mxu0
    %405 = vdwg.mxu0
    %v407 = vsel %vm308, %v167, 0
    %v410 = vsel %vm308, %v172, 0
    %v413 = vsel %vm308, %v177, 0
    %v416 = vsel %vm308, %v182, 0
    %418 = vmatprep.subr.mxu0 0.0
    %419 = vmatpush1.msra.mxu0 %v287
    %420 = vmatprep.subr.mxu0 0.0
    %421 = vmatpush1.msra.mxu0 %v288
    %422 = vmatprep.subr.mxu0 0.0
    %423 = vmatpush1.msra.mxu0 %v289
    %424 = vmatprep.subr.mxu0 0.0
    %425 = vmatpush1.msra.mxu0 %v290
    %426 = vmatprep.subr.mxu0 0.0
    %427 = vmatpush1.msra.mxu0 0.0
    %428 = vmatprep.subr.mxu0 0.0
    %429 = vmatpush1.msra.mxu0 0.0
    %430 = vmatprep.subr.mxu0 0.0
    %431 = vmatpush1.msra.mxu0 0.0
    %432 = vmatprep.subr.mxu0 0.0
    %433 = vmatpush1.msra.mxu0 0.0
    %434 = vmatprep.subr.mxu0 0.0
    %435 = vmatpush1.msra.mxu0 0.0
    %436 = vmatprep.subr.mxu0 0.0
    %437 = vmatpush1.msra.mxu0 0.0
    %438 = vmatprep.subr.mxu0 0.0
    %439 = vmatpush1.msra.mxu0 0.0
    %440 = vmatprep.subr.mxu0 0.0
    %441 = vmatpush1.msra.mxu0 0.0
    %442 = vmatprep.subr.mxu0 0.0
    %443 = vmatpush1.msra.mxu0 0.0
    %444 = vmatprep.subr.mxu0 0.0
    %445 = vmatpush1.msra.mxu0 0.0
    %446 = vmatprep.subr.mxu0 0.0
    %447 = vmatpush1.msra.mxu0 0.0
    %448 = vmatprep.subr.mxu0 0.0
    %449 = vmatpush1.msra.mxu0 0.0
    %450 = vmatprep.subr.mxu0 0.0
    %451 = vmatpush1.msra.mxu0 0.0
    %452 = vmatprep.subr.mxu0 0.0
    %453 = vmatpush1.msra.mxu0 0.0
    %454 = vmatprep.subr.mxu0 0.0
    %455 = vmatpush1.msra.mxu0 0.0
    %456 = vmatprep.subr.mxu0 0.0
    %457 = vmatpush1.msra.mxu0 0.0
    %458 = vmatprep.subr.mxu0 0.0
    %459 = vmatpush1.msra.mxu0 0.0
    %460 = vmatprep.subr.mxu0 0.0
    %461 = vmatpush1.msra.mxu0 0.0
    %462 = vmatprep.subr.mxu0 0.0
    %463 = vmatpush1.msra.mxu0 0.0
    %464 = vmatprep.subr.mxu0 0.0
    %465 = vmatpush1.msra.mxu0 0.0
    %466 = vmatprep.subr.mxu0 0.0
    %467 = vmatpush1.msra.mxu0 0.0
    %468 = vmatprep.subr.mxu0 0.0
    %469 = vmatpush1.msra.mxu0 0.0
    %470 = vmatprep.subr.mxu0 0.0
    %471 = vmatpush1.msra.mxu0 0.0
    %472 = vmatprep.subr.mxu0 0.0
    %473 = vmatpush1.msra.mxu0 0.0
    %474 = vmatprep.subr.mxu0 0.0
    %475 = vmatpush1.msra.mxu0 0.0
    %476 = vmatprep.subr.mxu0 0.0
    %477 = vmatpush1.msra.mxu0 0.0
    %478 = vmatprep.subr.mxu0 0.0
    %479 = vmatpush1.msra.mxu0 0.0
    %480 = vmatprep.subr.mxu0 0.0
    %481 = vmatpush1.msra.mxu0 0.0
    %482 = vmatprep.mubr.f32.mxu0 0.0
    %483 = vmatmul.mubr.f32.gmra.mrb[0].mxu0 %v407
    %v484 = vpop.f32.mrb[0].mxu0
    %v485 = vadd.f32 %v388, %v484
    %v486 = vpop.f32.mrb[0].mxu0
    %487 = vmatprep.mubr.f32.mxu0 0.0
    %488 = vmatmul.mubr.f32.gmra.mrb[0].mxu0 %v410
    %v489 = vpop.f32.mrb[0].mxu0
    %v490 = vadd.f32 %v393, %v489
    %v491 = vpop.f32.mrb[0].mxu0
    %492 = vmatprep.mubr.f32.mxu0 0.0
    %493 = vmatmul.mubr.f32.gmra.mrb[0].mxu0 %v413
    %v494 = vpop.f32.mrb[0].mxu0
    %v495 = vadd.f32 %v398, %v494
    %v496 = vpop.f32.mrb[0].mxu0
    %497 = vmatprep.mubr.f32.mxu0 0.0
    %498 = vmatmul.mubr.f32.gmra.mrb[0].mxu0 %v416
    %v499 = vpop.f32.mrb[0].mxu0
    %v500 = vadd.f32 %v403, %v499
    %v501 = vpop.f32.mrb[0].mxu0
    %502 = vdwg.mxu0
    %v503 = vrot.slane %v167, 7
    %v504 = vrot.slane %v172, 7
    %v505 = vrot.slane %v177, 7
    %v506 = vrot.slane %v182, 7
    %vm507 = vcmp.lt.s32.totalorder %v186, 1
    %v508 = vsel %vm507, %v505, %v506
    %v509 = vsel %vm507, %v504, %v505
    %v510 = vsel %vm507, %v503, %v504
    %v511 = vsel %vm507, %v506, %v503
    %v512 = vsel %vm258, %v511, 0.0
    %v513 = vsel %vm259, %v510, 0.0
    %v514 = vsel %vm260, %v509, 0.0
    %v515 = vsel %vm261, %v508, 0.0
    %s516 = scalar_lea.vmem [#allocation2], 32
    %v517 = vld [vmem:[%s516] sm:$0xff]
    %v518 = vld [vmem:[%s516 + $0x8] sm:$0xff]
    %v519 = vld [vmem:[%s516 + $0x10] sm:$0xff]
    %v520 = vld [vmem:[%s516 + $0x18] sm:$0xff]
    %v522 = vsel %vm308, %v512, 0
    %v525 = vsel %vm308, %v513, 0
    %v528 = vsel %vm308, %v514, 0
    %v531 = vsel %vm308, %v515, 0
    %533 = vmatprep.subr.mxu0 0.0
    %534 = vmatpush1.msra.mxu0 %v517
    %535 = vmatprep.subr.mxu0 0.0
    %536 = vmatpush1.msra.mxu0 %v518
    %537 = vmatprep.subr.mxu0 0.0
    %538 = vmatpush1.msra.mxu0 %v519
    %539 = vmatprep.subr.mxu0 0.0
    %540 = vmatpush1.msra.mxu0 %v520
    %541 = vmatprep.subr.mxu0 0.0
    %542 = vmatpush1.msra.mxu0 0.0
    %543 = vmatprep.subr.mxu0 0.0
    %544 = vmatpush1.msra.mxu0 0.0
    %545 = vmatprep.subr.mxu0 0.0
    %546 = vmatpush1.msra.mxu0 0.0
    %547 = vmatprep.subr.mxu0 0.0
    %548 = vmatpush1.msra.mxu0 0.0
    %549 = vmatprep.subr.mxu0 0.0
    %550 = vmatpush1.msra.mxu0 0.0
    %551 = vmatprep.subr.mxu0 0.0
    %552 = vmatpush1.msra.mxu0 0.0
    %553 = vmatprep.subr.mxu0 0.0
    %554 = vmatpush1.msra.mxu0 0.0
    %555 = vmatprep.subr.mxu0 0.0
    %556 = vmatpush1.msra.mxu0 0.0
    %557 = vmatprep.subr.mxu0 0.0
    %558 = vmatpush1.msra.mxu0 0.0
    %559 = vmatprep.subr.mxu0 0.0
    %560 = vmatpush1.msra.mxu0 0.0
    %561 = vmatprep.subr.mxu0 0.0
    %562 = vmatpush1.msra.mxu0 0.0
    %563 = vmatprep.subr.mxu0 0.0
    %564 = vmatpush1.msra.mxu0 0.0
    %565 = vmatprep.subr.mxu0 0.0
    %566 = vmatpush1.msra.mxu0 0.0
    %567 = vmatprep.subr.mxu0 0.0
    %568 = vmatpush1.msra.mxu0 0.0
    %569 = vmatprep.subr.mxu0 0.0
    %570 = vmatpush1.msra.mxu0 0.0
    %571 = vmatprep.subr.mxu0 0.0
    %572 = vmatpush1.msra.mxu0 0.0
    %573 = vmatprep.subr.mxu0 0.0
    %574 = vmatpush1.msra.mxu0 0.0
    %575 = vmatprep.subr.mxu0 0.0
    %576 = vmatpush1.msra.mxu0 0.0
    %577 = vmatprep.subr.mxu0 0.0
    %578 = vmatpush1.msra.mxu0 0.0
    %579 = vmatprep.subr.mxu0 0.0
    %580 = vmatpush1.msra.mxu0 0.0
    %581 = vmatprep.subr.mxu0 0.0
    %582 = vmatpush1.msra.mxu0 0.0
    %583 = vmatprep.subr.mxu0 0.0
    %584 = vmatpush1.msra.mxu0 0.0
    %585 = vmatprep.subr.mxu0 0.0
    %586 = vmatpush1.msra.mxu0 0.0
    %587 = vmatprep.subr.mxu0 0.0
    %588 = vmatpush1.msra.mxu0 0.0
    %589 = vmatprep.subr.mxu0 0.0
    %590 = vmatpush1.msra.mxu0 0.0
    %591 = vmatprep.subr.mxu0 0.0
    %592 = vmatpush1.msra.mxu0 0.0
    %593 = vmatprep.subr.mxu0 0.0
    %594 = vmatpush1.msra.mxu0 0.0
    %595 = vmatprep.subr.mxu0 0.0
    %596 = vmatpush1.msra.mxu0 0.0
    %597 = vmatprep.mubr.f32.mxu0 0.0
    %598 = vmatmul.mubr.f32.gmra.mrb[0].mxu0 %v522
    %v599 = vpop.f32.mrb[0].mxu0
    %v600 = vadd.f32 0.0, %v599
    %v601 = vpop.f32.mrb[0].mxu0
    %602 = vmatprep.mubr.f32.mxu0 0.0
    %603 = vmatmul.mubr.f32.gmra.mrb[0].mxu0 %v525
    %v604 = vpop.f32.mrb[0].mxu0
    %v605 = vadd.f32 0.0, %v604
    %v606 = vpop.f32.mrb[0].mxu0
    %607 = vmatprep.mubr.f32.mxu0 0.0
    %608 = vmatmul.mubr.f32.gmra.mrb[0].mxu0 %v528
    %v609 = vpop.f32.mrb[0].mxu0
    %v610 = vadd.f32 0.0, %v609
    %v611 = vpop.f32.mrb[0].mxu0
    %612 = vmatprep.mubr.f32.mxu0 0.0
    %613 = vmatmul.mubr.f32.gmra.mrb[0].mxu0 %v531
    %v614 = vpop.f32.mrb[0].mxu0
    %v615 = vadd.f32 0.0, %v614
    %v616 = vpop.f32.mrb[0].mxu0
    %617 = vdwg.mxu0
    %v618 = vadd.f32 %v485, %v600
    %v619 = vadd.f32 %v490, %v605
    %v620 = vadd.f32 %v495, %v610
    %v621 = vadd.f32 %v500, %v615
    %v622 = vrot.slane %v167, 1
    %v623 = vrot.slane %v172, 1
    %v624 = vrot.slane %v177, 1
    %v625 = vrot.slane %v182, 1
    %vm626 = vcmp.lt.s32.totalorder %v186, 7
    %v627 = vsel %vm626, %v624, %v625
    %v628 = vsel %vm626, %v623, %v624
    %v629 = vsel %vm626, %v622, %v623
    %v630 = vsel %vm626, %v625, %v622
    %v631 = vsel %vm270, %v629, 0.0
    %v632 = vsel %vm271, %v628, 0.0
    %v633 = vsel %vm272, %v627, 0.0
    %v634 = vsel %vm273, %v630, 0.0
    %s635 = scalar_lea.vmem [#allocation2], 96
    %v636 = vld [vmem:[%s635] sm:$0xff]
    %v637 = vld [vmem:[%s635 + $0x8] sm:$0xff]
    %v638 = vld [vmem:[%s635 + $0x10] sm:$0xff]
    %v639 = vld [vmem:[%s635 + $0x18] sm:$0xff]
    %v641 = vsel %vm308, %v631, 0
    %v644 = vsel %vm308, %v632, 0
    %v647 = vsel %vm308, %v633, 0
    %v650 = vsel %vm308, %v634, 0
    %652 = vmatprep.subr.mxu0 0.0
    %653 = vmatpush1.msra.mxu0 %v636
    %654 = vmatprep.subr.mxu0 0.0
    %655 = vmatpush1.msra.mxu0 %v637
    %656 = vmatprep.subr.mxu0 0.0
    %657 = vmatpush1.msra.mxu0 %v638
    %658 = vmatprep.subr.mxu0 0.0
    %659 = vmatpush1.msra.mxu0 %v639
    %660 = vmatprep.subr.mxu0 0.0
    %661 = vmatpush1.msra.mxu0 0.0
    %662 = vmatprep.subr.mxu0 0.0
    %663 = vmatpush1.msra.mxu0 0.0
    %664 = vmatprep.subr.mxu0 0.0
    %665 = vmatpush1.msra.mxu0 0.0
    %666 = vmatprep.subr.mxu0 0.0
    %667 = vmatpush1.msra.mxu0 0.0
    %668 = vmatprep.subr.mxu0 0.0
    %669 = vmatpush1.msra.mxu0 0.0
    %670 = vmatprep.subr.mxu0 0.0
    %671 = vmatpush1.msra.mxu0 0.0
    %672 = vmatprep.subr.mxu0 0.0
    %673 = vmatpush1.msra.mxu0 0.0
    %674 = vmatprep.subr.mxu0 0.0
    %675 = vmatpush1.msra.mxu0 0.0
    %676 = vmatprep.subr.mxu0 0.0
    %677 = vmatpush1.msra.mxu0 0.0
    %678 = vmatprep.subr.mxu0 0.0
    %679 = vmatpush1.msra.mxu0 0.0
    %680 = vmatprep.subr.mxu0 0.0
    %681 = vmatpush1.msra.mxu0 0.0
    %682 = vmatprep.subr.mxu0 0.0
    %683 = vmatpush1.msra.mxu0 0.0
    %684 = vmatprep.subr.mxu0 0.0
    %685 = vmatpush1.msra.mxu0 0.0
    %686 = vmatprep.subr.mxu0 0.0
    %687 = vmatpush1.msra.mxu0 0.0
    %688 = vmatprep.subr.mxu0 0.0
    %689 = vmatpush1.msra.mxu0 0.0
    %690 = vmatprep.subr.mxu0 0.0
    %691 = vmatpush1.msra.mxu0 0.0
    %692 = vmatprep.subr.mxu0 0.0
    %693 = vmatpush1.msra.mxu0 0.0
    %694 = vmatprep.subr.mxu0 0.0
    %695 = vmatpush1.msra.mxu0 0.0
    %696 = vmatprep.subr.mxu0 0.0
    %697 = vmatpush1.msra.mxu0 0.0
    %698 = vmatprep.subr.mxu0 0.0
    %699 = vmatpush1.msra.mxu0 0.0
    %700 = vmatprep.subr.mxu0 0.0
    %701 = vmatpush1.msra.mxu0 0.0
    %702 = vmatprep.subr.mxu0 0.0
    %703 = vmatpush1.msra.mxu0 0.0
    %704 = vmatprep.subr.mxu0 0.0
    %705 = vmatpush1.msra.mxu0 0.0
    %706 = vmatprep.subr.mxu0 0.0
    %707 = vmatpush1.msra.mxu0 0.0
    %708 = vmatprep.subr.mxu0 0.0
    %709 = vmatpush1.msra.mxu0 0.0
    %710 = vmatprep.subr.mxu0 0.0
    %711 = vmatpush1.msra.mxu0 0.0
    %712 = vmatprep.subr.mxu0 0.0
    %713 = vmatpush1.msra.mxu0 0.0
    %714 = vmatprep.subr.mxu0 0.0
    %715 = vmatpush1.msra.mxu0 0.0
    %716 = vmatprep.mubr.f32.mxu0 0.0
    %717 = vmatmul.mubr.f32.gmra.mrb[0].mxu0 %v641
    %v718 = vpop.f32.mrb[0].mxu0
    %v719 = vadd.f32 0.0, %v718
    %v720 = vpop.f32.mrb[0].mxu0
    %721 = vmatprep.mubr.f32.mxu0 0.0
    %722 = vmatmul.mubr.f32.gmra.mrb[0].mxu0 %v644
    %v723 = vpop.f32.mrb[0].mxu0
    %v724 = vadd.f32 0.0, %v723
    %v725 = vpop.f32.mrb[0].mxu0
    %726 = vmatprep.mubr.f32.mxu0 0.0
    %727 = vmatmul.mubr.f32.gmra.mrb[0].mxu0 %v647
    %v728 = vpop.f32.mrb[0].mxu0
    %v729 = vadd.f32 0.0, %v728
    %v730 = vpop.f32.mrb[0].mxu0
    %731 = vmatprep.mubr.f32.mxu0 0.0
    %732 = vmatmul.mubr.f32.gmra.mrb[0].mxu0 %v650
    %v733 = vpop.f32.mrb[0].mxu0
    %v734 = vadd.f32 0.0, %v733
    %v735 = vpop.f32.mrb[0].mxu0
    %736 = vdwg.mxu0
    %v737 = vadd.f32 %v618, %v719
    %v738 = vadd.f32 %v619, %v724
    %v739 = vadd.f32 %v620, %v729
    %v740 = vadd.f32 %v621, %v734
    %v741 = vrot.slane %v167, 2
    %v742 = vrot.slane %v172, 2
    %v743 = vrot.slane %v177, 2
    %v744 = vrot.slane %v182, 2
    %vm745 = vcmp.lt.s32.totalorder %v186, 6
    %v746 = vsel %vm745, %v743, %v744
    %v747 = vsel %vm745, %v742, %v743
    %v748 = vsel %vm745, %v741, %v742
    %v749 = vsel %vm745, %v744, %v741
    %v750 = vsel %vm282, %v748, 0.0
    %v751 = vsel %vm283, %v747, 0.0
    %v752 = vsel %vm284, %v746, 0.0
    %v753 = vsel %vm285, %v749, 0.0
    %s754 = scalar_lea.vmem [#allocation2], 128
    %v755 = vld [vmem:[%s754] sm:$0xff]
    %v756 = vld [vmem:[%s754 + $0x8] sm:$0xff]
    %v757 = vld [vmem:[%s754 + $0x10] sm:$0xff]
    %v758 = vld [vmem:[%s754 + $0x18] sm:$0xff]
    %v760 = vsel %vm308, %v750, 0
    %v763 = vsel %vm308, %v751, 0
    %v766 = vsel %vm308, %v752, 0
    %v769 = vsel %vm308, %v753, 0
    %771 = vmatprep.subr.mxu0 0.0
    %772 = vmatpush1.msra.mxu0 %v755
    %773 = vmatprep.subr.mxu0 0.0
    %774 = vmatpush1.msra.mxu0 %v756
    %775 = vmatprep.subr.mxu0 0.0
    %776 = vmatpush1.msra.mxu0 %v757
    %777 = vmatprep.subr.mxu0 0.0
    %778 = vmatpush1.msra.mxu0 %v758
    %779 = vmatprep.subr.mxu0 0.0
    %780 = vmatpush1.msra.mxu0 0.0
    %781 = vmatprep.subr.mxu0 0.0
    %782 = vmatpush1.msra.mxu0 0.0
    %783 = vmatprep.subr.mxu0 0.0
    %784 = vmatpush1.msra.mxu0 0.0
    %785 = vmatprep.subr.mxu0 0.0
    %786 = vmatpush1.msra.mxu0 0.0
    %787 = vmatprep.subr.mxu0 0.0
    %788 = vmatpush1.msra.mxu0 0.0
    %789 = vmatprep.subr.mxu0 0.0
    %790 = vmatpush1.msra.mxu0 0.0
    %791 = vmatprep.subr.mxu0 0.0
    %792 = vmatpush1.msra.mxu0 0.0
    %793 = vmatprep.subr.mxu0 0.0
    %794 = vmatpush1.msra.mxu0 0.0
    %795 = vmatprep.subr.mxu0 0.0
    %796 = vmatpush1.msra.mxu0 0.0
    %797 = vmatprep.subr.mxu0 0.0
    %798 = vmatpush1.msra.mxu0 0.0
    %799 = vmatprep.subr.mxu0 0.0
    %800 = vmatpush1.msra.mxu0 0.0
    %801 = vmatprep.subr.mxu0 0.0
    %802 = vmatpush1.msra.mxu0 0.0
    %803 = vmatprep.subr.mxu0 0.0
    %804 = vmatpush1.msra.mxu0 0.0
    %805 = vmatprep.subr.mxu0 0.0
    %806 = vmatpush1.msra.mxu0 0.0
    %807 = vmatprep.subr.mxu0 0.0
    %808 = vmatpush1.msra.mxu0 0.0
    %809 = vmatprep.subr.mxu0 0.0
    %810 = vmatpush1.msra.mxu0 0.0
    %811 = vmatprep.subr.mxu0 0.0
    %812 = vmatpush1.msra.mxu0 0.0
    %813 = vmatprep.subr.mxu0 0.0
    %814 = vmatpush1.msra.mxu0 0.0
    %815 = vmatprep.subr.mxu0 0.0
    %816 = vmatpush1.msra.mxu0 0.0
    %817 = vmatprep.subr.mxu0 0.0
    %818 = vmatpush1.msra.mxu0 0.0
    %819 = vmatprep.subr.mxu0 0.0
    %820 = vmatpush1.msra.mxu0 0.0
    %821 = vmatprep.subr.mxu0 0.0
    %822 = vmatpush1.msra.mxu0 0.0
    %823 = vmatprep.subr.mxu0 0.0
    %824 = vmatpush1.msra.mxu0 0.0
    %825 = vmatprep.subr.mxu0 0.0
    %826 = vmatpush1.msra.mxu0 0.0
    %827 = vmatprep.subr.mxu0 0.0
    %828 = vmatpush1.msra.mxu0 0.0
    %829 = vmatprep.subr.mxu0 0.0
    %830 = vmatpush1.msra.mxu0 0.0
    %831 = vmatprep.subr.mxu0 0.0
    %832 = vmatpush1.msra.mxu0 0.0
    %833 = vmatprep.subr.mxu0 0.0
    %834 = vmatpush1.msra.mxu0 0.0
    %835 = vmatprep.mubr.f32.mxu0 0.0
    %836 = vmatmul.mubr.f32.gmra.mrb[0].mxu0 %v760
    %v837 = vpop.f32.mrb[0].mxu0
    %v838 = vadd.f32 0.0, %v837
    %v839 = vpop.f32.mrb[0].mxu0
    %840 = vmatprep.mubr.f32.mxu0 0.0
    %841 = vmatmul.mubr.f32.gmra.mrb[0].mxu0 %v763
    %v842 = vpop.f32.mrb[0].mxu0
    %v843 = vadd.f32 0.0, %v842
    %v844 = vpop.f32.mrb[0].mxu0
    %845 = vmatprep.mubr.f32.mxu0 0.0
    %846 = vmatmul.mubr.f32.gmra.mrb[0].mxu0 %v766
    %v847 = vpop.f32.mrb[0].mxu0
    %v848 = vadd.f32 0.0, %v847
    %v849 = vpop.f32.mrb[0].mxu0
    %850 = vmatprep.mubr.f32.mxu0 0.0
    %851 = vmatmul.mubr.f32.gmra.mrb[0].mxu0 %v769
    %v852 = vpop.f32.mrb[0].mxu0
    %v853 = vadd.f32 0.0, %v852
    %v854 = vpop.f32.mrb[0].mxu0
    %855 = vdwg.mxu0
    %v856 = vadd.f32 %v737, %v838
    %v857 = vadd.f32 %v738, %v843
    %v858 = vadd.f32 %v739, %v848
    %v859 = vadd.f32 %v740, %v853
    %v860 = vld [vmem:[%s3] sm:$0x1]
    %v862 = vlaneseq
    %v863 = vshrl.u32 %v862, 7
    %v864 = vsub.s32 0, %v863
    %v865 = vrot.slane %v860, %v864
    %v867 = vadd.f32 %v856, %v865
    %v868 = vadd.f32 %v857, %v865
    %v869 = vadd.f32 %v858, %v865
    %v870 = vadd.f32 %v859, %v865
    %v871 = vmax.f32 %v867, 0.0
    %v872 = vmax.f32 %v868, 0.0
    %v873 = vmax.f32 %v869, 0.0
    %v874 = vmax.f32 %v870, 0.0
    %s875 = scalar_lea.vmem [#allocation2], 224
    %v876 = vld [vmem:[%s875] sm:$0xff]
    %v877 = vld [vmem:[%s875 + $0x8] sm:$0xff]
    %v878 = vld [vmem:[%s875 + $0x10] sm:$0xff]
    %v879 = vld [vmem:[%s875 + $0x18] sm:$0xff]
    %v880 = vrot.slane %v871, 6
    %v881 = vrot.slane %v872, 6
    %v882 = vrot.slane %v873, 6
    %v883 = vrot.slane %v874, 6
    %v884 = vsel %vm295, %v882, %v883
    %v885 = vsel %vm295, %v881, %v882
    %v886 = vsel %vm295, %v880, %v881
    %v887 = vsel %vm295, %v883, %v880
    %v888 = vsel %vm246, %v887, 0.0
    %v889 = vsel %vm247, %v886, 0.0
    %v890 = vsel %vm248, %v885, 0.0
    %v891 = vsel %vm249, %v884, 0.0
    %s892 = scalar_lea.vmem [#allocation2], 160
    %v893 = vld [vmem:[%s892] sm:$0xff]
    %v894 = vld [vmem:[%s892 + $0x8] sm:$0xff]
    %v895 = vld [vmem:[%s892 + $0x10] sm:$0xff]
    %v896 = vld [vmem:[%s892 + $0x18] sm:$0xff]
    %v898 = vsel %vm308, %v888, 0
    %v901 = vsel %vm308, %v889, 0
    %v904 = vsel %vm308, %v890, 0
    %v907 = vsel %vm308, %v891, 0
    %909 = vmatprep.subr.mxu0 0.0
    %910 = vmatpush1.msra.mxu0 %v893
    %911 = vmatprep.subr.mxu0 0.0
    %912 = vmatpush1.msra.mxu0 %v894
    %913 = vmatprep.subr.mxu0 0.0
    %914 = vmatpush1.msra.mxu0 %v895
    %915 = vmatprep.subr.mxu0 0.0
    %916 = vmatpush1.msra.mxu0 %v896
    %917 = vmatprep.subr.mxu0 0.0
    %918 = vmatpush1.msra.mxu0 0.0
    %919 = vmatprep.subr.mxu0 0.0
    %920 = vmatpush1.msra.mxu0 0.0
    %921 = vmatprep.subr.mxu0 0.0
    %922 = vmatpush1.msra.mxu0 0.0
    %923 = vmatprep.subr.mxu0 0.0
    %924 = vmatpush1.msra.mxu0 0.0
    %925 = vmatprep.subr.mxu0 0.0
    %926 = vmatpush1.msra.mxu0 0.0
    %927 = vmatprep.subr.mxu0 0.0
    %928 = vmatpush1.msra.mxu0 0.0
    %929 = vmatprep.subr.mxu0 0.0
    %930 = vmatpush1.msra.mxu0 0.0
    %931 = vmatprep.subr.mxu0 0.0
    %932 = vmatpush1.msra.mxu0 0.0
    %933 = vmatprep.subr.mxu0 0.0
    %934 = vmatpush1.msra.mxu0 0.0
    %935 = vmatprep.subr.mxu0 0.0
    %936 = vmatpush1.msra.mxu0 0.0
    %937 = vmatprep.subr.mxu0 0.0
    %938 = vmatpush1.msra.mxu0 0.0
    %939 = vmatprep.subr.mxu0 0.0
    %940 = vmatpush1.msra.mxu0 0.0
    %941 = vmatprep.subr.mxu0 0.0
    %942 = vmatpush1.msra.mxu0 0.0
    %943 = vmatprep.subr.mxu0 0.0
    %944 = vmatpush1.msra.mxu0 0.0
    %945 = vmatprep.subr.mxu0 0.0
    %946 = vmatpush1.msra.mxu0 0.0
    %947 = vmatprep.subr.mxu0 0.0
    %948 = vmatpush1.msra.mxu0 0.0
    %949 = vmatprep.subr.mxu0 0.0
    %950 = vmatpush1.msra.mxu0 0.0
    %951 = vmatprep.subr.mxu0 0.0
    %952 = vmatpush1.msra.mxu0 0.0
    %953 = vmatprep.subr.mxu0 0.0
    %954 = vmatpush1.msra.mxu0 0.0
    %955 = vmatprep.subr.mxu0 0.0
    %956 = vmatpush1.msra.mxu0 0.0
    %957 = vmatprep.subr.mxu0 0.0
    %958 = vmatpush1.msra.mxu0 0.0
    %959 = vmatprep.subr.mxu0 0.0
    %960 = vmatpush1.msra.mxu0 0.0
    %961 = vmatprep.subr.mxu0 0.0
    %962 = vmatpush1.msra.mxu0 0.0
    %963 = vmatprep.subr.mxu0 0.0
    %964 = vmatpush1.msra.mxu0 0.0
    %965 = vmatprep.subr.mxu0 0.0
    %966 = vmatpush1.msra.mxu0 0.0
    %967 = vmatprep.subr.mxu0 0.0
    %968 = vmatpush1.msra.mxu0 0.0
    %969 = vmatprep.subr.mxu0 0.0
    %970 = vmatpush1.msra.mxu0 0.0
    %971 = vmatprep.subr.mxu0 0.0
    %972 = vmatpush1.msra.mxu0 0.0
    %973 = vmatprep.mubr.f32.mxu0 0.0
    %974 = vmatmul.mubr.f32.gmra.mrb[0].mxu0 %v898
    %v975 = vpop.f32.mrb[0].mxu0
    %v976 = vadd.f32 0.0, %v975
    %v977 = vpop.f32.mrb[0].mxu0
    %978 = vmatprep.mubr.f32.mxu0 0.0
    %979 = vmatmul.mubr.f32.gmra.mrb[0].mxu0 %v901
    %v980 = vpop.f32.mrb[0].mxu0
    %v981 = vadd.f32 0.0, %v980
    %v982 = vpop.f32.mrb[0].mxu0
    %983 = vmatprep.mubr.f32.mxu0 0.0
    %984 = vmatmul.mubr.f32.gmra.mrb[0].mxu0 %v904
    %v985 = vpop.f32.mrb[0].mxu0
    %v986 = vadd.f32 0.0, %v985
    %v987 = vpop.f32.mrb[0].mxu0
    %988 = vmatprep.mubr.f32.mxu0 0.0
    %989 = vmatmul.mubr.f32.gmra.mrb[0].mxu0 %v907
    %v990 = vpop.f32.mrb[0].mxu0
    %v991 = vadd.f32 0.0, %v990
    %v992 = vpop.f32.mrb[0].mxu0
    %993 = vdwg.mxu0
    %v995 = vsel %vm308, %v871, 0
    %v998 = vsel %vm308, %v872, 0
    %v1001 = vsel %vm308, %v873, 0
    %v1004 = vsel %vm308, %v874, 0
    %1006 = vmatprep.subr.mxu0 0.0
    %1007 = vmatpush1.msra.mxu0 %v876
    %1008 = vmatprep.subr.mxu0 0.0
    %1009 = vmatpush1.msra.mxu0 %v877
    %1010 = vmatprep.subr.mxu0 0.0
    %1011 = vmatpush1.msra.mxu0 %v878
    %1012 = vmatprep.subr.mxu0 0.0
    %1013 = vmatpush1.msra.mxu0 %v879
    %1014 = vmatprep.subr.mxu0 0.0
    %1015 = vmatpush1.msra.mxu0 0.0
    %1016 = vmatprep.subr.mxu0 0.0
    %1017 = vmatpush1.msra.mxu0 0.0
    %1018 = vmatprep.subr.mxu0 0.0
    %1019 = vmatpush1.msra.mxu0 0.0
    %1020 = vmatprep.subr.mxu0 0.0
    %1021 = vmatpush1.msra.mxu0 0.0
    %1022 = vmatprep.subr.mxu0 0.0
    %1023 = vmatpush1.msra.mxu0 0.0
    %1024 = vmatprep.subr.mxu0 0.0
    %1025 = vmatpush1.msra.mxu0 0.0
    %1026 = vmatprep.subr.mxu0 0.0
    %1027 = vmatpush1.msra.mxu0 0.0
    %1028 = vmatprep.subr.mxu0 0.0
    %1029 = vmatpush1.msra.mxu0 0.0
    %1030 = vmatprep.subr.mxu0 0.0
    %1031 = vmatpush1.msra.mxu0 0.0
    %1032 = vmatprep.subr.mxu0 0.0
    %1033 = vmatpush1.msra.mxu0 0.0
    %1034 = vmatprep.subr.mxu0 0.0
    %1035 = vmatpush1.msra.mxu0 0.0
    %1036 = vmatprep.subr.mxu0 0.0
    %1037 = vmatpush1.msra.mxu0 0.0
    %1038 = vmatprep.subr.mxu0 0.0
    %1039 = vmatpush1.msra.mxu0 0.0
    %1040 = vmatprep.subr.mxu0 0.0
    %1041 = vmatpush1.msra.mxu0 0.0
    %1042 = vmatprep.subr.mxu0 0.0
    %1043 = vmatpush1.msra.mxu0 0.0
    %1044 = vmatprep.subr.mxu0 0.0
    %1045 = vmatpush1.msra.mxu0 0.0
    %1046 = vmatprep.subr.mxu0 0.0
    %1047 = vmatpush1.msra.mxu0 0.0
    %1048 = vmatprep.subr.mxu0 0.0
    %1049 = vmatpush1.msra.mxu0 0.0
    %1050 = vmatprep.subr.mxu0 0.0
    %1051 = vmatpush1.msra.mxu0 0.0
    %1052 = vmatprep.subr.mxu0 0.0
    %1053 = vmatpush1.msra.mxu0 0.0
    %1054 = vmatprep.subr.mxu0 0.0
    %1055 = vmatpush1.msra.mxu0 0.0
    %1056 = vmatprep.subr.mxu0 0.0
    %1057 = vmatpush1.msra.mxu0 0.0
    %1058 = vmatprep.subr.mxu0 0.0
    %1059 = vmatpush1.msra.mxu0 0.0
    %1060 = vmatprep.subr.mxu0 0.0
    %1061 = vmatpush1.msra.mxu0 0.0
    %1062 = vmatprep.subr.mxu0 0.0
    %1063 = vmatpush1.msra.mxu0 0.0
    %1064 = vmatprep.subr.mxu0 0.0
    %1065 = vmatpush1.msra.mxu0 0.0
    %1066 = vmatprep.subr.mxu0 0.0
    %1067 = vmatpush1.msra.mxu0 0.0
    %1068 = vmatprep.subr.mxu0 0.0
    %1069 = vmatpush1.msra.mxu0 0.0
    %1070 = vmatprep.mubr.f32.mxu0 0.0
    %1071 = vmatmul.mubr.f32.gmra.mrb[0].mxu0 %v995
    %v1072 = vpop.f32.mrb[0].mxu0
    %v1073 = vadd.f32 %v976, %v1072
    %v1074 = vpop.f32.mrb[0].mxu0
    %1075 = vmatprep.mubr.f32.mxu0 0.0
    %1076 = vmatmul.mubr.f32.gmra.mrb[0].mxu0 %v998
    %v1077 = vpop.f32.mrb[0].mxu0
    %v1078 = vadd.f32 %v981, %v1077
    %v1079 = vpop.f32.mrb[0].mxu0
    %1080 = vmatprep.mubr.f32.mxu0 0.0
    %1081 = vmatmul.mubr.f32.gmra.mrb[0].mxu0 %v1001
    %v1082 = vpop.f32.mrb[0].mxu0
    %v1083 = vadd.f32 %v986, %v1082
    %v1084 = vpop.f32.mrb[0].mxu0
    %1085 = vmatprep.mubr.f32.mxu0 0.0
    %1086 = vmatmul.mubr.f32.gmra.mrb[0].mxu0 %v1004
    %v1087 = vpop.f32.mrb[0].mxu0
    %v1088 = vadd.f32 %v991, %v1087
    %v1089 = vpop.f32.mrb[0].mxu0
    %1090 = vdwg.mxu0
    %v1091 = vrot.slane %v871, 7
    %v1092 = vrot.slane %v872, 7
    %v1093 = vrot.slane %v873, 7
    %v1094 = vrot.slane %v874, 7
    %v1095 = vsel %vm507, %v1093, %v1094
    %v1096 = vsel %vm507, %v1092, %v1093
    %v1097 = vsel %vm507, %v1091, %v1092
    %v1098 = vsel %vm507, %v1094, %v1091
    %v1099 = vsel %vm258, %v1098, 0.0
    %v1100 = vsel %vm259, %v1097, 0.0
    %v1101 = vsel %vm260, %v1096, 0.0
    %v1102 = vsel %vm261, %v1095, 0.0
    %s1103 = scalar_lea.vmem [#allocation2], 192
    %v1104 = vld [vmem:[%s1103] sm:$0xff]
    %v1105 = vld [vmem:[%s1103 + $0x8] sm:$0xff]
    %v1106 = vld [vmem:[%s1103 + $0x10] sm:$0xff]
    %v1107 = vld [vmem:[%s1103 + $0x18] sm:$0xff]
    %v1109 = vsel %vm308, %v1099, 0
    %v1112 = vsel %vm308, %v1100, 0
    %v1115 = vsel %vm308, %v1101, 0
    %v1118 = vsel %vm308, %v1102, 0
    %1120 = vmatprep.subr.mxu0 0.0
    %1121 = vmatpush1.msra.mxu0 %v1104
    %1122 = vmatprep.subr.mxu0 0.0
    %1123 = vmatpush1.msra.mxu0 %v1105
    %1124 = vmatprep.subr.mxu0 0.0
    %1125 = vmatpush1.msra.mxu0 %v1106
    %1126 = vmatprep.subr.mxu0 0.0
    %1127 = vmatpush1.msra.mxu0 %v1107
    %1128 = vmatprep.subr.mxu0 0.0
    %1129 = vmatpush1.msra.mxu0 0.0
    %1130 = vmatprep.subr.mxu0 0.0
    %1131 = vmatpush1.msra.mxu0 0.0
    %1132 = vmatprep.subr.mxu0 0.0
    %1133 = vmatpush1.msra.mxu0 0.0
    %1134 = vmatprep.subr.mxu0 0.0
    %1135 = vmatpush1.msra.mxu0 0.0
    %1136 = vmatprep.subr.mxu0 0.0
    %1137 = vmatpush1.msra.mxu0 0.0
    %1138 = vmatprep.subr.mxu0 0.0
    %1139 = vmatpush1.msra.mxu0 0.0
    %1140 = vmatprep.subr.mxu0 0.0
    %1141 = vmatpush1.msra.mxu0 0.0
    %1142 = vmatprep.subr.mxu0 0.0
    %1143 = vmatpush1.msra.mxu0 0.0
    %1144 = vmatprep.subr.mxu0 0.0
    %1145 = vmatpush1.msra.mxu0 0.0
    %1146 = vmatprep.subr.mxu0 0.0
    %1147 = vmatpush1.msra.mxu0 0.0
    %1148 = vmatprep.subr.mxu0 0.0
    %1149 = vmatpush1.msra.mxu0 0.0
    %1150 = vmatprep.subr.mxu0 0.0
    %1151 = vmatpush1.msra.mxu0 0.0
    %1152 = vmatprep.subr.mxu0 0.0
    %1153 = vmatpush1.msra.mxu0 0.0
    %1154 = vmatprep.subr.mxu0 0.0
    %1155 = vmatpush1.msra.mxu0 0.0
    %1156 = vmatprep.subr.mxu0 0.0
    %1157 = vmatpush1.msra.mxu0 0.0
    %1158 = vmatprep.subr.mxu0 0.0
    %1159 = vmatpush1.msra.mxu0 0.0
    %1160 = vmatprep.subr.mxu0 0.0
    %1161 = vmatpush1.msra.mxu0 0.0
    %1162 = vmatprep.subr.mxu0 0.0
    %1163 = vmatpush1.msra.mxu0 0.0
    %1164 = vmatprep.subr.mxu0 0.0
    %1165 = vmatpush1.msra.mxu0 0.0
    %1166 = vmatprep.subr.mxu0 0.0
    %1167 = vmatpush1.msra.mxu0 0.0
    %1168 = vmatprep.subr.mxu0 0.0
    %1169 = vmatpush1.msra.mxu0 0.0
    %1170 = vmatprep.subr.mxu0 0.0
    %1171 = vmatpush1.msra.mxu0 0.0
    %1172 = vmatprep.subr.mxu0 0.0
    %1173 = vmatpush1.msra.mxu0 0.0
    %1174 = vmatprep.subr.mxu0 0.0
    %1175 = vmatpush1.msra.mxu0 0.0
    %1176 = vmatprep.subr.mxu0 0.0
    %1177 = vmatpush1.msra.mxu0 0.0
    %1178 = vmatprep.subr.mxu0 0.0
    %1179 = vmatpush1.msra.mxu0 0.0
    %1180 = vmatprep.subr.mxu0 0.0
    %1181 = vmatpush1.msra.mxu0 0.0
    %1182 = vmatprep.subr.mxu0 0.0
    %1183 = vmatpush1.msra.mxu0 0.0
    %1184 = vmatprep.mubr.f32.mxu0 0.0
    %1185 = vmatmul.mubr.f32.gmra.mrb[0].mxu0 %v1109
    %v1186 = vpop.f32.mrb[0].mxu0
    %v1187 = vadd.f32 0.0, %v1186
    %v1188 = vpop.f32.mrb[0].mxu0
    %1189 = vmatprep.mubr.f32.mxu0 0.0
    %1190 = vmatmul.mubr.f32.gmra.mrb[0].mxu0 %v1112
    %v1191 = vpop.f32.mrb[0].mxu0
    %v1192 = vadd.f32 0.0, %v1191
    %v1193 = vpop.f32.mrb[0].mxu0
    %1194 = vmatprep.mubr.f32.mxu0 0.0
    %1195 = vmatmul.mubr.f32.gmra.mrb[0].mxu0 %v1115
    %v1196 = vpop.f32.mrb[0].mxu0
    %v1197 = vadd.f32 0.0, %v1196
    %v1198 = vpop.f32.mrb[0].mxu0
    %1199 = vmatprep.mubr.f32.mxu0 0.0
    %1200 = vmatmul.mubr.f32.gmra.mrb[0].mxu0 %v1118
    %v1201 = vpop.f32.mrb[0].mxu0
    %v1202 = vadd.f32 0.0, %v1201
    %v1203 = vpop.f32.mrb[0].mxu0
    %1204 = vdwg.mxu0
    %v1205 = vadd.f32 %v1073, %v1187
    %v1206 = vadd.f32 %v1078, %v1192
    %v1207 = vadd.f32 %v1083, %v1197
    %v1208 = vadd.f32 %v1088, %v1202
    %v1209 = vrot.slane %v871, 1
    %v1210 = vrot.slane %v872, 1
    %v1211 = vrot.slane %v873, 1
    %v1212 = vrot.slane %v874, 1
    %v1213 = vsel %vm626, %v1211, %v1212
    %v1214 = vsel %vm626, %v1210, %v1211
    %v1215 = vsel %vm626, %v1209, %v1210
    %v1216 = vsel %vm626, %v1212, %v1209
    %v1217 = vsel %vm270, %v1215, 0.0
    %v1218 = vsel %vm271, %v1214, 0.0
    %v1219 = vsel %vm272, %v1213, 0.0
    %v1220 = vsel %vm273, %v1216, 0.0
    %s1221 = scalar_lea.vmem [#allocation2], 256
    %v1222 = vld [vmem:[%s1221] sm:$0xff]
    %v1223 = vld [vmem:[%s1221 + $0x8] sm:$0xff]
    %v1224 = vld [vmem:[%s1221 + $0x10] sm:$0xff]
    %v1225 = vld [vmem:[%s1221 + $0x18] sm:$0xff]
    %v1227 = vsel %vm308, %v1217, 0
    %v1230 = vsel %vm308, %v1218, 0
    %v1233 = vsel %vm308, %v1219, 0
    %v1236 = vsel %vm308, %v1220, 0
    %1238 = vmatprep.subr.mxu0 0.0
    %1239 = vmatpush1.msra.mxu0 %v1222
    %1240 = vmatprep.subr.mxu0 0.0
    %1241 = vmatpush1.msra.mxu0 %v1223
    %1242 = vmatprep.subr.mxu0 0.0
    %1243 = vmatpush1.msra.mxu0 %v1224
    %1244 = vmatprep.subr.mxu0 0.0
    %1245 = vmatpush1.msra.mxu0 %v1225
    %1246 = vmatprep.subr.mxu0 0.0
    %1247 = vmatpush1.msra.mxu0 0.0
    %1248 = vmatprep.subr.mxu0 0.0
    %1249 = vmatpush1.msra.mxu0 0.0
    %1250 = vmatprep.subr.mxu0 0.0
    %1251 = vmatpush1.msra.mxu0 0.0
    %1252 = vmatprep.subr.mxu0 0.0
    %1253 = vmatpush1.msra.mxu0 0.0
    %1254 = vmatprep.subr.mxu0 0.0
    %1255 = vmatpush1.msra.mxu0 0.0
    %1256 = vmatprep.subr.mxu0 0.0
    %1257 = vmatpush1.msra.mxu0 0.0
    %1258 = vmatprep.subr.mxu0 0.0
    %1259 = vmatpush1.msra.mxu0 0.0
    %1260 = vmatprep.subr.mxu0 0.0
    %1261 = vmatpush1.msra.mxu0 0.0
    %1262 = vmatprep.subr.mxu0 0.0
    %1263 = vmatpush1.msra.mxu0 0.0
    %1264 = vmatprep.subr.mxu0 0.0
    %1265 = vmatpush1.msra.mxu0 0.0
    %1266 = vmatprep.subr.mxu0 0.0
    %1267 = vmatpush1.msra.mxu0 0.0
    %1268 = vmatprep.subr.mxu0 0.0
    %1269 = vmatpush1.msra.mxu0 0.0
    %1270 = vmatprep.subr.mxu0 0.0
    %1271 = vmatpush1.msra.mxu0 0.0
    %1272 = vmatprep.subr.mxu0 0.0
    %1273 = vmatpush1.msra.mxu0 0.0
    %1274 = vmatprep.subr.mxu0 0.0
    %1275 = vmatpush1.msra.mxu0 0.0
    %1276 = vmatprep.subr.mxu0 0.0
    %1277 = vmatpush1.msra.mxu0 0.0
    %1278 = vmatprep.subr.mxu0 0.0
    %1279 = vmatpush1.msra.mxu0 0.0
    %1280 = vmatprep.subr.mxu0 0.0
    %1281 = vmatpush1.msra.mxu0 0.0
    %1282 = vmatprep.subr.mxu0 0.0
    %1283 = vmatpush1.msra.mxu0 0.0
    %1284 = vmatprep.subr.mxu0 0.0
    %1285 = vmatpush1.msra.mxu0 0.0
    %1286 = vmatprep.subr.mxu0 0.0
    %1287 = vmatpush1.msra.mxu0 0.0
    %1288 = vmatprep.subr.mxu0 0.0
    %1289 = vmatpush1.msra.mxu0 0.0
    %1290 = vmatprep.subr.mxu0 0.0
    %1291 = vmatpush1.msra.mxu0 0.0
    %1292 = vmatprep.subr.mxu0 0.0
    %1293 = vmatpush1.msra.mxu0 0.0
    %1294 = vmatprep.subr.mxu0 0.0
    %1295 = vmatpush1.msra.mxu0 0.0
    %1296 = vmatprep.subr.mxu0 0.0
    %1297 = vmatpush1.msra.mxu0 0.0
    %1298 = vmatprep.subr.mxu0 0.0
    %1299 = vmatpush1.msra.mxu0 0.0
    %1300 = vmatprep.subr.mxu0 0.0
    %1301 = vmatpush1.msra.mxu0 0.0
    %1302 = vmatprep.mubr.f32.mxu0 0.0
    %1303 = vmatmul.mubr.f32.gmra.mrb[0].mxu0 %v1227
    %v1304 = vpop.f32.mrb[0].mxu0
    %v1305 = vadd.f32 0.0, %v1304
    %v1306 = vpop.f32.mrb[0].mxu0
    %1307 = vmatprep.mubr.f32.mxu0 0.0
    %1308 = vmatmul.mubr.f32.gmra.mrb[0].mxu0 %v1230
    %v1309 = vpop.f32.mrb[0].mxu0
    %v1310 = vadd.f32 0.0, %v1309
    %v1311 = vpop.f32.mrb[0].mxu0
    %1312 = vmatprep.mubr.f32.mxu0 0.0
    %1313 = vmatmul.mubr.f32.gmra.mrb[0].mxu0 %v1233
    %v1314 = vpop.f32.mrb[0].mxu0
    %v1315 = vadd.f32 0.0, %v1314
    %v1316 = vpop.f32.mrb[0].mxu0
    %1317 = vmatprep.mubr.f32.mxu0 0.0
    %1318 = vmatmul.mubr.f32.gmra.mrb[0].mxu0 %v1236
    %v1319 = vpop.f32.mrb[0].mxu0
    %v1320 = vadd.f32 0.0, %v1319
    %v1321 = vpop.f32.mrb[0].mxu0
    %1322 = vdwg.mxu0
    %v1323 = vadd.f32 %v1205, %v1305
    %v1324 = vadd.f32 %v1206, %v1310
    %v1325 = vadd.f32 %v1207, %v1315
    %v1326 = vadd.f32 %v1208, %v1320
    %v1327 = vrot.slane %v871, 2
    %v1328 = vrot.slane %v872, 2
    %v1329 = vrot.slane %v873, 2
    %v1330 = vrot.slane %v874, 2
    %v1331 = vsel %vm745, %v1329, %v1330
    %v1332 = vsel %vm745, %v1328, %v1329
    %v1333 = vsel %vm745, %v1327, %v1328
    %v1334 = vsel %vm745, %v1330, %v1327
    %v1335 = vsel %vm282, %v1333, 0.0
    %v1336 = vsel %vm283, %v1332, 0.0
    %v1337 = vsel %vm284, %v1331, 0.0
    %v1338 = vsel %vm285, %v1334, 0.0
    %s1339 = scalar_lea.vmem [#allocation2], 288
    %v1340 = vld [vmem:[%s1339] sm:$0xff]
    %v1341 = vld [vmem:[%s1339 + $0x8] sm:$0xff]
    %v1342 = vld [vmem:[%s1339 + $0x10] sm:$0xff]
    %v1343 = vld [vmem:[%s1339 + $0x18] sm:$0xff]
    %v1345 = vsel %vm308, %v1335, 0
    %v1348 = vsel %vm308, %v1336, 0
    %v1351 = vsel %vm308, %v1337, 0
    %v1354 = vsel %vm308, %v1338, 0
    %1356 = vmatprep.subr.mxu0 0.0
    %1357 = vmatpush1.msra.mxu0 %v1340
    %1358 = vmatprep.subr.mxu0 0.0
    %1359 = vmatpush1.msra.mxu0 %v1341
    %1360 = vmatprep.subr.mxu0 0.0
    %1361 = vmatpush1.msra.mxu0 %v1342
    %1362 = vmatprep.subr.mxu0 0.0
    %1363 = vmatpush1.msra.mxu0 %v1343
    %1364 = vmatprep.subr.mxu0 0.0
    %1365 = vmatpush1.msra.mxu0 0.0
    %1366 = vmatprep.subr.mxu0 0.0
    %1367 = vmatpush1.msra.mxu0 0.0
    %1368 = vmatprep.subr.mxu0 0.0
    %1369 = vmatpush1.msra.mxu0 0.0
    %1370 = vmatprep.subr.mxu0 0.0
    %1371 = vmatpush1.msra.mxu0 0.0
    %1372 = vmatprep.subr.mxu0 0.0
    %1373 = vmatpush1.msra.mxu0 0.0
    %1374 = vmatprep.subr.mxu0 0.0
    %1375 = vmatpush1.msra.mxu0 0.0
    %1376 = vmatprep.subr.mxu0 0.0
    %1377 = vmatpush1.msra.mxu0 0.0
    %1378 = vmatprep.subr.mxu0 0.0
    %1379 = vmatpush1.msra.mxu0 0.0
    %1380 = vmatprep.subr.mxu0 0.0
    %1381 = vmatpush1.msra.mxu0 0.0
    %1382 = vmatprep.subr.mxu0 0.0
    %1383 = vmatpush1.msra.mxu0 0.0
    %1384 = vmatprep.subr.mxu0 0.0
    %1385 = vmatpush1.msra.mxu0 0.0
    %1386 = vmatprep.subr.mxu0 0.0
    %1387 = vmatpush1.msra.mxu0 0.0
    %1388 = vmatprep.subr.mxu0 0.0
    %1389 = vmatpush1.msra.mxu0 0.0
    %1390 = vmatprep.subr.mxu0 0.0
    %1391 = vmatpush1.msra.mxu0 0.0
    %1392 = vmatprep.subr.mxu0 0.0
    %1393 = vmatpush1.msra.mxu0 0.0
    %1394 = vmatprep.subr.mxu0 0.0
    %1395 = vmatpush1.msra.mxu0 0.0
    %1396 = vmatprep.subr.mxu0 0.0
    %1397 = vmatpush1.msra.mxu0 0.0
    %1398 = vmatprep.subr.mxu0 0.0
    %1399 = vmatpush1.msra.mxu0 0.0
    %1400 = vmatprep.subr.mxu0 0.0
    %1401 = vmatpush1.msra.mxu0 0.0
    %1402 = vmatprep.subr.mxu0 0.0
    %1403 = vmatpush1.msra.mxu0 0.0
    %1404 = vmatprep.subr.mxu0 0.0
    %1405 = vmatpush1.msra.mxu0 0.0
    %1406 = vmatprep.subr.mxu0 0.0
    %1407 = vmatpush1.msra.mxu0 0.0
    %1408 = vmatprep.subr.mxu0 0.0
    %1409 = vmatpush1.msra.mxu0 0.0
    %1410 = vmatprep.subr.mxu0 0.0
    %1411 = vmatpush1.msra.mxu0 0.0
    %1412 = vmatprep.subr.mxu0 0.0
    %1413 = vmatpush1.msra.mxu0 0.0
    %1414 = vmatprep.subr.mxu0 0.0
    %1415 = vmatpush1.msra.mxu0 0.0
    %1416 = vmatprep.subr.mxu0 0.0
    %1417 = vmatpush1.msra.mxu0 0.0
    %1418 = vmatprep.subr.mxu0 0.0
    %1419 = vmatpush1.msra.mxu0 0.0
    %1420 = vmatprep.mubr.f32.mxu0 0.0
    %1421 = vmatmul.mubr.f32.gmra.mrb[0].mxu0 %v1345
    %v1422 = vpop.f32.mrb[0].mxu0
    %v1423 = vadd.f32 0.0, %v1422
    %v1424 = vpop.f32.mrb[0].mxu0
    %1425 = vmatprep.mubr.f32.mxu0 0.0
    %1426 = vmatmul.mubr.f32.gmra.mrb[0].mxu0 %v1348
    %v1427 = vpop.f32.mrb[0].mxu0
    %v1428 = vadd.f32 0.0, %v1427
    %v1429 = vpop.f32.mrb[0].mxu0
    %1430 = vmatprep.mubr.f32.mxu0 0.0
    %1431 = vmatmul.mubr.f32.gmra.mrb[0].mxu0 %v1351
    %v1432 = vpop.f32.mrb[0].mxu0
    %v1433 = vadd.f32 0.0, %v1432
    %v1434 = vpop.f32.mrb[0].mxu0
    %1435 = vmatprep.mubr.f32.mxu0 0.0
    %1436 = vmatmul.mubr.f32.gmra.mrb[0].mxu0 %v1354
    %v1437 = vpop.f32.mrb[0].mxu0
    %v1438 = vadd.f32 0.0, %v1437
    %v1439 = vpop.f32.mrb[0].mxu0
    %1440 = vdwg.mxu0
    %v1441 = vadd.f32 %v1323, %v1423
    %v1442 = vadd.f32 %v1324, %v1428
    %v1443 = vadd.f32 %v1325, %v1433
    %v1444 = vadd.f32 %v1326, %v1438
    %s1445 = scalar_lea.vmem %s3, 1
    %v1446 = vld [vmem:[%s1445] sm:$0x1]
    %v1448 = vlaneseq
    %v1449 = vshrl.u32 %v1448, 7
    %v1450 = vsub.s32 0, %v1449
    %v1451 = vrot.slane %v1446, %v1450
    %v1453 = vadd.f32 %v1441, %v1451
    %v1454 = vadd.f32 %v1442, %v1451
    %v1455 = vadd.f32 %v1443, %v1451
    %v1456 = vadd.f32 %v1444, %v1451
    %v1457 = vmax.f32 %v1453, 0.0
    %v1458 = vmax.f32 %v1454, 0.0
    %v1459 = vmax.f32 %v1455, 0.0
    %v1460 = vmax.f32 %v1456, 0.0
    %s1461 = scalar_lea.vmem [#allocation2], 384
    %v1462 = vld [vmem:[%s1461] sm:$0xff]
    %v1463 = vld [vmem:[%s1461 + $0x8] sm:$0xff]
    %v1464 = vld [vmem:[%s1461 + $0x10] sm:$0xff]
    %v1465 = vld [vmem:[%s1461 + $0x18] sm:$0xff]
    %v1466 = vrot.slane %v1457, 6
    %v1467 = vrot.slane %v1458, 6
    %v1468 = vrot.slane %v1459, 6
    %v1469 = vrot.slane %v1460, 6
    %v1470 = vsel %vm295, %v1468, %v1469
    %v1471 = vsel %vm295, %v1467, %v1468
    %v1472 = vsel %vm295, %v1466, %v1467
    %v1473 = vsel %vm295, %v1469, %v1466
    %v1474 = vsel %vm246, %v1473, 0.0
    %v1475 = vsel %vm247, %v1472, 0.0
    %v1476 = vsel %vm248, %v1471, 0.0
    %v1477 = vsel %vm249, %v1470, 0.0
    %s1478 = scalar_lea.vmem [#allocation2], 320
    %v1479 = vld [vmem:[%s1478] sm:$0xff]
    %v1480 = vld [vmem:[%s1478 + $0x8] sm:$0xff]
    %v1481 = vld [vmem:[%s1478 + $0x10] sm:$0xff]
    %v1482 = vld [vmem:[%s1478 + $0x18] sm:$0xff]
    %v1484 = vsel %vm308, %v1474, 0
    %v1487 = vsel %vm308, %v1475, 0
    %v1490 = vsel %vm308, %v1476, 0
    %v1493 = vsel %vm308, %v1477, 0
    %1495 = vmatprep.subr.mxu0 0.0
    %1496 = vmatpush1.msra.mxu0 %v1479
    %1497 = vmatprep.subr.mxu0 0.0
    %1498 = vmatpush1.msra.mxu0 %v1480
    %1499 = vmatprep.subr.mxu0 0.0
    %1500 = vmatpush1.msra.mxu0 %v1481
    %1501 = vmatprep.subr.mxu0 0.0
    %1502 = vmatpush1.msra.mxu0 %v1482
    %1503 = vmatprep.subr.mxu0 0.0
    %1504 = vmatpush1.msra.mxu0 0.0
    %1505 = vmatprep.subr.mxu0 0.0
    %1506 = vmatpush1.msra.mxu0 0.0
    %1507 = vmatprep.subr.mxu0 0.0
    %1508 = vmatpush1.msra.mxu0 0.0
    %1509 = vmatprep.subr.mxu0 0.0
    %1510 = vmatpush1.msra.mxu0 0.0
    %1511 = vmatprep.subr.mxu0 0.0
    %1512 = vmatpush1.msra.mxu0 0.0
    %1513 = vmatprep.subr.mxu0 0.0
    %1514 = vmatpush1.msra.mxu0 0.0
    %1515 = vmatprep.subr.mxu0 0.0
    %1516 = vmatpush1.msra.mxu0 0.0
    %1517 = vmatprep.subr.mxu0 0.0
    %1518 = vmatpush1.msra.mxu0 0.0
    %1519 = vmatprep.subr.mxu0 0.0
    %1520 = vmatpush1.msra.mxu0 0.0
    %1521 = vmatprep.subr.mxu0 0.0
    %1522 = vmatpush1.msra.mxu0 0.0
    %1523 = vmatprep.subr.mxu0 0.0
    %1524 = vmatpush1.msra.mxu0 0.0
    %1525 = vmatprep.subr.mxu0 0.0
    %1526 = vmatpush1.msra.mxu0 0.0
    %1527 = vmatprep.subr.mxu0 0.0
    %1528 = vmatpush1.msra.mxu0 0.0
    %1529 = vmatprep.subr.mxu0 0.0
    %1530 = vmatpush1.msra.mxu0 0.0
    %1531 = vmatprep.subr.mxu0 0.0
    %1532 = vmatpush1.msra.mxu0 0.0
    %1533 = vmatprep.subr.mxu0 0.0
    %1534 = vmatpush1.msra.mxu0 0.0
    %1535 = vmatprep.subr.mxu0 0.0
    %1536 = vmatpush1.msra.mxu0 0.0
    %1537 = vmatprep.subr.mxu0 0.0
    %1538 = vmatpush1.msra.mxu0 0.0
    %1539 = vmatprep.subr.mxu0 0.0
    %1540 = vmatpush1.msra.mxu0 0.0
    %1541 = vmatprep.subr.mxu0 0.0
    %1542 = vmatpush1.msra.mxu0 0.0
    %1543 = vmatprep.subr.mxu0 0.0
    %1544 = vmatpush1.msra.mxu0 0.0
    %1545 = vmatprep.subr.mxu0 0.0
    %1546 = vmatpush1.msra.mxu0 0.0
    %1547 = vmatprep.subr.mxu0 0.0
    %1548 = vmatpush1.msra.mxu0 0.0
    %1549 = vmatprep.subr.mxu0 0.0
    %1550 = vmatpush1.msra.mxu0 0.0
    %1551 = vmatprep.subr.mxu0 0.0
    %1552 = vmatpush1.msra.mxu0 0.0
    %1553 = vmatprep.subr.mxu0 0.0
    %1554 = vmatpush1.msra.mxu0 0.0
    %1555 = vmatprep.subr.mxu0 0.0
    %1556 = vmatpush1.msra.mxu0 0.0
    %1557 = vmatprep.subr.mxu0 0.0
    %1558 = vmatpush1.msra.mxu0 0.0
    %1559 = vmatprep.mubr.f32.mxu0 0.0
    %1560 = vmatmul.mubr.f32.gmra.mrb[0].mxu0 %v1484
    %v1561 = vpop.f32.mrb[0].mxu0
    %v1562 = vadd.f32 0.0, %v1561
    %v1563 = vpop.f32.mrb[0].mxu0
    %1564 = vmatprep.mubr.f32.mxu0 0.0
    %1565 = vmatmul.mubr.f32.gmra.mrb[0].mxu0 %v1487
    %v1566 = vpop.f32.mrb[0].mxu0
    %v1567 = vadd.f32 0.0, %v1566
    %v1568 = vpop.f32.mrb[0].mxu0
    %1569 = vmatprep.mubr.f32.mxu0 0.0
    %1570 = vmatmul.mubr.f32.gmra.mrb[0].mxu0 %v1490
    %v1571 = vpop.f32.mrb[0].mxu0
    %v1572 = vadd.f32 0.0, %v1571
    %v1573 = vpop.f32.mrb[0].mxu0
    %1574 = vmatprep.mubr.f32.mxu0 0.0
    %1575 = vmatmul.mubr.f32.gmra.mrb[0].mxu0 %v1493
    %v1576 = vpop.f32.mrb[0].mxu0
    %v1577 = vadd.f32 0.0, %v1576
    %v1578 = vpop.f32.mrb[0].mxu0
    %1579 = vdwg.mxu0
    %v1581 = vsel %vm308, %v1457, 0
    %v1584 = vsel %vm308, %v1458, 0
    %v1587 = vsel %vm308, %v1459, 0
    %v1590 = vsel %vm308, %v1460, 0
    %1592 = vmatprep.subr.mxu0 0.0
    %1593 = vmatpush1.msra.mxu0 %v1462
    %1594 = vmatprep.subr.mxu0 0.0
    %1595 = vmatpush1.msra.mxu0 %v1463
    %1596 = vmatprep.subr.mxu0 0.0
    %1597 = vmatpush1.msra.mxu0 %v1464
    %1598 = vmatprep.subr.mxu0 0.0
    %1599 = vmatpush1.msra.mxu0 %v1465
    %1600 = vmatprep.subr.mxu0 0.0
    %1601 = vmatpush1.msra.mxu0 0.0
    %1602 = vmatprep.subr.mxu0 0.0
    %1603 = vmatpush1.msra.mxu0 0.0
    %1604 = vmatprep.subr.mxu0 0.0
    %1605 = vmatpush1.msra.mxu0 0.0
    %1606 = vmatprep.subr.mxu0 0.0
    %1607 = vmatpush1.msra.mxu0 0.0
    %1608 = vmatprep.subr.mxu0 0.0
    %1609 = vmatpush1.msra.mxu0 0.0
    %1610 = vmatprep.subr.mxu0 0.0
    %1611 = vmatpush1.msra.mxu0 0.0
    %1612 = vmatprep.subr.mxu0 0.0
    %1613 = vmatpush1.msra.mxu0 0.0
    %1614 = vmatprep.subr.mxu0 0.0
    %1615 = vmatpush1.msra.mxu0 0.0
    %1616 = vmatprep.subr.mxu0 0.0
    %1617 = vmatpush1.msra.mxu0 0.0
    %1618 = vmatprep.subr.mxu0 0.0
    %1619 = vmatpush1.msra.mxu0 0.0
    %1620 = vmatprep.subr.mxu0 0.0
    %1621 = vmatpush1.msra.mxu0 0.0
    %1622 = vmatprep.subr.mxu0 0.0
    %1623 = vmatpush1.msra.mxu0 0.0
    %1624 = vmatprep.subr.mxu0 0.0
    %1625 = vmatpush1.msra.mxu0 0.0
    %1626 = vmatprep.subr.mxu0 0.0
    %1627 = vmatpush1.msra.mxu0 0.0
    %1628 = vmatprep.subr.mxu0 0.0
    %1629 = vmatpush1.msra.mxu0 0.0
    %1630 = vmatprep.subr.mxu0 0.0
    %1631 = vmatpush1.msra.mxu0 0.0
    %1632 = vmatprep.subr.mxu0 0.0
    %1633 = vmatpush1.msra.mxu0 0.0
    %1634 = vmatprep.subr.mxu0 0.0
    %1635 = vmatpush1.msra.mxu0 0.0
    %1636 = vmatprep.subr.mxu0 0.0
    %1637 = vmatpush1.msra.mxu0 0.0
    %1638 = vmatprep.subr.mxu0 0.0
    %1639 = vmatpush1.msra.mxu0 0.0
    %1640 = vmatprep.subr.mxu0 0.0
    %1641 = vmatpush1.msra.mxu0 0.0
    %1642 = vmatprep.subr.mxu0 0.0
    %1643 = vmatpush1.msra.mxu0 0.0
    %1644 = vmatprep.subr.mxu0 0.0
    %1645 = vmatpush1.msra.mxu0 0.0
    %1646 = vmatprep.subr.mxu0 0.0
    %1647 = vmatpush1.msra.mxu0 0.0
    %1648 = vmatprep.subr.mxu0 0.0
    %1649 = vmatpush1.msra.mxu0 0.0
    %1650 = vmatprep.subr.mxu0 0.0
    %1651 = vmatpush1.msra.mxu0 0.0
    %1652 = vmatprep.subr.mxu0 0.0
    %1653 = vmatpush1.msra.mxu0 0.0
    %1654 = vmatprep.subr.mxu0 0.0
    %1655 = vmatpush1.msra.mxu0 0.0
    %1656 = vmatprep.mubr.f32.mxu0 0.0
    %1657 = vmatmul.mubr.f32.gmra.mrb[0].mxu0 %v1581
    %v1658 = vpop.f32.mrb[0].mxu0
    %v1659 = vadd.f32 %v1562, %v1658
    %v1660 = vpop.f32.mrb[0].mxu0
    %1661 = vmatprep.mubr.f32.mxu0 0.0
    %1662 = vmatmul.mubr.f32.gmra.mrb[0].mxu0 %v1584
    %v1663 = vpop.f32.mrb[0].mxu0
    %v1664 = vadd.f32 %v1567, %v1663
    %v1665 = vpop.f32.mrb[0].mxu0
    %1666 = vmatprep.mubr.f32.mxu0 0.0
    %1667 = vmatmul.mubr.f32.gmra.mrb[0].mxu0 %v1587
    %v1668 = vpop.f32.mrb[0].mxu0
    %v1669 = vadd.f32 %v1572, %v1668
    %v1670 = vpop.f32.mrb[0].mxu0
    %1671 = vmatprep.mubr.f32.mxu0 0.0
    %1672 = vmatmul.mubr.f32.gmra.mrb[0].mxu0 %v1590
    %v1673 = vpop.f32.mrb[0].mxu0
    %v1674 = vadd.f32 %v1577, %v1673
    %v1675 = vpop.f32.mrb[0].mxu0
    %1676 = vdwg.mxu0
    %v1677 = vrot.slane %v1457, 7
    %v1678 = vrot.slane %v1458, 7
    %v1679 = vrot.slane %v1459, 7
    %v1680 = vrot.slane %v1460, 7
    %v1681 = vsel %vm507, %v1679, %v1680
    %v1682 = vsel %vm507, %v1678, %v1679
    %v1683 = vsel %vm507, %v1677, %v1678
    %v1684 = vsel %vm507, %v1680, %v1677
    %v1685 = vsel %vm258, %v1684, 0.0
    %v1686 = vsel %vm259, %v1683, 0.0
    %v1687 = vsel %vm260, %v1682, 0.0
    %v1688 = vsel %vm261, %v1681, 0.0
    %s1689 = scalar_lea.vmem [#allocation2], 352
    %v1690 = vld [vmem:[%s1689] sm:$0xff]
    %v1691 = vld [vmem:[%s1689 + $0x8] sm:$0xff]
    %v1692 = vld [vmem:[%s1689 + $0x10] sm:$0xff]
    %v1693 = vld [vmem:[%s1689 + $0x18] sm:$0xff]
    %v1695 = vsel %vm308, %v1685, 0
    %v1698 = vsel %vm308, %v1686, 0
    %v1701 = vsel %vm308, %v1687, 0
    %v1704 = vsel %vm308, %v1688, 0
    %1706 = vmatprep.subr.mxu0 0.0
    %1707 = vmatpush1.msra.mxu0 %v1690
    %1708 = vmatprep.subr.mxu0 0.0
    %1709 = vmatpush1.msra.mxu0 %v1691
    %1710 = vmatprep.subr.mxu0 0.0
    %1711 = vmatpush1.msra.mxu0 %v1692
    %1712 = vmatprep.subr.mxu0 0.0
    %1713 = vmatpush1.msra.mxu0 %v1693
    %1714 = vmatprep.subr.mxu0 0.0
    %1715 = vmatpush1.msra.mxu0 0.0
    %1716 = vmatprep.subr.mxu0 0.0
    %1717 = vmatpush1.msra.mxu0 0.0
    %1718 = vmatprep.subr.mxu0 0.0
    %1719 = vmatpush1.msra.mxu0 0.0
    %1720 = vmatprep.subr.mxu0 0.0
    %1721 = vmatpush1.msra.mxu0 0.0
    %1722 = vmatprep.subr.mxu0 0.0
    %1723 = vmatpush1.msra.mxu0 0.0
    %1724 = vmatprep.subr.mxu0 0.0
    %1725 = vmatpush1.msra.mxu0 0.0
    %1726 = vmatprep.subr.mxu0 0.0
    %1727 = vmatpush1.msra.mxu0 0.0
    %1728 = vmatprep.subr.mxu0 0.0
    %1729 = vmatpush1.msra.mxu0 0.0
    %1730 = vmatprep.subr.mxu0 0.0
    %1731 = vmatpush1.msra.mxu0 0.0
    %1732 = vmatprep.subr.mxu0 0.0
    %1733 = vmatpush1.msra.mxu0 0.0
    %1734 = vmatprep.subr.mxu0 0.0
    %1735 = vmatpush1.msra.mxu0 0.0
    %1736 = vmatprep.subr.mxu0 0.0
    %1737 = vmatpush1.msra.mxu0 0.0
    %1738 = vmatprep.subr.mxu0 0.0
    %1739 = vmatpush1.msra.mxu0 0.0
    %1740 = vmatprep.subr.mxu0 0.0
    %1741 = vmatpush1.msra.mxu0 0.0
    %1742 = vmatprep.subr.mxu0 0.0
    %1743 = vmatpush1.msra.mxu0 0.0
    %1744 = vmatprep.subr.mxu0 0.0
    %1745 = vmatpush1.msra.mxu0 0.0
    %1746 = vmatprep.subr.mxu0 0.0
    %1747 = vmatpush1.msra.mxu0 0.0
    %1748 = vmatprep.subr.mxu0 0.0
    %1749 = vmatpush1.msra.mxu0 0.0
    %1750 = vmatprep.subr.mxu0 0.0
    %1751 = vmatpush1.msra.mxu0 0.0
    %1752 = vmatprep.subr.mxu0 0.0
    %1753 = vmatpush1.msra.mxu0 0.0
    %1754 = vmatprep.subr.mxu0 0.0
    %1755 = vmatpush1.msra.mxu0 0.0
    %1756 = vmatprep.subr.mxu0 0.0
    %1757 = vmatpush1.msra.mxu0 0.0
    %1758 = vmatprep.subr.mxu0 0.0
    %1759 = vmatpush1.msra.mxu0 0.0
    %1760 = vmatprep.subr.mxu0 0.0
    %1761 = vmatpush1.msra.mxu0 0.0
    %1762 = vmatprep.subr.mxu0 0.0
    %1763 = vmatpush1.msra.mxu0 0.0
    %1764 = vmatprep.subr.mxu0 0.0
    %1765 = vmatpush1.msra.mxu0 0.0
    %1766 = vmatprep.subr.mxu0 0.0
    %1767 = vmatpush1.msra.mxu0 0.0
    %1768 = vmatprep.subr.mxu0 0.0
    %1769 = vmatpush1.msra.mxu0 0.0
    %1770 = vmatprep.mubr.f32.mxu0 0.0
    %1771 = vmatmul.mubr.f32.gmra.mrb[0].mxu0 %v1695
    %v1772 = vpop.f32.mrb[0].mxu0
    %v1773 = vadd.f32 0.0, %v1772
    %v1774 = vpop.f32.mrb[0].mxu0
    %1775 = vmatprep.mubr.f32.mxu0 0.0
    %1776 = vmatmul.mubr.f32.gmra.mrb[0].mxu0 %v1698
    %v1777 = vpop.f32.mrb[0].mxu0
    %v1778 = vadd.f32 0.0, %v1777
    %v1779 = vpop.f32.mrb[0].mxu0
    %1780 = vmatprep.mubr.f32.mxu0 0.0
    %1781 = vmatmul.mubr.f32.gmra.mrb[0].mxu0 %v1701
    %v1782 = vpop.f32.mrb[0].mxu0
    %v1783 = vadd.f32 0.0, %v1782
    %v1784 = vpop.f32.mrb[0].mxu0
    %1785 = vmatprep.mubr.f32.mxu0 0.0
    %1786 = vmatmul.mubr.f32.gmra.mrb[0].mxu0 %v1704
    %v1787 = vpop.f32.mrb[0].mxu0
    %v1788 = vadd.f32 0.0, %v1787
    %v1789 = vpop.f32.mrb[0].mxu0
    %1790 = vdwg.mxu0
    %v1791 = vadd.f32 %v1659, %v1773
    %v1792 = vadd.f32 %v1664, %v1778
    %v1793 = vadd.f32 %v1669, %v1783
    %v1794 = vadd.f32 %v1674, %v1788
    %v1795 = vrot.slane %v1457, 1
    %v1796 = vrot.slane %v1458, 1
    %v1797 = vrot.slane %v1459, 1
    %v1798 = vrot.slane %v1460, 1
    %v1799 = vsel %vm626, %v1797, %v1798
    %v1800 = vsel %vm626, %v1796, %v1797
    %v1801 = vsel %vm626, %v1795, %v1796
    %v1802 = vsel %vm626, %v1798, %v1795
    %v1803 = vsel %vm270, %v1801, 0.0
    %v1804 = vsel %vm271, %v1800, 0.0
    %v1805 = vsel %vm272, %v1799, 0.0
    %v1806 = vsel %vm273, %v1802, 0.0
    %s1807 = scalar_lea.vmem [#allocation2], 416
    %v1808 = vld [vmem:[%s1807] sm:$0xff]
    %v1809 = vld [vmem:[%s1807 + $0x8] sm:$0xff]
    %v1810 = vld [vmem:[%s1807 + $0x10] sm:$0xff]
    %v1811 = vld [vmem:[%s1807 + $0x18] sm:$0xff]
    %v1813 = vsel %vm308, %v1803, 0
    %v1816 = vsel %vm308, %v1804, 0
    %v1819 = vsel %vm308, %v1805, 0
    %v1822 = vsel %vm308, %v1806, 0
    %1824 = vmatprep.subr.mxu0 0.0
    %1825 = vmatpush1.msra.mxu0 %v1808
    %1826 = vmatprep.subr.mxu0 0.0
    %1827 = vmatpush1.msra.mxu0 %v1809
    %1828 = vmatprep.subr.mxu0 0.0
    %1829 = vmatpush1.msra.mxu0 %v1810
    %1830 = vmatprep.subr.mxu0 0.0
    %1831 = vmatpush1.msra.mxu0 %v1811
    %1832 = vmatprep.subr.mxu0 0.0
    %1833 = vmatpush1.msra.mxu0 0.0
    %1834 = vmatprep.subr.mxu0 0.0
    %1835 = vmatpush1.msra.mxu0 0.0
    %1836 = vmatprep.subr.mxu0 0.0
    %1837 = vmatpush1.msra.mxu0 0.0
    %1838 = vmatprep.subr.mxu0 0.0
    %1839 = vmatpush1.msra.mxu0 0.0
    %1840 = vmatprep.subr.mxu0 0.0
    %1841 = vmatpush1.msra.mxu0 0.0
    %1842 = vmatprep.subr.mxu0 0.0
    %1843 = vmatpush1.msra.mxu0 0.0
    %1844 = vmatprep.subr.mxu0 0.0
    %1845 = vmatpush1.msra.mxu0 0.0
    %1846 = vmatprep.subr.mxu0 0.0
    %1847 = vmatpush1.msra.mxu0 0.0
    %1848 = vmatprep.subr.mxu0 0.0
    %1849 = vmatpush1.msra.mxu0 0.0
    %1850 = vmatprep.subr.mxu0 0.0
    %1851 = vmatpush1.msra.mxu0 0.0
    %1852 = vmatprep.subr.mxu0 0.0
    %1853 = vmatpush1.msra.mxu0 0.0
    %1854 = vmatprep.subr.mxu0 0.0
    %1855 = vmatpush1.msra.mxu0 0.0
    %1856 = vmatprep.subr.mxu0 0.0
    %1857 = vmatpush1.msra.mxu0 0.0
    %1858 = vmatprep.subr.mxu0 0.0
    %1859 = vmatpush1.msra.mxu0 0.0
    %1860 = vmatprep.subr.mxu0 0.0
    %1861 = vmatpush1.msra.mxu0 0.0
    %1862 = vmatprep.subr.mxu0 0.0
    %1863 = vmatpush1.msra.mxu0 0.0
    %1864 = vmatprep.subr.mxu0 0.0
    %1865 = vmatpush1.msra.mxu0 0.0
    %1866 = vmatprep.subr.mxu0 0.0
    %1867 = vmatpush1.msra.mxu0 0.0
    %1868 = vmatprep.subr.mxu0 0.0
    %1869 = vmatpush1.msra.mxu0 0.0
    %1870 = vmatprep.subr.mxu0 0.0
    %1871 = vmatpush1.msra.mxu0 0.0
    %1872 = vmatprep.subr.mxu0 0.0
    %1873 = vmatpush1.msra.mxu0 0.0
    %1874 = vmatprep.subr.mxu0 0.0
    %1875 = vmatpush1.msra.mxu0 0.0
    %1876 = vmatprep.subr.mxu0 0.0
    %1877 = vmatpush1.msra.mxu0 0.0
    %1878 = vmatprep.subr.mxu0 0.0
    %1879 = vmatpush1.msra.mxu0 0.0
    %1880 = vmatprep.subr.mxu0 0.0
    %1881 = vmatpush1.msra.mxu0 0.0
    %1882 = vmatprep.subr.mxu0 0.0
    %1883 = vmatpush1.msra.mxu0 0.0
    %1884 = vmatprep.subr.mxu0 0.0
    %1885 = vmatpush1.msra.mxu0 0.0
    %1886 = vmatprep.subr.mxu0 0.0
    %1887 = vmatpush1.msra.mxu0 0.0
    %1888 = vmatprep.mubr.f32.mxu0 0.0
    %1889 = vmatmul.mubr.f32.gmra.mrb[0].mxu0 %v1813
    %v1890 = vpop.f32.mrb[0].mxu0
    %v1891 = vadd.f32 0.0, %v1890
    %v1892 = vpop.f32.mrb[0].mxu0
    %1893 = vmatprep.mubr.f32.mxu0 0.0
    %1894 = vmatmul.mubr.f32.gmra.mrb[0].mxu0 %v1816
    %v1895 = vpop.f32.mrb[0].mxu0
    %v1896 = vadd.f32 0.0, %v1895
    %v1897 = vpop.f32.mrb[0].mxu0
    %1898 = vmatprep.mubr.f32.mxu0 0.0
    %1899 = vmatmul.mubr.f32.gmra.mrb[0].mxu0 %v1819
    %v1900 = vpop.f32.mrb[0].mxu0
    %v1901 = vadd.f32 0.0, %v1900
    %v1902 = vpop.f32.mrb[0].mxu0
    %1903 = vmatprep.mubr.f32.mxu0 0.0
    %1904 = vmatmul.mubr.f32.gmra.mrb[0].mxu0 %v1822
    %v1905 = vpop.f32.mrb[0].mxu0
    %v1906 = vadd.f32 0.0, %v1905
    %v1907 = vpop.f32.mrb[0].mxu0
    %1908 = vdwg.mxu0
    %v1909 = vadd.f32 %v1791, %v1891
    %v1910 = vadd.f32 %v1792, %v1896
    %v1911 = vadd.f32 %v1793, %v1901
    %v1912 = vadd.f32 %v1794, %v1906
    %v1913 = vrot.slane %v1457, 2
    %v1914 = vrot.slane %v1458, 2
    %v1915 = vrot.slane %v1459, 2
    %v1916 = vrot.slane %v1460, 2
    %v1917 = vsel %vm745, %v1915, %v1916
    %v1918 = vsel %vm745, %v1914, %v1915
    %v1919 = vsel %vm745, %v1913, %v1914
    %v1920 = vsel %vm745, %v1916, %v1913
    %v1921 = vsel %vm282, %v1919, 0.0
    %v1922 = vsel %vm283, %v1918, 0.0
    %v1923 = vsel %vm284, %v1917, 0.0
    %v1924 = vsel %vm285, %v1920, 0.0
    %s1925 = scalar_lea.vmem [#allocation2], 448
    %v1926 = vld [vmem:[%s1925] sm:$0xff]
    %v1927 = vld [vmem:[%s1925 + $0x8] sm:$0xff]
    %v1928 = vld [vmem:[%s1925 + $0x10] sm:$0xff]
    %v1929 = vld [vmem:[%s1925 + $0x18] sm:$0xff]
    %v1931 = vsel %vm308, %v1921, 0
    %v1934 = vsel %vm308, %v1922, 0
    %v1937 = vsel %vm308, %v1923, 0
    %v1940 = vsel %vm308, %v1924, 0
    %1942 = vmatprep.subr.mxu0 0.0
    %1943 = vmatpush1.msra.mxu0 %v1926
    %1944 = vmatprep.subr.mxu0 0.0
    %1945 = vmatpush1.msra.mxu0 %v1927
    %1946 = vmatprep.subr.mxu0 0.0
    %1947 = vmatpush1.msra.mxu0 %v1928
    %1948 = vmatprep.subr.mxu0 0.0
    %1949 = vmatpush1.msra.mxu0 %v1929
    %1950 = vmatprep.subr.mxu0 0.0
    %1951 = vmatpush1.msra.mxu0 0.0
    %1952 = vmatprep.subr.mxu0 0.0
    %1953 = vmatpush1.msra.mxu0 0.0
    %1954 = vmatprep.subr.mxu0 0.0
    %1955 = vmatpush1.msra.mxu0 0.0
    %1956 = vmatprep.subr.mxu0 0.0
    %1957 = vmatpush1.msra.mxu0 0.0
    %1958 = vmatprep.subr.mxu0 0.0
    %1959 = vmatpush1.msra.mxu0 0.0
    %1960 = vmatprep.subr.mxu0 0.0
    %1961 = vmatpush1.msra.mxu0 0.0
    %1962 = vmatprep.subr.mxu0 0.0
    %1963 = vmatpush1.msra.mxu0 0.0
    %1964 = vmatprep.subr.mxu0 0.0
    %1965 = vmatpush1.msra.mxu0 0.0
    %1966 = vmatprep.subr.mxu0 0.0
    %1967 = vmatpush1.msra.mxu0 0.0
    %1968 = vmatprep.subr.mxu0 0.0
    %1969 = vmatpush1.msra.mxu0 0.0
    %1970 = vmatprep.subr.mxu0 0.0
    %1971 = vmatpush1.msra.mxu0 0.0
    %1972 = vmatprep.subr.mxu0 0.0
    %1973 = vmatpush1.msra.mxu0 0.0
    %1974 = vmatprep.subr.mxu0 0.0
    %1975 = vmatpush1.msra.mxu0 0.0
    %1976 = vmatprep.subr.mxu0 0.0
    %1977 = vmatpush1.msra.mxu0 0.0
    %1978 = vmatprep.subr.mxu0 0.0
    %1979 = vmatpush1.msra.mxu0 0.0
    %1980 = vmatprep.subr.mxu0 0.0
    %1981 = vmatpush1.msra.mxu0 0.0
    %1982 = vmatprep.subr.mxu0 0.0
    %1983 = vmatpush1.msra.mxu0 0.0
    %1984 = vmatprep.subr.mxu0 0.0
    %1985 = vmatpush1.msra.mxu0 0.0
    %1986 = vmatprep.subr.mxu0 0.0
    %1987 = vmatpush1.msra.mxu0 0.0
    %1988 = vmatprep.subr.mxu0 0.0
    %1989 = vmatpush1.msra.mxu0 0.0
    %1990 = vmatprep.subr.mxu0 0.0
    %1991 = vmatpush1.msra.mxu0 0.0
    %1992 = vmatprep.subr.mxu0 0.0
    %1993 = vmatpush1.msra.mxu0 0.0
    %1994 = vmatprep.subr.mxu0 0.0
    %1995 = vmatpush1.msra.mxu0 0.0
    %1996 = vmatprep.subr.mxu0 0.0
    %1997 = vmatpush1.msra.mxu0 0.0
    %1998 = vmatprep.subr.mxu0 0.0
    %1999 = vmatpush1.msra.mxu0 0.0
    %2000 = vmatprep.subr.mxu0 0.0
    %2001 = vmatpush1.msra.mxu0 0.0
    %2002 = vmatprep.subr.mxu0 0.0
    %2003 = vmatpush1.msra.mxu0 0.0
    %2004 = vmatprep.subr.mxu0 0.0
    %2005 = vmatpush1.msra.mxu0 0.0
    %2006 = vmatprep.mubr.f32.mxu0 0.0
    %2007 = vmatmul.mubr.f32.gmra.mrb[0].mxu0 %v1931
    %v2008 = vpop.f32.mrb[0].mxu0
    %v2009 = vadd.f32 0.0, %v2008
    %v2010 = vpop.f32.mrb[0].mxu0
    %2011 = vmatprep.mubr.f32.mxu0 0.0
    %2012 = vmatmul.mubr.f32.gmra.mrb[0].mxu0 %v1934
    %v2013 = vpop.f32.mrb[0].mxu0
    %v2014 = vadd.f32 0.0, %v2013
    %v2015 = vpop.f32.mrb[0].mxu0
    %2016 = vmatprep.mubr.f32.mxu0 0.0
    %2017 = vmatmul.mubr.f32.gmra.mrb[0].mxu0 %v1937
    %v2018 = vpop.f32.mrb[0].mxu0
    %v2019 = vadd.f32 0.0, %v2018
    %v2020 = vpop.f32.mrb[0].mxu0
    %2021 = vmatprep.mubr.f32.mxu0 0.0
    %2022 = vmatmul.mubr.f32.gmra.mrb[0].mxu0 %v1940
    %v2023 = vpop.f32.mrb[0].mxu0
    %v2024 = vadd.f32 0.0, %v2023
    %v2025 = vpop.f32.mrb[0].mxu0
    %2026 = vdwg.mxu0
    %v2027 = vadd.f32 %v1909, %v2009
    %v2028 = vadd.f32 %v1910, %v2014
    %v2029 = vadd.f32 %v1911, %v2019
    %v2030 = vadd.f32 %v1912, %v2024
    %s2031 = scalar_lea.vmem %s3, 2
    %v2032 = vld [vmem:[%s2031] sm:$0x1]
    %v2034 = vlaneseq
    %v2035 = vshrl.u32 %v2034, 7
    %v2036 = vsub.s32 0, %v2035
    %v2037 = vrot.slane %v2032, %v2036
    %v2039 = vadd.f32 %v2027, %v2037
    %v2040 = vadd.f32 %v2028, %v2037
    %v2041 = vadd.f32 %v2029, %v2037
    %v2042 = vadd.f32 %v2030, %v2037
    %v2043 = vmax.f32 %v2039, 0.0
    %v2044 = vmax.f32 %v2040, 0.0
    %v2045 = vmax.f32 %v2041, 0.0
    %v2046 = vmax.f32 %v2042, 0.0
    %v2047 = vmul.u32 %v186, 4
    %v2048 = vld [vmem:[%s5] sm:$0x1]
    %v2050 = vlaneseq
    %v2051 = vshrl.u32 %v2050, 7
    %v2052 = vsub.s32 0, %v2051
    %v2053 = vrot.slane %v2048, %v2052
    %v2055 = vadd.f32 %v2053, 0.0
    %vm2056 = vcmp.eq.s32.totalorder %v57, %v2047
    %v2057 = vsel %vm2056, 1, 0
    %v2058 = vcvt.s32.f32 %v2057
    %v2060 = vsel %vm308, %v2058, 0
    %2062 = vmatprep.subr.mxu0 0.0
    %2063 = vmatpush1.msra.mxu0 %v2043
    %2064 = vmatprep.subr.mxu0 0.0
    %2065 = vmatpush1.msra.mxu0 %v2044
    %2066 = vmatprep.subr.mxu0 0.0
    %2067 = vmatpush1.msra.mxu0 %v2045
    %2068 = vmatprep.subr.mxu0 0.0
    %2069 = vmatpush1.msra.mxu0 %v2046
    %2070 = vmatprep.subr.mxu0 0.0
    %2071 = vmatpush1.msra.mxu0 0.0
    %2072 = vmatprep.subr.mxu0 0.0
    %2073 = vmatpush1.msra.mxu0 0.0
    %2074 = vmatprep.subr.mxu0 0.0
    %2075 = vmatpush1.msra.mxu0 0.0
    %2076 = vmatprep.subr.mxu0 0.0
    %2077 = vmatpush1.msra.mxu0 0.0
    %2078 = vmatprep.subr.mxu0 0.0
    %2079 = vmatpush1.msra.mxu0 0.0
    %2080 = vmatprep.subr.mxu0 0.0
    %2081 = vmatpush1.msra.mxu0 0.0
    %2082 = vmatprep.subr.mxu0 0.0
    %2083 = vmatpush1.msra.mxu0 0.0
    %2084 = vmatprep.subr.mxu0 0.0
    %2085 = vmatpush1.msra.mxu0 0.0
    %2086 = vmatprep.subr.mxu0 0.0
    %2087 = vmatpush1.msra.mxu0 0.0
    %2088 = vmatprep.subr.mxu0 0.0
    %2089 = vmatpush1.msra.mxu0 0.0
    %2090 = vmatprep.subr.mxu0 0.0
    %2091 = vmatpush1.msra.mxu0 0.0
    %2092 = vmatprep.subr.mxu0 0.0
    %2093 = vmatpush1.msra.mxu0 0.0
    %2094 = vmatprep.subr.mxu0 0.0
    %2095 = vmatpush1.msra.mxu0 0.0
    %2096 = vmatprep.subr.mxu0 0.0
    %2097 = vmatpush1.msra.mxu0 0.0
    %2098 = vmatprep.subr.mxu0 0.0
    %2099 = vmatpush1.msra.mxu0 0.0
    %2100 = vmatprep.subr.mxu0 0.0
    %2101 = vmatpush1.msra.mxu0 0.0
    %2102 = vmatprep.subr.mxu0 0.0
    %2103 = vmatpush1.msra.mxu0 0.0
    %2104 = vmatprep.subr.mxu0 0.0
    %2105 = vmatpush1.msra.mxu0 0.0
    %2106 = vmatprep.subr.mxu0 0.0
    %2107 = vmatpush1.msra.mxu0 0.0
    %2108 = vmatprep.subr.mxu0 0.0
    %2109 = vmatpush1.msra.mxu0 0.0
    %2110 = vmatprep.subr.mxu0 0.0
    %2111 = vmatpush1.msra.mxu0 0.0
    %2112 = vmatprep.subr.mxu0 0.0
    %2113 = vmatpush1.msra.mxu0 0.0
    %2114 = vmatprep.subr.mxu0 0.0
    %2115 = vmatpush1.msra.mxu0 0.0
    %2116 = vmatprep.subr.mxu0 0.0
    %2117 = vmatpush1.msra.mxu0 0.0
    %2118 = vmatprep.subr.mxu0 0.0
    %2119 = vmatpush1.msra.mxu0 0.0
    %2120 = vmatprep.subr.mxu0 0.0
    %2121 = vmatpush1.msra.mxu0 0.0
    %2122 = vmatprep.subr.mxu0 0.0
    %2123 = vmatpush1.msra.mxu0 0.0
    %2124 = vmatprep.subr.mxu0 0.0
    %2125 = vmatpush1.msra.mxu0 0.0
    %2126 = vmatprep.mubr.f32.mxu0 0.0
    %2127 = vmatmul.mubr.f32.gmra.mrb[0].mxu0 %v2060
    %v2128 = vpop.f32.mrb[0].mxu0
    %v2129 = vadd.f32 0.0, %v2128
    %v2130 = vpop.f32.mrb[0].mxu0
    %2131 = vdwg.mxu0
    %v2132 = vld [vmem:[#allocation5] sm:$0xff]
    %v2133 = vld [vmem:[#allocation5 + $0x8] sm:$0xff]
    %v2134 = vld [vmem:[#allocation5 + $0x10] sm:$0xff]
    %v2135 = vld [vmem:[#allocation5 + $0x18] sm:$0xff]
    %v2137 = vsel %vm308, %v2129, 0
    %2139 = vmatprep.subr.mxu0 0.0
    %2140 = vmatpush1.msra.mxu0 %v2132
    %2141 = vmatprep.subr.mxu0 0.0
    %2142 = vmatpush1.msra.mxu0 %v2133
    %2143 = vmatprep.subr.mxu0 0.0
    %2144 = vmatpush1.msra.mxu0 %v2134
    %2145 = vmatprep.subr.mxu0 0.0
    %2146 = vmatpush1.msra.mxu0 %v2135
    %2147 = vmatprep.subr.mxu0 0.0
    %2148 = vmatpush1.msra.mxu0 0.0
    %2149 = vmatprep.subr.mxu0 0.0
    %2150 = vmatpush1.msra.mxu0 0.0
    %2151 = vmatprep.subr.mxu0 0.0
    %2152 = vmatpush1.msra.mxu0 0.0
    %2153 = vmatprep.subr.mxu0 0.0
    %2154 = vmatpush1.msra.mxu0 0.0
    %2155 = vmatprep.subr.mxu0 0.0
    %2156 = vmatpush1.msra.mxu0 0.0
    %2157 = vmatprep.subr.mxu0 0.0
    %2158 = vmatpush1.msra.mxu0 0.0
    %2159 = vmatprep.subr.mxu0 0.0
    %2160 = vmatpush1.msra.mxu0 0.0
    %2161 = vmatprep.subr.mxu0 0.0
    %2162 = vmatpush1.msra.mxu0 0.0
    %2163 = vmatprep.subr.mxu0 0.0
    %2164 = vmatpush1.msra.mxu0 0.0
    %2165 = vmatprep.subr.mxu0 0.0
    %2166 = vmatpush1.msra.mxu0 0.0
    %2167 = vmatprep.subr.mxu0 0.0
    %2168 = vmatpush1.msra.mxu0 0.0
    %2169 = vmatprep.subr.mxu0 0.0
    %2170 = vmatpush1.msra.mxu0 0.0
    %2171 = vmatprep.subr.mxu0 0.0
    %2172 = vmatpush1.msra.mxu0 0.0
    %2173 = vmatprep.subr.mxu0 0.0
    %2174 = vmatpush1.msra.mxu0 0.0
    %2175 = vmatprep.subr.mxu0 0.0
    %2176 = vmatpush1.msra.mxu0 0.0
    %2177 = vmatprep.subr.mxu0 0.0
    %2178 = vmatpush1.msra.mxu0 0.0
    %2179 = vmatprep.subr.mxu0 0.0
    %2180 = vmatpush1.msra.mxu0 0.0
    %2181 = vmatprep.subr.mxu0 0.0
    %2182 = vmatpush1.msra.mxu0 0.0
    %2183 = vmatprep.subr.mxu0 0.0
    %2184 = vmatpush1.msra.mxu0 0.0
    %2185 = vmatprep.subr.mxu0 0.0
    %2186 = vmatpush1.msra.mxu0 0.0
    %2187 = vmatprep.subr.mxu0 0.0
    %2188 = vmatpush1.msra.mxu0 0.0
    %2189 = vmatprep.subr.mxu0 0.0
    %2190 = vmatpush1.msra.mxu0 0.0
    %2191 = vmatprep.subr.mxu0 0.0
    %2192 = vmatpush1.msra.mxu0 0.0
    %2193 = vmatprep.subr.mxu0 0.0
    %2194 = vmatpush1.msra.mxu0 0.0
    %2195 = vmatprep.subr.mxu0 0.0
    %2196 = vmatpush1.msra.mxu0 0.0
    %2197 = vmatprep.subr.mxu0 0.0
    %2198 = vmatpush1.msra.mxu0 0.0
    %2199 = vmatprep.subr.mxu0 0.0
    %2200 = vmatpush1.msra.mxu0 0.0
    %2201 = vmatprep.subr.mxu0 0.0
    %2202 = vmatpush1.msra.mxu0 0.0
    %2203 = vmatprep.mubr.f32.mxu0 0.0
    %2204 = vmatmul.mubr.f32.gmra.mrb[0].mxu0 %v2137
    %v2205 = vpop.f32.mrb[0].mxu0
    %v2206 = vadd.f32 0.0, %v2205
    %v2207 = vpop.f32.mrb[0].mxu0
    %2208 = vdwg.mxu0
    %v2209 = vadd.f32 %v2055, %v2206
    %v2210 = vadd.s32 %v2047, 1
    %vm2211 = vcmp.eq.s32.totalorder %v57, %v2210
    %v2212 = vsel %vm2211, 1, 0
    %v2213 = vcvt.s32.f32 %v2212
    %v2215 = vsel %vm308, %v2213, 0
    %2217 = vmatprep.subr.mxu0 0.0
    %2218 = vmatpush1.msra.mxu0 %v2043
    %2219 = vmatprep.subr.mxu0 0.0
    %2220 = vmatpush1.msra.mxu0 %v2044
    %2221 = vmatprep.subr.mxu0 0.0
    %2222 = vmatpush1.msra.mxu0 %v2045
    %2223 = vmatprep.subr.mxu0 0.0
    %2224 = vmatpush1.msra.mxu0 %v2046
    %2225 = vmatprep.subr.mxu0 0.0
    %2226 = vmatpush1.msra.mxu0 0.0
    %2227 = vmatprep.subr.mxu0 0.0
    %2228 = vmatpush1.msra.mxu0 0.0
    %2229 = vmatprep.subr.mxu0 0.0
    %2230 = vmatpush1.msra.mxu0 0.0
    %2231 = vmatprep.subr.mxu0 0.0
    %2232 = vmatpush1.msra.mxu0 0.0
    %2233 = vmatprep.subr.mxu0 0.0
    %2234 = vmatpush1.msra.mxu0 0.0
    %2235 = vmatprep.subr.mxu0 0.0
    %2236 = vmatpush1.msra.mxu0 0.0
    %2237 = vmatprep.subr.mxu0 0.0
    %2238 = vmatpush1.msra.mxu0 0.0
    %2239 = vmatprep.subr.mxu0 0.0
    %2240 = vmatpush1.msra.mxu0 0.0
    %2241 = vmatprep.subr.mxu0 0.0
    %2242 = vmatpush1.msra.mxu0 0.0
    %2243 = vmatprep.subr.mxu0 0.0
    %2244 = vmatpush1.msra.mxu0 0.0
    %2245 = vmatprep.subr.mxu0 0.0
    %2246 = vmatpush1.msra.mxu0 0.0
    %2247 = vmatprep.subr.mxu0 0.0
    %2248 = vmatpush1.msra.mxu0 0.0
    %2249 = vmatprep.subr.mxu0 0.0
    %2250 = vmatpush1.msra.mxu0 0.0
    %2251 = vmatprep.subr.mxu0 0.0
    %2252 = vmatpush1.msra.mxu0 0.0
    %2253 = vmatprep.subr.mxu0 0.0
    %2254 = vmatpush1.msra.mxu0 0.0
    %2255 = vmatprep.subr.mxu0 0.0
    %2256 = vmatpush1.msra.mxu0 0.0
    %2257 = vmatprep.subr.mxu0 0.0
    %2258 = vmatpush1.msra.mxu0 0.0
    %2259 = vmatprep.subr.mxu0 0.0
    %2260 = vmatpush1.msra.mxu0 0.0
    %2261 = vmatprep.subr.mxu0 0.0
    %2262 = vmatpush1.msra.mxu0 0.0
    %2263 = vmatprep.subr.mxu0 0.0
    %2264 = vmatpush1.msra.mxu0 0.0
    %2265 = vmatprep.subr.mxu0 0.0
    %2266 = vmatpush1.msra.mxu0 0.0
    %2267 = vmatprep.subr.mxu0 0.0
    %2268 = vmatpush1.msra.mxu0 0.0
    %2269 = vmatprep.subr.mxu0 0.0
    %2270 = vmatpush1.msra.mxu0 0.0
    %2271 = vmatprep.subr.mxu0 0.0
    %2272 = vmatpush1.msra.mxu0 0.0
    %2273 = vmatprep.subr.mxu0 0.0
    %2274 = vmatpush1.msra.mxu0 0.0
    %2275 = vmatprep.subr.mxu0 0.0
    %2276 = vmatpush1.msra.mxu0 0.0
    %2277 = vmatprep.subr.mxu0 0.0
    %2278 = vmatpush1.msra.mxu0 0.0
    %2279 = vmatprep.subr.mxu0 0.0
    %2280 = vmatpush1.msra.mxu0 0.0
    %2281 = vmatprep.mubr.f32.mxu0 0.0
    %2282 = vmatmul.mubr.f32.gmra.mrb[0].mxu0 %v2215
    %v2283 = vpop.f32.mrb[0].mxu0
    %v2284 = vadd.f32 0.0, %v2283
    %v2285 = vpop.f32.mrb[0].mxu0
    %2286 = vdwg.mxu0
    %s2287 = scalar_lea.vmem [#allocation5], 32
    %v2288 = vld [vmem:[%s2287] sm:$0xff]
    %v2289 = vld [vmem:[%s2287 + $0x8] sm:$0xff]
    %v2290 = vld [vmem:[%s2287 + $0x10] sm:$0xff]
    %v2291 = vld [vmem:[%s2287 + $0x18] sm:$0xff]
    %v2293 = vsel %vm308, %v2284, 0
    %2295 = vmatprep.subr.mxu0 0.0
    %2296 = vmatpush1.msra.mxu0 %v2288
    %2297 = vmatprep.subr.mxu0 0.0
    %2298 = vmatpush1.msra.mxu0 %v2289
    %2299 = vmatprep.subr.mxu0 0.0
    %2300 = vmatpush1.msra.mxu0 %v2290
    %2301 = vmatprep.subr.mxu0 0.0
    %2302 = vmatpush1.msra.mxu0 %v2291
    %2303 = vmatprep.subr.mxu0 0.0
    %2304 = vmatpush1.msra.mxu0 0.0
    %2305 = vmatprep.subr.mxu0 0.0
    %2306 = vmatpush1.msra.mxu0 0.0
    %2307 = vmatprep.subr.mxu0 0.0
    %2308 = vmatpush1.msra.mxu0 0.0
    %2309 = vmatprep.subr.mxu0 0.0
    %2310 = vmatpush1.msra.mxu0 0.0
    %2311 = vmatprep.subr.mxu0 0.0
    %2312 = vmatpush1.msra.mxu0 0.0
    %2313 = vmatprep.subr.mxu0 0.0
    %2314 = vmatpush1.msra.mxu0 0.0
    %2315 = vmatprep.subr.mxu0 0.0
    %2316 = vmatpush1.msra.mxu0 0.0
    %2317 = vmatprep.subr.mxu0 0.0
    %2318 = vmatpush1.msra.mxu0 0.0
    %2319 = vmatprep.subr.mxu0 0.0
    %2320 = vmatpush1.msra.mxu0 0.0
    %2321 = vmatprep.subr.mxu0 0.0
    %2322 = vmatpush1.msra.mxu0 0.0
    %2323 = vmatprep.subr.mxu0 0.0
    %2324 = vmatpush1.msra.mxu0 0.0
    %2325 = vmatprep.subr.mxu0 0.0
    %2326 = vmatpush1.msra.mxu0 0.0
    %2327 = vmatprep.subr.mxu0 0.0
    %2328 = vmatpush1.msra.mxu0 0.0
    %2329 = vmatprep.subr.mxu0 0.0
    %2330 = vmatpush1.msra.mxu0 0.0
    %2331 = vmatprep.subr.mxu0 0.0
    %2332 = vmatpush1.msra.mxu0 0.0
    %2333 = vmatprep.subr.mxu0 0.0
    %2334 = vmatpush1.msra.mxu0 0.0
    %2335 = vmatprep.subr.mxu0 0.0
    %2336 = vmatpush1.msra.mxu0 0.0
    %2337 = vmatprep.subr.mxu0 0.0
    %2338 = vmatpush1.msra.mxu0 0.0
    %2339 = vmatprep.subr.mxu0 0.0
    %2340 = vmatpush1.msra.mxu0 0.0
    %2341 = vmatprep.subr.mxu0 0.0
    %2342 = vmatpush1.msra.mxu0 0.0
    %2343 = vmatprep.subr.mxu0 0.0
    %2344 = vmatpush1.msra.mxu0 0.0
    %2345 = vmatprep.subr.mxu0 0.0
    %2346 = vmatpush1.msra.mxu0 0.0
    %2347 = vmatprep.subr.mxu0 0.0
    %2348 = vmatpush1.msra.mxu0 0.0
    %2349 = vmatprep.subr.mxu0 0.0
    %2350 = vmatpush1.msra.mxu0 0.0
    %2351 = vmatprep.subr.mxu0 0.0
    %2352 = vmatpush1.msra.mxu0 0.0
    %2353 = vmatprep.subr.mxu0 0.0
    %2354 = vmatpush1.msra.mxu0 0.0
    %2355 = vmatprep.subr.mxu0 0.0
    %2356 = vmatpush1.msra.mxu0 0.0
    %2357 = vmatprep.subr.mxu0 0.0
    %2358 = vmatpush1.msra.mxu0 0.0
    %2359 = vmatprep.mubr.f32.mxu0 0.0
    %2360 = vmatmul.mubr.f32.gmra.mrb[0].mxu0 %v2293
    %v2361 = vpop.f32.mrb[0].mxu0
    %v2362 = vadd.f32 0.0, %v2361
    %v2363 = vpop.f32.mrb[0].mxu0
    %2364 = vdwg.mxu0
    %v2365 = vadd.f32 %v2209, %v2362
    %v2366 = vadd.s32 %v2047, 2
    %vm2367 = vcmp.eq.s32.totalorder %v57, %v2366
    %v2368 = vsel %vm2367, 1, 0
    %v2369 = vcvt.s32.f32 %v2368
    %v2371 = vsel %vm308, %v2369, 0
    %2373 = vmatprep.subr.mxu0 0.0
    %2374 = vmatpush1.msra.mxu0 %v2043
    %2375 = vmatprep.subr.mxu0 0.0
    %2376 = vmatpush1.msra.mxu0 %v2044
    %2377 = vmatprep.subr.mxu0 0.0
    %2378 = vmatpush1.msra.mxu0 %v2045
    %2379 = vmatprep.subr.mxu0 0.0
    %2380 = vmatpush1.msra.mxu0 %v2046
    %2381 = vmatprep.subr.mxu0 0.0
    %2382 = vmatpush1.msra.mxu0 0.0
    %2383 = vmatprep.subr.mxu0 0.0
    %2384 = vmatpush1.msra.mxu0 0.0
    %2385 = vmatprep.subr.mxu0 0.0
    %2386 = vmatpush1.msra.mxu0 0.0
    %2387 = vmatprep.subr.mxu0 0.0
    %2388 = vmatpush1.msra.mxu0 0.0
    %2389 = vmatprep.subr.mxu0 0.0
    %2390 = vmatpush1.msra.mxu0 0.0
    %2391 = vmatprep.subr.mxu0 0.0
    %2392 = vmatpush1.msra.mxu0 0.0
    %2393 = vmatprep.subr.mxu0 0.0
    %2394 = vmatpush1.msra.mxu0 0.0
    %2395 = vmatprep.subr.mxu0 0.0
    %2396 = vmatpush1.msra.mxu0 0.0
    %2397 = vmatprep.subr.mxu0 0.0
    %2398 = vmatpush1.msra.mxu0 0.0
    %2399 = vmatprep.subr.mxu0 0.0
    %2400 = vmatpush1.msra.mxu0 0.0
    %2401 = vmatprep.subr.mxu0 0.0
    %2402 = vmatpush1.msra.mxu0 0.0
    %2403 = vmatprep.subr.mxu0 0.0
    %2404 = vmatpush1.msra.mxu0 0.0
    %2405 = vmatprep.subr.mxu0 0.0
    %2406 = vmatpush1.msra.mxu0 0.0
    %2407 = vmatprep.subr.mxu0 0.0
    %2408 = vmatpush1.msra.mxu0 0.0
    %2409 = vmatprep.subr.mxu0 0.0
    %2410 = vmatpush1.msra.mxu0 0.0
    %2411 = vmatprep.subr.mxu0 0.0
    %2412 = vmatpush1.msra.mxu0 0.0
    %2413 = vmatprep.subr.mxu0 0.0
    %2414 = vmatpush1.msra.mxu0 0.0
    %2415 = vmatprep.subr.mxu0 0.0
    %2416 = vmatpush1.msra.mxu0 0.0
    %2417 = vmatprep.subr.mxu0 0.0
    %2418 = vmatpush1.msra.mxu0 0.0
    %2419 = vmatprep.subr.mxu0 0.0
    %2420 = vmatpush1.msra.mxu0 0.0
    %2421 = vmatprep.subr.mxu0 0.0
    %2422 = vmatpush1.msra.mxu0 0.0
    %2423 = vmatprep.subr.mxu0 0.0
    %2424 = vmatpush1.msra.mxu0 0.0
    %2425 = vmatprep.subr.mxu0 0.0
    %2426 = vmatpush1.msra.mxu0 0.0
    %2427 = vmatprep.subr.mxu0 0.0
    %2428 = vmatpush1.msra.mxu0 0.0
    %2429 = vmatprep.subr.mxu0 0.0
    %2430 = vmatpush1.msra.mxu0 0.0
    %2431 = vmatprep.subr.mxu0 0.0
    %2432 = vmatpush1.msra.mxu0 0.0
    %2433 = vmatprep.subr.mxu0 0.0
    %2434 = vmatpush1.msra.mxu0 0.0
    %2435 = vmatprep.subr.mxu0 0.0
    %2436 = vmatpush1.msra.mxu0 0.0
    %2437 = vmatprep.mubr.f32.mxu0 0.0
    %2438 = vmatmul.mubr.f32.gmra.mrb[0].mxu0 %v2371
    %v2439 = vpop.f32.mrb[0].mxu0
    %v2440 = vadd.f32 0.0, %v2439
    %v2441 = vpop.f32.mrb[0].mxu0
    %2442 = vdwg.mxu0
    %s2443 = scalar_lea.vmem [#allocation5], 64
    %v2444 = vld [vmem:[%s2443] sm:$0xff]
    %v2445 = vld [vmem:[%s2443 + $0x8] sm:$0xff]
    %v2446 = vld [vmem:[%s2443 + $0x10] sm:$0xff]
    %v2447 = vld [vmem:[%s2443 + $0x18] sm:$0xff]
    %v2449 = vsel %vm308, %v2440, 0
    %2451 = vmatprep.subr.mxu0 0.0
    %2452 = vmatpush1.msra.mxu0 %v2444
    %2453 = vmatprep.subr.mxu0 0.0
    %2454 = vmatpush1.msra.mxu0 %v2445
    %2455 = vmatprep.subr.mxu0 0.0
    %2456 = vmatpush1.msra.mxu0 %v2446
    %2457 = vmatprep.subr.mxu0 0.0
    %2458 = vmatpush1.msra.mxu0 %v2447
    %2459 = vmatprep.subr.mxu0 0.0
    %2460 = vmatpush1.msra.mxu0 0.0
    %2461 = vmatprep.subr.mxu0 0.0
    %2462 = vmatpush1.msra.mxu0 0.0
    %2463 = vmatprep.subr.mxu0 0.0
    %2464 = vmatpush1.msra.mxu0 0.0
    %2465 = vmatprep.subr.mxu0 0.0
    %2466 = vmatpush1.msra.mxu0 0.0
    %2467 = vmatprep.subr.mxu0 0.0
    %2468 = vmatpush1.msra.mxu0 0.0
    %2469 = vmatprep.subr.mxu0 0.0
    %2470 = vmatpush1.msra.mxu0 0.0
    %2471 = vmatprep.subr.mxu0 0.0
    %2472 = vmatpush1.msra.mxu0 0.0
    %2473 = vmatprep.subr.mxu0 0.0
    %2474 = vmatpush1.msra.mxu0 0.0
    %2475 = vmatprep.subr.mxu0 0.0
    %2476 = vmatpush1.msra.mxu0 0.0
    %2477 = vmatprep.subr.mxu0 0.0
    %2478 = vmatpush1.msra.mxu0 0.0
    %2479 = vmatprep.subr.mxu0 0.0
    %2480 = vmatpush1.msra.mxu0 0.0
    %2481 = vmatprep.subr.mxu0 0.0
    %2482 = vmatpush1.msra.mxu0 0.0
    %2483 = vmatprep.subr.mxu0 0.0
    %2484 = vmatpush1.msra.mxu0 0.0
    %2485 = vmatprep.subr.mxu0 0.0
    %2486 = vmatpush1.msra.mxu0 0.0
    %2487 = vmatprep.subr.mxu0 0.0
    %2488 = vmatpush1.msra.mxu0 0.0
    %2489 = vmatprep.subr.mxu0 0.0
    %2490 = vmatpush1.msra.mxu0 0.0
    %2491 = vmatprep.subr.mxu0 0.0
    %2492 = vmatpush1.msra.mxu0 0.0
    %2493 = vmatprep.subr.mxu0 0.0
    %2494 = vmatpush1.msra.mxu0 0.0
    %2495 = vmatprep.subr.mxu0 0.0
    %2496 = vmatpush1.msra.mxu0 0.0
    %2497 = vmatprep.subr.mxu0 0.0
    %2498 = vmatpush1.msra.mxu0 0.0
    %2499 = vmatprep.subr.mxu0 0.0
    %2500 = vmatpush1.msra.mxu0 0.0
    %2501 = vmatprep.subr.mxu0 0.0
    %2502 = vmatpush1.msra.mxu0 0.0
    %2503 = vmatprep.subr.mxu0 0.0
    %2504 = vmatpush1.msra.mxu0 0.0
    %2505 = vmatprep.subr.mxu0 0.0
    %2506 = vmatpush1.msra.mxu0 0.0
    %2507 = vmatprep.subr.mxu0 0.0
    %2508 = vmatpush1.msra.mxu0 0.0
    %2509 = vmatprep.subr.mxu0 0.0
    %2510 = vmatpush1.msra.mxu0 0.0
    %2511 = vmatprep.subr.mxu0 0.0
    %2512 = vmatpush1.msra.mxu0 0.0
    %2513 = vmatprep.subr.mxu0 0.0
    %2514 = vmatpush1.msra.mxu0 0.0
    %2515 = vmatprep.mubr.f32.mxu0 0.0
    %2516 = vmatmul.mubr.f32.gmra.mrb[0].mxu0 %v2449
    %v2517 = vpop.f32.mrb[0].mxu0
    %v2518 = vadd.f32 0.0, %v2517
    %v2519 = vpop.f32.mrb[0].mxu0
    %2520 = vdwg.mxu0
    %v2521 = vadd.f32 %v2365, %v2518
    %v2522 = vadd.s32 %v2047, 3
    %vm2523 = vcmp.eq.s32.totalorder %v57, %v2522
    %v2524 = vsel %vm2523, 1, 0
    %v2525 = vcvt.s32.f32 %v2524
    %v2527 = vsel %vm308, %v2525, 0
    %2529 = vmatprep.subr.mxu0 0.0
    %2530 = vmatpush1.msra.mxu0 %v2043
    %2531 = vmatprep.subr.mxu0 0.0
    %2532 = vmatpush1.msra.mxu0 %v2044
    %2533 = vmatprep.subr.mxu0 0.0
    %2534 = vmatpush1.msra.mxu0 %v2045
    %2535 = vmatprep.subr.mxu0 0.0
    %2536 = vmatpush1.msra.mxu0 %v2046
    %2537 = vmatprep.subr.mxu0 0.0
    %2538 = vmatpush1.msra.mxu0 0.0
    %2539 = vmatprep.subr.mxu0 0.0
    %2540 = vmatpush1.msra.mxu0 0.0
    %2541 = vmatprep.subr.mxu0 0.0
    %2542 = vmatpush1.msra.mxu0 0.0
    %2543 = vmatprep.subr.mxu0 0.0
    %2544 = vmatpush1.msra.mxu0 0.0
    %2545 = vmatprep.subr.mxu0 0.0
    %2546 = vmatpush1.msra.mxu0 0.0
    %2547 = vmatprep.subr.mxu0 0.0
    %2548 = vmatpush1.msra.mxu0 0.0
    %2549 = vmatprep.subr.mxu0 0.0
    %2550 = vmatpush1.msra.mxu0 0.0
    %2551 = vmatprep.subr.mxu0 0.0
    %2552 = vmatpush1.msra.mxu0 0.0
    %2553 = vmatprep.subr.mxu0 0.0
    %2554 = vmatpush1.msra.mxu0 0.0
    %2555 = vmatprep.subr.mxu0 0.0
    %2556 = vmatpush1.msra.mxu0 0.0
    %2557 = vmatprep.subr.mxu0 0.0
    %2558 = vmatpush1.msra.mxu0 0.0
    %2559 = vmatprep.subr.mxu0 0.0
    %2560 = vmatpush1.msra.mxu0 0.0
    %2561 = vmatprep.subr.mxu0 0.0
    %2562 = vmatpush1.msra.mxu0 0.0
    %2563 = vmatprep.subr.mxu0 0.0
    %2564 = vmatpush1.msra.mxu0 0.0
    %2565 = vmatprep.subr.mxu0 0.0
    %2566 = vmatpush1.msra.mxu0 0.0
    %2567 = vmatprep.subr.mxu0 0.0
    %2568 = vmatpush1.msra.mxu0 0.0
    %2569 = vmatprep.subr.mxu0 0.0
    %2570 = vmatpush1.msra.mxu0 0.0
    %2571 = vmatprep.subr.mxu0 0.0
    %2572 = vmatpush1.msra.mxu0 0.0
    %2573 = vmatprep.subr.mxu0 0.0
    %2574 = vmatpush1.msra.mxu0 0.0
    %2575 = vmatprep.subr.mxu0 0.0
    %2576 = vmatpush1.msra.mxu0 0.0
    %2577 = vmatprep.subr.mxu0 0.0
    %2578 = vmatpush1.msra.mxu0 0.0
    %2579 = vmatprep.subr.mxu0 0.0
    %2580 = vmatpush1.msra.mxu0 0.0
    %2581 = vmatprep.subr.mxu0 0.0
    %2582 = vmatpush1.msra.mxu0 0.0
    %2583 = vmatprep.subr.mxu0 0.0
    %2584 = vmatpush1.msra.mxu0 0.0
    %2585 = vmatprep.subr.mxu0 0.0
    %2586 = vmatpush1.msra.mxu0 0.0
    %2587 = vmatprep.subr.mxu0 0.0
    %2588 = vmatpush1.msra.mxu0 0.0
    %2589 = vmatprep.subr.mxu0 0.0
    %2590 = vmatpush1.msra.mxu0 0.0
    %2591 = vmatprep.subr.mxu0 0.0
    %2592 = vmatpush1.msra.mxu0 0.0
    %2593 = vmatprep.mubr.f32.mxu0 0.0
    %2594 = vmatmul.mubr.f32.gmra.mrb[0].mxu0 %v2527
    %v2595 = vpop.f32.mrb[0].mxu0
    %v2596 = vadd.f32 0.0, %v2595
    %v2597 = vpop.f32.mrb[0].mxu0
    %2598 = vdwg.mxu0
    %s2599 = scalar_lea.vmem [#allocation5], 96
    %v2600 = vld [vmem:[%s2599] sm:$0xff]
    %v2601 = vld [vmem:[%s2599 + $0x8] sm:$0xff]
    %v2602 = vld [vmem:[%s2599 + $0x10] sm:$0xff]
    %v2603 = vld [vmem:[%s2599 + $0x18] sm:$0xff]
    %v2605 = vsel %vm308, %v2596, 0
    %2607 = vmatprep.subr.mxu0 0.0
    %2608 = vmatpush1.msra.mxu0 %v2600
    %2609 = vmatprep.subr.mxu0 0.0
    %2610 = vmatpush1.msra.mxu0 %v2601
    %2611 = vmatprep.subr.mxu0 0.0
    %2612 = vmatpush1.msra.mxu0 %v2602
    %2613 = vmatprep.subr.mxu0 0.0
    %2614 = vmatpush1.msra.mxu0 %v2603
    %2615 = vmatprep.subr.mxu0 0.0
    %2616 = vmatpush1.msra.mxu0 0.0
    %2617 = vmatprep.subr.mxu0 0.0
    %2618 = vmatpush1.msra.mxu0 0.0
    %2619 = vmatprep.subr.mxu0 0.0
    %2620 = vmatpush1.msra.mxu0 0.0
    %2621 = vmatprep.subr.mxu0 0.0
    %2622 = vmatpush1.msra.mxu0 0.0
    %2623 = vmatprep.subr.mxu0 0.0
    %2624 = vmatpush1.msra.mxu0 0.0
    %2625 = vmatprep.subr.mxu0 0.0
    %2626 = vmatpush1.msra.mxu0 0.0
    %2627 = vmatprep.subr.mxu0 0.0
    %2628 = vmatpush1.msra.mxu0 0.0
    %2629 = vmatprep.subr.mxu0 0.0
    %2630 = vmatpush1.msra.mxu0 0.0
    %2631 = vmatprep.subr.mxu0 0.0
    %2632 = vmatpush1.msra.mxu0 0.0
    %2633 = vmatprep.subr.mxu0 0.0
    %2634 = vmatpush1.msra.mxu0 0.0
    %2635 = vmatprep.subr.mxu0 0.0
    %2636 = vmatpush1.msra.mxu0 0.0
    %2637 = vmatprep.subr.mxu0 0.0
    %2638 = vmatpush1.msra.mxu0 0.0
    %2639 = vmatprep.subr.mxu0 0.0
    %2640 = vmatpush1.msra.mxu0 0.0
    %2641 = vmatprep.subr.mxu0 0.0
    %2642 = vmatpush1.msra.mxu0 0.0
    %2643 = vmatprep.subr.mxu0 0.0
    %2644 = vmatpush1.msra.mxu0 0.0
    %2645 = vmatprep.subr.mxu0 0.0
    %2646 = vmatpush1.msra.mxu0 0.0
    %2647 = vmatprep.subr.mxu0 0.0
    %2648 = vmatpush1.msra.mxu0 0.0
    %2649 = vmatprep.subr.mxu0 0.0
    %2650 = vmatpush1.msra.mxu0 0.0
    %2651 = vmatprep.subr.mxu0 0.0
    %2652 = vmatpush1.msra.mxu0 0.0
    %2653 = vmatprep.subr.mxu0 0.0
    %2654 = vmatpush1.msra.mxu0 0.0
    %2655 = vmatprep.subr.mxu0 0.0
    %2656 = vmatpush1.msra.mxu0 0.0
    %2657 = vmatprep.subr.mxu0 0.0
    %2658 = vmatpush1.msra.mxu0 0.0
    %2659 = vmatprep.subr.mxu0 0.0
    %2660 = vmatpush1.msra.mxu0 0.0
    %2661 = vmatprep.subr.mxu0 0.0
    %2662 = vmatpush1.msra.mxu0 0.0
    %2663 = vmatprep.subr.mxu0 0.0
    %2664 = vmatpush1.msra.mxu0 0.0
    %2665 = vmatprep.subr.mxu0 0.0
    %2666 = vmatpush1.msra.mxu0 0.0
    %2667 = vmatprep.subr.mxu0 0.0
    %2668 = vmatpush1.msra.mxu0 0.0
    %2669 = vmatprep.subr.mxu0 0.0
    %2670 = vmatpush1.msra.mxu0 0.0
    %2671 = vmatprep.mubr.f32.mxu0 0.0
    %2672 = vmatmul.mubr.f32.gmra.mrb[0].mxu0 %v2605
    %v2673 = vpop.f32.mrb[0].mxu0
    %v2674 = vadd.f32 0.0, %v2673
    %v2675 = vpop.f32.mrb[0].mxu0
    %2676 = vdwg.mxu0
    %v2677 = vadd.f32 %v2521, %v2674
    %2678 = vst [vmem:[#allocation7] sm:$0xff] %v2677
    // Predicated region
    $region34: #{tpu_custom_call.1} parent=1 // pred_check
      _
    $region35: #{tpu_custom_call.1} parent=1 // pred_check_branch
      %2680 = sbr.rel (0) target = $region37
    $region36: #{tpu_custom_call.1} parent=1 // pred_region
      %s2682 = ssub.s32 128, 128
      %2683 = vsyncadd [#allocation4], %s2682
      %s2685 = sshll.u32 [#allocation7], 4
      %s2686 = int_to_ptr.vmem [resolvable:$true] %s2685
      %2688 = dma.vmem_to_hbm [thread:$0]  %s2686, 128, %s6, [#allocation4]
    $region37: #{tpu_custom_call.1} parent=1 // pred_fallthru
      _
    // Predicated region
    $region38: #{tpu_custom_call.1} parent=1 // pred_check
      _
    $region39: #{tpu_custom_call.1} parent=1 // pred_check_branch
      %2690 = sbr.rel (0) target = $region41
    $region40: #{tpu_custom_call.1} parent=1 // pred_region
      %2691 = dma.done [#allocation4], 128
    $region41: #{tpu_custom_call.1} parent=1 // pred_fallthru
      _
    %2692 = vsyncpa [#allocation3], 1
    %2693 = vsyncpa [#allocation6], 1
    %2694 = vsyncpa [#allocation4], 1

</llo_original>
